<compile_context>
chip_gen: v7x
topology: tpu7x:2x2x1
jax: 0.10.0
libtpu: 0.0.40
codegen_flags: <defaults>
</compile_context>

<pallas_src>
import functools

import jax
import jax.numpy as jnp
from jax import lax
from jax.experimental import pallas as pl
from jax.experimental.pallas import tpu as pltpu

_LANE = 128


def _im2col_matmul(x_ref, w_ref, patch_ref, *, KH, KW):
    """Build the im2col patch matrix in VMEM and do one MXU matmul (f32 acc)."""
    _, H, W, Cin = x_ref.shape
    HO = H - KH + 1
    WO = W - KW + 1
    M = HO * WO

    x = x_ref[...]  # (1, H, W, Cin) bf16, loaded once

    # im2col: one pass building the patch matrix, then a single MXU matmul with
    # contraction K = KH*KW*Cin (instead of KH*KW matmuls with K=Cin).
    for kh in range(KH):
        for kw in range(KW):
            col = (kh * KW + kw) * Cin
            patch_ref[:, col:col + Cin] = (
                x[0, kh:kh + HO, kw:kw + WO, :].reshape(M, Cin))

    return jnp.dot(patch_ref[...], w_ref[...],
                   preferred_element_type=jnp.float32)      # (M, Cpad) f32


def _conv_stats_kernel(x_ref, w_ref, conv_ref, stats_ref, patch_ref, *, KH, KW):
    # x_ref:     (1, H, W, Cin)        bf16  one image (NHWC)
    # w_ref:     (KH*KW*Cin, Cpad)     bf16  folded HWIO weights, Cout padded to 128
    # conv_ref:  (1, HO*WO, Cpad)      f32   conv output (flattened spatial)
    # stats_ref: (1, 2, Cpad)          f32   [per-channel sum; per-channel sum of squares]
    # patch_ref: (HO*WO, KH*KW*Cin)    bf16  VMEM scratch (im2col patch matrix)
    acc = _im2col_matmul(x_ref, w_ref, patch_ref, KH=KH, KW=KW)
    conv_ref[...] = acc[None]

    # Single-pass per-channel statistics (sum and sum of squares) for BatchNorm;
    # sublane reductions go to the XLU (cheap next to the MXU matmul).
    s = jnp.sum(acc, axis=0, keepdims=True)                 # (1, Cpad)
    ss = jnp.sum(acc * acc, axis=0, keepdims=True)          # (1, Cpad)
    stats_ref[...] = jnp.concatenate([s, ss], axis=0)[None]


def _conv_only_kernel(x_ref, w_ref, conv_ref, patch_ref, *, KH, KW):
    # activation=False path: conv only, no BN statistics.
    acc = _im2col_matmul(x_ref, w_ref, patch_ref, KH=KH, KW=KW)
    conv_ref[...] = acc[None].astype(conv_ref.dtype)


def _scale_shift_relu_kernel(y_ref, scale_ref, shift_ref, o_ref):
    # y_ref:     (1, M, Cpad) f32 conv output block
    # scale_ref: (1, 1, Cpad) f32 folded BN scale  (gamma * rsqrt(var + eps))
    # shift_ref: (1, 1, Cpad) f32 folded BN shift  (beta - mean * scale)
    # o_ref:     (1, M, Cpad) output (input dtype)
    out = y_ref[...] * scale_ref[...] + shift_ref[...]
    o_ref[...] = jnp.maximum(out, 0.0).astype(o_ref.dtype)


def conv2d_bn_relu(x_nchw, weight_oihw, gamma, beta, *,
                   padding=0, activation=True, eps=1e-5):
    """Forward of the PyTorch `Conv2d` block.  Inputs/outputs are NCHW like PyTorch."""
    N, Cin, H, W = x_nchw.shape
    Cout, Cin_w, KH, KW = weight_oihw.shape
    assert Cin == Cin_w

    if padding > 0:
        # padding_mode='reflect' of nn.Conv2d (layout glue, not hot path).
        x_nchw = jnp.pad(
            x_nchw,
            ((0, 0), (0, 0), (padding, padding), (padding, padding)),
            mode="reflect",
        )
        H += 2 * padding
        W += 2 * padding

    HO = H - KH + 1   # stride=1, dilation=1
    WO = W - KW + 1
    M = HO * WO
    KK = KH * KW * Cin
    Cpad = ((Cout + _LANE - 1) // _LANE) * _LANE

    # Layout glue (plain JAX): NCHW -> NHWC, OIHW -> folded (KH*KW*Cin, Cpad),
    # bf16 MXU operands.  Zero-padded output channels stay exactly zero.
    x_nhwc = jnp.transpose(x_nchw, (0, 2, 3, 1)).astype(jnp.bfloat16)
    w_folded = jnp.transpose(weight_oihw, (2, 3, 1, 0)).reshape(KK, Cout)
    w_folded = jnp.pad(w_folded, ((0, 0), (0, Cpad - Cout))).astype(jnp.bfloat16)

    x_spec = pl.BlockSpec((1, H, W, Cin), lambda n: (n, 0, 0, 0))   # x (per image)
    w_spec = pl.BlockSpec((KK, Cpad), lambda n: (0, 0))             # folded weights
    conv_spec = pl.BlockSpec((1, M, Cpad), lambda n: (n, 0, 0))     # conv output
    parallel = pltpu.CompilerParams(dimension_semantics=("parallel",))

    if not activation:
        conv_out = pl.pallas_call(
            functools.partial(_conv_only_kernel, KH=KH, KW=KW),
            grid=(N,),
            out_shape=jax.ShapeDtypeStruct((N, M, Cpad), jnp.float32),
            in_specs=[x_spec, w_spec],
            out_specs=conv_spec,
            scratch_shapes=[pltpu.VMEM((M, KK), jnp.bfloat16)],     # im2col patch
            compiler_params=parallel,
        )(x_nhwc, w_folded)
        out_flat = conv_out.astype(x_nchw.dtype)
    else:
        conv_out, stats = pl.pallas_call(
            functools.partial(_conv_stats_kernel, KH=KH, KW=KW),
            grid=(N,),
            out_shape=(
                jax.ShapeDtypeStruct((N, M, Cpad), jnp.float32),
                jax.ShapeDtypeStruct((N, 2, Cpad), jnp.float32),
            ),
            in_specs=[x_spec, w_spec],
            out_specs=(
                conv_spec,
                pl.BlockSpec((1, 2, Cpad), lambda n: (n, 0, 0)),    # per-image stats
            ),
            scratch_shapes=[pltpu.VMEM((M, KK), jnp.bfloat16)],     # im2col patch
            compiler_params=parallel,
        )(x_nhwc, w_folded)

        # BatchNorm finalize (tiny per-channel math, plain-JAX glue): fold BN
        # into one scale/shift per channel; biased batch variance (training mode).
        count = float(N * M)
        sums = jnp.sum(stats, axis=0)                   # (2, Cpad)
        mean = sums[0] / count                          # (Cpad,)
        var = jnp.maximum(sums[1] / count - mean * mean, 0.0)
        gamma_p = jnp.pad(gamma.astype(jnp.float32), (0, Cpad - Cout))
        beta_p = jnp.pad(beta.astype(jnp.float32), (0, Cpad - Cout))
        scale = gamma_p * lax.rsqrt(var + eps)          # (Cpad,)
        shift = beta_p - mean * scale                   # (Cpad,)

        out_flat = pl.pallas_call(
            _scale_shift_relu_kernel,
            grid=(N,),
            out_shape=jax.ShapeDtypeStruct((N, M, Cpad), x_nchw.dtype),
            in_specs=[
                conv_spec,                                           # conv output
                pl.BlockSpec((1, 1, Cpad), lambda n: (0, 0, 0)),     # scale
                pl.BlockSpec((1, 1, Cpad), lambda n: (0, 0, 0)),     # shift
            ],
            out_specs=conv_spec,
            compiler_params=parallel,
        )(conv_out, scale.reshape(1, 1, Cpad), shift.reshape(1, 1, Cpad))

    # Slice off the lane padding and go back to NCHW (layout glue).
    out_nhwc = out_flat[:, :, :Cout].reshape(N, HO, WO, Cout)
    return jnp.transpose(out_nhwc, (0, 3, 1, 2))


if __name__ == "__main__":
    key = jax.random.PRNGKey(0)
    kx, kw, kg, kb = jax.random.split(key, 4)

    N, Cin, H, W = 2, 4, 16, 16
    Cout, K = 8, 3

    # Deterministic synthetic parameters (no checkpoint load).
    x = jax.random.normal(kx, (N, Cin, H, W), jnp.float32)
    weight = 0.1 * jax.random.normal(kw, (Cout, Cin, K, K), jnp.float32)  # conv weight (bias=False)
    gamma = 1.0 + 0.1 * jax.random.normal(kg, (Cout,), jnp.float32)       # BN weight
    beta = 0.1 * jax.random.normal(kb, (Cout,), jnp.float32)              # BN bias

    out = conv2d_bn_relu(x, weight, gamma, beta, padding=0, activation=True)
    out = jax.block_until_ready(out)

    assert out.shape == (N, Cout, H - K + 1, W - K + 1), out.shape
    assert bool(jnp.all(out >= 0.0))  # ReLU applied

    # Also exercise the activation=False (conv-only) path.
    out_noact = jax.block_until_ready(
        conv2d_bn_relu(x, weight, gamma, beta, padding=0, activation=False))
    assert out_noact.shape == (N, Cout, H - K + 1, W - K + 1), out_noact.shape

    print("KERNEL_OK")
</pallas_src>

<mosaic_0001>
module attributes {stable_mosaic.version = 11 : i64} {
  func.func @_conv_stats_kernel(%arg0: i32, %arg1: memref<1x16x16x4xbf16, #tpu.memory_space<vmem>>, %arg2: memref<36x128xbf16, #tpu.memory_space<vmem>>, %arg3: memref<1x196x128xf32, #tpu.memory_space<vmem>>, %arg4: memref<1x2x128xf32, #tpu.memory_space<vmem>>, %arg5: memref<196x36xbf16, #tpu.memory_space<vmem>>) attributes {dimension_semantics = [#tpu.dimension_semantics<parallel>], iteration_bounds = array<i64: 2>, scalar_prefetch = 0 : i64, scratch_operands = 1 : i64, tpu.core_type = #tpu.core_type<tc>, window_params = [{transform_indices = @transform_0, window_bounds = array<i64: 1, 16, 16, 4>}, {pipeline_mode = #tpu.pipeline_mode<synchronous>, transform_indices = @transform_1, window_bounds = array<i64: 36, 128>}, {transform_indices = @transform_2, window_bounds = array<i64: 1, 196, 128>}, {transform_indices = @transform_3, window_bounds = array<i64: 1, 2, 128>}]} {
    %c0 = arith.constant 0 : index
    %c0_0 = arith.constant 0 : index
    %c0_1 = arith.constant 0 : index
    %c0_2 = arith.constant 0 : index
    %0 = vector.load %arg1[%c0, %c0_0, %c0_1, %c0_2] : memref<1x16x16x4xbf16, #tpu.memory_space<vmem>>, vector<1x16x16x4xbf16>
    %1 = vector.extract_strided_slice %0 {offsets = [0, 0, 0, 0], sizes = [1, 14, 14, 4], strides = [1, 1, 1, 1]} : vector<1x16x16x4xbf16> to vector<1x14x14x4xbf16>
    %2 = vector.shape_cast %1 : vector<1x14x14x4xbf16> to vector<14x14x4xbf16>
    %3 = vector.shape_cast %2 : vector<14x14x4xbf16> to vector<196x4xbf16>
    %c0_3 = arith.constant 0 : index
    %c0_4 = arith.constant 0 : index
    %4 = vector.load %arg5[%c0_3, %c0_4] : memref<196x36xbf16, #tpu.memory_space<vmem>>, vector<196x4xbf16>
    tpu.vector_store %arg5[%c0_3, %c0_4], %3 {strides = array<i32>} : memref<196x36xbf16, #tpu.memory_space<vmem>>, vector<196x4xbf16>,
    %5 = vector.extract_strided_slice %0 {offsets = [0, 0, 1, 0], sizes = [1, 14, 14, 4], strides = [1, 1, 1, 1]} : vector<1x16x16x4xbf16> to vector<1x14x14x4xbf16>
    %6 = vector.shape_cast %5 : vector<1x14x14x4xbf16> to vector<14x14x4xbf16>
    %7 = vector.shape_cast %6 : vector<14x14x4xbf16> to vector<196x4xbf16>
    %c0_5 = arith.constant 0 : index
    %c4 = arith.constant 4 : index
    %8 = vector.load %arg5[%c0_5, %c4] : memref<196x36xbf16, #tpu.memory_space<vmem>>, vector<196x4xbf16>
    tpu.vector_store %arg5[%c0_5, %c4], %7 {strides = array<i32>} : memref<196x36xbf16, #tpu.memory_space<vmem>>, vector<196x4xbf16>,
    %9 = vector.extract_strided_slice %0 {offsets = [0, 0, 2, 0], sizes = [1, 14, 14, 4], strides = [1, 1, 1, 1]} : vector<1x16x16x4xbf16> to vector<1x14x14x4xbf16>
    %10 = vector.shape_cast %9 : vector<1x14x14x4xbf16> to vector<14x14x4xbf16>
    %11 = vector.shape_cast %10 : vector<14x14x4xbf16> to vector<196x4xbf16>
    %c0_6 = arith.constant 0 : index
    %c8 = arith.constant 8 : index
    %12 = vector.load %arg5[%c0_6, %c8] : memref<196x36xbf16, #tpu.memory_space<vmem>>, vector<196x4xbf16>
    tpu.vector_store %arg5[%c0_6, %c8], %11 {strides = array<i32>} : memref<196x36xbf16, #tpu.memory_space<vmem>>, vector<196x4xbf16>,
    %13 = vector.extract_strided_slice %0 {offsets = [0, 1, 0, 0], sizes = [1, 14, 14, 4], strides = [1, 1, 1, 1]} : vector<1x16x16x4xbf16> to vector<1x14x14x4xbf16>
    %14 = vector.shape_cast %13 : vector<1x14x14x4xbf16> to vector<14x14x4xbf16>
    %15 = vector.shape_cast %14 : vector<14x14x4xbf16> to vector<196x4xbf16>
    %c0_7 = arith.constant 0 : index
    %c12 = arith.constant 12 : index
    %16 = vector.load %arg5[%c0_7, %c12] : memref<196x36xbf16, #tpu.memory_space<vmem>>, vector<196x4xbf16>
    tpu.vector_store %arg5[%c0_7, %c12], %15 {strides = array<i32>} : memref<196x36xbf16, #tpu.memory_space<vmem>>, vector<196x4xbf16>,
    %17 = vector.extract_strided_slice %0 {offsets = [0, 1, 1, 0], sizes = [1, 14, 14, 4], strides = [1, 1, 1, 1]} : vector<1x16x16x4xbf16> to vector<1x14x14x4xbf16>
    %18 = vector.shape_cast %17 : vector<1x14x14x4xbf16> to vector<14x14x4xbf16>
    %19 = vector.shape_cast %18 : vector<14x14x4xbf16> to vector<196x4xbf16>
    %c0_8 = arith.constant 0 : index
    %c16 = arith.constant 16 : index
    %20 = vector.load %arg5[%c0_8, %c16] : memref<196x36xbf16, #tpu.memory_space<vmem>>, vector<196x4xbf16>
    tpu.vector_store %arg5[%c0_8, %c16], %19 {strides = array<i32>} : memref<196x36xbf16, #tpu.memory_space<vmem>>, vector<196x4xbf16>,
    %21 = vector.extract_strided_slice %0 {offsets = [0, 1, 2, 0], sizes = [1, 14, 14, 4], strides = [1, 1, 1, 1]} : vector<1x16x16x4xbf16> to vector<1x14x14x4xbf16>
    %22 = vector.shape_cast %21 : vector<1x14x14x4xbf16> to vector<14x14x4xbf16>
    %23 = vector.shape_cast %22 : vector<14x14x4xbf16> to vector<196x4xbf16>
    %c0_9 = arith.constant 0 : index
    %c20 = arith.constant 20 : index
    %24 = vector.load %arg5[%c0_9, %c20] : memref<196x36xbf16, #tpu.memory_space<vmem>>, vector<196x4xbf16>
    tpu.vector_store %arg5[%c0_9, %c20], %23 {strides = array<i32>} : memref<196x36xbf16, #tpu.memory_space<vmem>>, vector<196x4xbf16>,
    %25 = vector.extract_strided_slice %0 {offsets = [0, 2, 0, 0], sizes = [1, 14, 14, 4], strides = [1, 1, 1, 1]} : vector<1x16x16x4xbf16> to vector<1x14x14x4xbf16>
    %26 = vector.shape_cast %25 : vector<1x14x14x4xbf16> to vector<14x14x4xbf16>
    %27 = vector.shape_cast %26 : vector<14x14x4xbf16> to vector<196x4xbf16>
    %c0_10 = arith.constant 0 : index
    %c24 = arith.constant 24 : index
    %28 = vector.load %arg5[%c0_10, %c24] : memref<196x36xbf16, #tpu.memory_space<vmem>>, vector<196x4xbf16>
    tpu.vector_store %arg5[%c0_10, %c24], %27 {strides = array<i32>} : memref<196x36xbf16, #tpu.memory_space<vmem>>, vector<196x4xbf16>,
    %29 = vector.extract_strided_slice %0 {offsets = [0, 2, 1, 0], sizes = [1, 14, 14, 4], strides = [1, 1, 1, 1]} : vector<1x16x16x4xbf16> to vector<1x14x14x4xbf16>
    %30 = vector.shape_cast %29 : vector<1x14x14x4xbf16> to vector<14x14x4xbf16>
    %31 = vector.shape_cast %30 : vector<14x14x4xbf16> to vector<196x4xbf16>
    %c0_11 = arith.constant 0 : index
    %c28 = arith.constant 28 : index
    %32 = vector.load %arg5[%c0_11, %c28] : memref<196x36xbf16, #tpu.memory_space<vmem>>, vector<196x4xbf16>
    tpu.vector_store %arg5[%c0_11, %c28], %31 {strides = array<i32>} : memref<196x36xbf16, #tpu.memory_space<vmem>>, vector<196x4xbf16>,
    %33 = vector.extract_strided_slice %0 {offsets = [0, 2, 2, 0], sizes = [1, 14, 14, 4], strides = [1, 1, 1, 1]} : vector<1x16x16x4xbf16> to vector<1x14x14x4xbf16>
    %34 = vector.shape_cast %33 : vector<1x14x14x4xbf16> to vector<14x14x4xbf16>
    %35 = vector.shape_cast %34 : vector<14x14x4xbf16> to vector<196x4xbf16>
    %c0_12 = arith.constant 0 : index
    %c32 = arith.constant 32 : index
    %36 = vector.load %arg5[%c0_12, %c32] : memref<196x36xbf16, #tpu.memory_space<vmem>>, vector<196x4xbf16>
    tpu.vector_store %arg5[%c0_12, %c32], %35 {strides = array<i32>} : memref<196x36xbf16, #tpu.memory_space<vmem>>, vector<196x4xbf16>,
    %c0_13 = arith.constant 0 : index
    %c0_14 = arith.constant 0 : index
    %37 = vector.load %arg5[%c0_13, %c0_14] : memref<196x36xbf16, #tpu.memory_space<vmem>>, vector<196x36xbf16>
    %c0_15 = arith.constant 0 : index
    %c0_16 = arith.constant 0 : index
    %38 = vector.load %arg2[%c0_15, %c0_16] : memref<36x128xbf16, #tpu.memory_space<vmem>>, vector<36x128xbf16>
    %cst = arith.constant dense<0.000000e+00> : vector<196x128xf32>
    %39 = tpu.matmul %37, %38, %cst {dimension_numbers = #tpu.dot_dimension_numbers<[1], [0], [0], [1], [0, 0, 1, 1], [], []>} : vector<196x36xbf16>, vector<36x128xbf16>, vector<196x128xf32> -> vector<196x128xf32>
    %40 = vector.shape_cast %39 : vector<196x128xf32> to vector<1x196x128xf32>
    %c0_17 = arith.constant 0 : index
    %c0_18 = arith.constant 0 : index
    %c0_19 = arith.constant 0 : index
    %41 = vector.load %arg3[%c0_17, %c0_18, %c0_19] : memref<1x196x128xf32, #tpu.memory_space<vmem>>, vector<1x196x128xf32>
    tpu.vector_store %arg3[%c0_17, %c0_18, %c0_19], %40 {strides = array<i32>} : memref<1x196x128xf32, #tpu.memory_space<vmem>>, vector<1x196x128xf32>,
    %cst_20 = arith.constant dense<0.000000e+00> : vector<128xf32>
    %42 = vector.multi_reduction <add>, %39, %cst_20 [0] : vector<196x128xf32> to vector<128xf32>
    %43 = vector.shape_cast %42 : vector<128xf32> to vector<1x128xf32>
    %44 = arith.mulf %39, %39 : vector<196x128xf32>
    %cst_21 = arith.constant dense<0.000000e+00> : vector<128xf32>
    %45 = vector.multi_reduction <add>, %44, %cst_21 [0] : vector<196x128xf32> to vector<128xf32>
    %46 = vector.shape_cast %45 : vector<128xf32> to vector<1x128xf32>
    %47 = tpu.concatenate %43, %46 in 0 : vector<1x128xf32>, vector<1x128xf32> -> vector<2x128xf32>
    %48 = vector.shape_cast %47 : vector<2x128xf32> to vector<1x2x128xf32>
    %c0_22 = arith.constant 0 : index
    %c0_23 = arith.constant 0 : index
    %c0_24 = arith.constant 0 : index
    %49 = vector.load %arg4[%c0_22, %c0_23, %c0_24] : memref<1x2x128xf32, #tpu.memory_space<vmem>>, vector<1x2x128xf32>
    tpu.vector_store %arg4[%c0_22, %c0_23, %c0_24], %48 {strides = array<i32>} : memref<1x2x128xf32, #tpu.memory_space<vmem>>, vector<1x2x128xf32>,
    return
  }
  func.func @transform_0(%arg0: i32) -> (i32, i32, i32, i32) {
    %c0_i32 = arith.constant 0 : i32
    %c0_i32_0 = arith.constant 0 : i32
    %c0_i32_1 = arith.constant 0 : i32
    %c0_i32_2 = arith.constant 0 : i32
    return %arg0, %c0_i32, %c0_i32_0, %c0_i32_1 : i32, i32, i32, i32
  }
  func.func @transform_1(%arg0: i32) -> (i32, i32) {
    %c0_i32 = arith.constant 0 : i32
    %c0_i32_0 = arith.constant 0 : i32
    %c0_i32_1 = arith.constant 0 : i32
    return %c0_i32, %c0_i32_0 : i32, i32
  }
  func.func @transform_2(%arg0: i32) -> (i32, i32, i32) {
    %c0_i32 = arith.constant 0 : i32
    %c0_i32_0 = arith.constant 0 : i32
    %c0_i32_1 = arith.constant 0 : i32
    return %arg0, %c0_i32, %c0_i32_0 : i32, i32, i32
  }
  func.func @transform_3(%arg0: i32) -> (i32, i32, i32) {
    %c0_i32 = arith.constant 0 : i32
    %c0_i32_0 = arith.constant 0 : i32
    %c0_i32_1 = arith.constant 0 : i32
    return %arg0, %c0_i32, %c0_i32_0 : i32, i32, i32
  }
}

</mosaic_0001>

<llo_original>
// kernel: tpu_custom_call.1
$region0: #{tpu_custom_call.1}
  #allocation0 [shape = 'u32[]', space=smem, size = 0x4, offset = 0x4, fixed_abs, tag = 'smem constant byte address 0x4 - core index']
  #allocation1 [shape = 'u32[144,128]{1,0:T(1,128)}', space=vmem, size = 0x12000, scoped, tag = 'internal scratch']
  #allocation2 [shape = 'bf16[196,36]{1,0:T(8,128)(2,1)}', space=vmem, size = 0xc800, scoped, tag = 'scratch operand']
  %s0 = inlined_call_operand.vmem [shape: bf16[2,16,16,4], index: 0, kind: input, shape index: {}]
  %s1 = inlined_call_operand.vmem [shape: bf16[36,128], index: 1, kind: input, shape index: {}]
  %s2 = inlined_call_operand.vmem [shape: f32[2,196,128], index: 2, kind: output, shape index: {0}]
  %s3 = inlined_call_operand.hbm [shape: f32[2,2,128], index: 3, kind: output, shape index: {1}]
  %4 = xla_tuple %s2, %s3
  %s5 = sld [smem:[#allocation0]]
  $region49: #{tpu_custom_call.1} parent=0
    _
  %s7 = ssub.s32 1, %s5
  %s8 = scalar_select 0, %s7, %s5
  $region1: #{tpu_custom_call.1} parent=0
    #allocation3 [shape = 'u8[2048]{0}', space=vmem, size = 0x800, scoped, tag = 'output window, operand 1']
    #allocation4 [shape = 's32[2]{0}', space=sflag, size = 0x8, scoped, tag = 'scoped memory for tpu_custom_call.1']
    %9 = vsyncpa [#allocation4], 0
    %s10 = scalar_lea.sflag [#allocation4], 1
    %11 = vsyncpa %s10, 0
    loop: start=0, step=1, limit=4
    $region2: #{tpu_custom_call.1} parent=1 // loop_pre_header
      _
    $region3: #{tpu_custom_call.1} parent=1 // loop_header
      %s13 = sphi 0, %s17
      %p14 = scmp.ge.s32.totalorder %s13, 4
      %s23 = sphi 0, %s25
      %s26 = sphi 0, %s23
      %s27 = sphi 0, %s26
      %s43 = sphi 0, %s27
      %s47 = sphi 0, %s47
      %s49 = sphi 0, %s47
      %s50 = sphi 0, %s49
      %s64 = sphi 0, %s50
      %s70 = sphi 0, %s72
      %s73 = sphi 0, %s70
      %s74 = sphi 0, %s73
      %s90 = sphi 0, %s74
      %s96 = sphi 0, %s98
      %s99 = sphi 0, %s96
      %s100 = sphi 0, %s99
      %s116 = sphi 0, %s100
    $region4: #{tpu_custom_call.1} parent=1 // loop_header_branch
      %16 = sbr.rel (%p14) target = $region8
    $region5: #{tpu_custom_call.1} parent=1 // loop_body
      %s18 = ssub.s32 %s13, 1
      %s19 = ssub.s32 %s13, 2
      %s20 = sadd.s32 %s13, 1
      %s21 = ssub.s32 %s13, %s20
      %p22 = scmp.eq.s32.totalorder %s21, 0
      %s24 = sadd.s32 %s23, 1
      %s25 = scalar_select %p22, %s23, %s24
      %p28 = pneg %p22
      %p29 = scmp.eq.s32.totalorder %s13, 1
      %p30 = por %p28, %p29
      %p31 = scmp.ne.s32.totalorder %s23, %s26
      %p32 = scmp.eq.s32.totalorder %s13, 0
      %p33 = por %p31, %p32
      %p34 = scmp.ne.s32.totalorder %s23, %s26
      %p35 = scmp.eq.s32.totalorder %s18, 1
      %p36 = por %p34, %p35
      %p37 = scmp.ne.s32.totalorder %s26, %s27
      %p38 = scmp.eq.s32.totalorder %s18, 0
      %p39 = por %p37, %p38
      %p40 = scmp.ne.s32.totalorder %s26, %s27
      %p41 = scmp.eq.s32.totalorder %s19, 1
      %p42 = por %p40, %p41
      %p44 = scmp.ne.s32.totalorder %s27, %s43
      %p45 = scmp.eq.s32.totalorder %s19, 0
      %p46 = por %p44, %p45
      %s48 = sadd.s32 %s47, 1
      %p51 = scmp.eq.s32.totalorder %s13, 1
      %p52 = scmp.ne.s32.totalorder %s47, %s49
      %p53 = scmp.eq.s32.totalorder %s13, 0
      %p54 = por %p52, %p53
      %p55 = scmp.ne.s32.totalorder %s47, %s49
      %p56 = scmp.eq.s32.totalorder %s18, 1
      %p57 = por %p55, %p56
      %p58 = scmp.ne.s32.totalorder %s49, %s50
      %p59 = scmp.eq.s32.totalorder %s18, 0
      %p60 = por %p58, %p59
      %p61 = scmp.ne.s32.totalorder %s49, %s50
      %p62 = scmp.eq.s32.totalorder %s19, 1
      %p63 = por %p61, %p62
      %p65 = scmp.ne.s32.totalorder %s50, %s64
      %p66 = scmp.eq.s32.totalorder %s19, 0
      %p67 = por %p65, %p66
      %s68 = ssub.s32 %s13, %s20
      %p69 = scmp.eq.s32.totalorder %s68, 0
      %s71 = sadd.s32 %s70, 1
      %s72 = scalar_select %p69, %s70, %s71
      %p75 = pneg %p69
      %p76 = scmp.eq.s32.totalorder %s13, 1
      %p77 = por %p75, %p76
      %p78 = scmp.ne.s32.totalorder %s70, %s73
      %p79 = scmp.eq.s32.totalorder %s13, 0
      %p80 = por %p78, %p79
      %p81 = scmp.ne.s32.totalorder %s70, %s73
      %p82 = scmp.eq.s32.totalorder %s18, 1
      %p83 = por %p81, %p82
      %p84 = scmp.ne.s32.totalorder %s73, %s74
      %p85 = scmp.eq.s32.totalorder %s18, 0
      %p86 = por %p84, %p85
      %p87 = scmp.ne.s32.totalorder %s73, %s74
      %p88 = scmp.eq.s32.totalorder %s19, 1
      %p89 = por %p87, %p88
      %p91 = scmp.ne.s32.totalorder %s74, %s90
      %p92 = scmp.eq.s32.totalorder %s19, 0
      %p93 = por %p91, %p92
      %s94 = ssub.s32 %s13, %s20
      %p95 = scmp.eq.s32.totalorder %s94, 0
      %s97 = sadd.s32 %s96, 1
      %s98 = scalar_select %p95, %s96, %s97
      %p101 = pneg %p95
      %p102 = scmp.eq.s32.totalorder %s13, 1
      %p103 = por %p101, %p102
      %p104 = scmp.ne.s32.totalorder %s96, %s99
      %p105 = scmp.eq.s32.totalorder %s13, 0
      %p106 = por %p104, %p105
      %p107 = scmp.ne.s32.totalorder %s96, %s99
      %p108 = scmp.eq.s32.totalorder %s18, 1
      %p109 = por %p107, %p108
      %p110 = scmp.ne.s32.totalorder %s99, %s100
      %p111 = scmp.eq.s32.totalorder %s18, 0
      %p112 = por %p110, %p111
      %p113 = scmp.ne.s32.totalorder %s99, %s100
      %p114 = scmp.eq.s32.totalorder %s19, 1
      %p115 = por %p113, %p114
      %p117 = scmp.ne.s32.totalorder %s100, %s116
      %p118 = scmp.eq.s32.totalorder %s19, 0
      %p119 = por %p117, %p118
      %p120 = scmp.le.s32.totalorder 1, %s13
      %p121 = scmp.lt.s32.totalorder %s13, 3
      %p122 = pnand %p120, %p121
      %p123 = pneg %p122
      // Predicated region
      $region9: #{tpu_custom_call.1} parent=5 // pred_check
        _
      $region10: #{tpu_custom_call.1} parent=5 // pred_check_branch
        %125 = sbr.rel (%p122) target = $region12
      $region11: #{tpu_custom_call.1} parent=5 // pred_region
        %s126 = ssub.s32 %s13, 1
        // Predicated region
        $region13: #{tpu_custom_call.1} parent=11 // pred_check
          %p127 = pneg %p60
        $region14: #{tpu_custom_call.1} parent=11 // pred_check_branch
          %129 = sbr.rel (%p127) target = $region16
        $region15: #{tpu_custom_call.1} parent=11 // pred_region
          _
        $region16: #{tpu_custom_call.1} parent=11 // pred_fallthru
          _
      $region12: #{tpu_custom_call.1} parent=5 // pred_fallthru
        _
      %p130 = scmp.lt.s32.totalorder %s13, 2
      // Predicated region
      $region17: #{tpu_custom_call.1} parent=5 // pred_check
        %p131 = pneg %p130
      $region18: #{tpu_custom_call.1} parent=5 // pred_check_branch
        %133 = sbr.rel (%p131) target = $region20
      $region19: #{tpu_custom_call.1} parent=5 // pred_region
        // Predicated region
        $region21: #{tpu_custom_call.1} parent=19 // pred_check
          %p134 = pneg %p33
        $region22: #{tpu_custom_call.1} parent=19 // pred_check_branch
          %136 = sbr.rel (%p134) target = $region24
        $region23: #{tpu_custom_call.1} parent=19 // pred_region
          %p137 = scmp.lt.s32.totalorder %s13, 1
          %s138 = scalar_select %p137, %s13, 1
          %s139 = smul.addr %s138, 32
          %s140 = smul.addr %s139, 4
          %s141 = scalar_lea.vmem %s0, %s140
        $region24: #{tpu_custom_call.1} parent=19 // pred_fallthru
          _
      $region20: #{tpu_custom_call.1} parent=5 // pred_fallthru
        _
      %p142 = scmp.le.s32.totalorder 1, %s13
      %p143 = scmp.lt.s32.totalorder %s13, 3
      %p144 = pnand %p142, %p143
      %p145 = pneg %p144
      // Predicated region
      $region25: #{tpu_custom_call.1} parent=5 // pred_check
        _
      $region26: #{tpu_custom_call.1} parent=5 // pred_check_branch
        %147 = sbr.rel (%p144) target = $region28
      $region27: #{tpu_custom_call.1} parent=5 // pred_region
        %s148 = ssub.s32 %s13, 1
        %p149 = scmp.lt.s32.totalorder %s18, 1
        %s150 = scalar_select %p149, %s18, 1
        %s151 = smul.addr %s150, 32
        %s152 = smul.addr %s151, 4
        %s153 = scalar_lea.vmem %s0, %s152
        %p154 = pneg %p39
        %p155 = pneg %p36
        %p156 = pneg %p60
        %p157 = pneg %p57
        %p158 = pneg %p86
        %p159 = pneg %p83
        %p160 = scmp.lt.s32.totalorder %s18, 1
        %s161 = scalar_select %p160, %s18, 1
        %s162 = smul.addr %s161, 25
        %s163 = smul.addr %s162, 8
        %s164 = scalar_lea.vmem %s2, %s163
        %p165 = pneg %p112
        %p166 = pneg %p109
        %s167 = sand.u32 %s99, 1
        %s168 = scalar_lea.sflag [#allocation4], %s167
        %s169 = sand.u32 %s99, 1
        %s170 = smul.addr %s169, 2
        %s171 = scalar_lea.vmem [#allocation3], %s170
        %p172 = scmp.lt.s32.totalorder %s18, 1
        %s173 = scalar_select %p172, %s18, 1
        %s174 = smul.addr %s173, 32
        %s175 = smul.addr %s174, 4
        %s176 = scalar_lea.vmem %s0, %s175
        %p177 = scmp.lt.s32.totalorder %s18, 1
        %s178 = scalar_select %p177, %s18, 1
        %s179 = smul.addr %s178, 25
        %s180 = smul.addr %s179, 8
        %s181 = scalar_lea.vmem %s2, %s180
        %v183 = vld [vmem:[%s176] sm:$0xf]
        %v184 = vld [vmem:[%s176 + $0x4] sm:$0xf]
        %v185 = vld [vmem:[%s176 + $0x8] sm:$0xf]
        %v186 = vld [vmem:[%s176 + $0xc] sm:$0xf]
        %v187 = vld [vmem:[%s176 + $0x10] sm:$0xf]
        %v188 = vld [vmem:[%s176 + $0x14] sm:$0xf]
        %v189 = vld [vmem:[%s176 + $0x18] sm:$0xf]
        %v190 = vld [vmem:[%s176 + $0x1c] sm:$0xf]
        %v191 = vld [vmem:[%s176 + $0x20] sm:$0xf]
        %v192 = vld [vmem:[%s176 + $0x24] sm:$0xf]
        %v193 = vld [vmem:[%s176 + $0x28] sm:$0xf]
        %v194 = vld [vmem:[%s176 + $0x2c] sm:$0xf]
        %v195 = vld [vmem:[%s176 + $0x30] sm:$0xf]
        %v196 = vld [vmem:[%s176 + $0x34] sm:$0xf]
        %v197 = vld [vmem:[%s176 + $0x38] sm:$0xf]
        %v198 = vld [vmem:[%s176 + $0x3c] sm:$0xf]
        %v199 = vld [vmem:[%s176 + $0x40] sm:$0xf]
        %v200 = vld [vmem:[%s176 + $0x44] sm:$0xf]
        %v201 = vld [vmem:[%s176 + $0x48] sm:$0xf]
        %v202 = vld [vmem:[%s176 + $0x4c] sm:$0xf]
        %v203 = vld [vmem:[%s176 + $0x50] sm:$0xf]
        %v204 = vld [vmem:[%s176 + $0x54] sm:$0xf]
        %v205 = vld [vmem:[%s176 + $0x58] sm:$0xf]
        %v206 = vld [vmem:[%s176 + $0x5c] sm:$0xf]
        %v207 = vld [vmem:[%s176 + $0x60] sm:$0xf]
        %v208 = vld [vmem:[%s176 + $0x64] sm:$0xf]
        %v209 = vld [vmem:[%s176 + $0x68] sm:$0xf]
        %v210 = vld [vmem:[%s176 + $0x6c] sm:$0xf]
        %v211 = vld [vmem:[%s176 + $0x70] sm:$0xf]
        %v212 = vld [vmem:[%s176 + $0x74] sm:$0xf]
        %v213 = vld [vmem:[%s176 + $0x78] sm:$0xf]
        %v214 = vld [vmem:[%s176 + $0x7c] sm:$0xf]
        %v244 = vunpack.c.l.s4 1966171168
        %v245 = vunpack.c.0.s8 %v244
        %v246 = vlaneseq
        %v247 = vshrl.u32 %v246, 7
        %v248 = vsub.s32 %v245, %v247
        %v249 = vrot.slane %v183, %v248
        %v250 = vcombine.high %v249, %v249
        %v252 = vunpack.c.l.s4 1966171168
        %v253 = vunpack.c.0.s8 %v252
        %v254 = vlaneseq
        %v255 = vshrl.u32 %v254, 7
        %v256 = vsub.s32 %v253, %v255
        %v257 = vrot.slane %v249, %v256
        %v259 = vunpack.c.l.s4 1966171168
        %v260 = vunpack.c.0.s8 %v259
        %v261 = vlaneseq
        %v262 = vshrl.u32 %v261, 7
        %v263 = vsub.s32 %v260, %v262
        %v264 = vrot.slane %v250, %v263
        %v265 = vcombine.high %v257, %v257
        %v266 = vcombine.high %v264, %v264
        %v268 = vunpack.c.l.s4 1966171168
        %v269 = vunpack.c.0.s8 %v268
        %v270 = vlaneseq
        %v271 = vshrl.u32 %v270, 7
        %v272 = vsub.s32 %v269, %v271
        %v273 = vrot.slane %v184, %v272
        %v274 = vcombine.high %v273, %v273
        %v276 = vunpack.c.l.s4 1966171168
        %v277 = vunpack.c.0.s8 %v276
        %v278 = vlaneseq
        %v279 = vshrl.u32 %v278, 7
        %v280 = vsub.s32 %v277, %v279
        %v281 = vrot.slane %v273, %v280
        %v283 = vunpack.c.l.s4 1966171168
        %v284 = vunpack.c.0.s8 %v283
        %v285 = vlaneseq
        %v286 = vshrl.u32 %v285, 7
        %v287 = vsub.s32 %v284, %v286
        %v288 = vrot.slane %v274, %v287
        %v289 = vcombine.high %v281, %v281
        %v291 = vunpack.c.l.s4 1966171168
        %v292 = vunpack.c.0.s8 %v291
        %v293 = vlaneseq
        %v294 = vshrl.u32 %v293, 7
        %v295 = vsub.s32 %v292, %v294
        %v296 = vrot.slane %v185, %v295
        %v297 = vcombine.high %v296, %v296
        %v299 = vunpack.c.l.s4 1966171168
        %v300 = vunpack.c.0.s8 %v299
        %v301 = vlaneseq
        %v302 = vshrl.u32 %v301, 7
        %v303 = vsub.s32 %v300, %v302
        %v304 = vrot.slane %v296, %v303
        %v306 = vunpack.c.l.s4 1966171168
        %v307 = vunpack.c.0.s8 %v306
        %v308 = vlaneseq
        %v309 = vshrl.u32 %v308, 7
        %v310 = vsub.s32 %v307, %v309
        %v311 = vrot.slane %v297, %v310
        %v312 = vcombine.high %v304, %v304
        %v313 = vcombine.high %v311, %v311
        %v315 = vunpack.c.l.s4 1966171168
        %v316 = vunpack.c.0.s8 %v315
        %v317 = vlaneseq
        %v318 = vshrl.u32 %v317, 7
        %v319 = vsub.s32 %v316, %v318
        %v320 = vrot.slane %v186, %v319
        %v321 = vcombine.high %v320, %v320
        %v323 = vunpack.c.l.s4 1966171168
        %v324 = vunpack.c.0.s8 %v323
        %v325 = vlaneseq
        %v326 = vshrl.u32 %v325, 7
        %v327 = vsub.s32 %v324, %v326
        %v328 = vrot.slane %v320, %v327
        %v330 = vunpack.c.l.s4 1966171168
        %v331 = vunpack.c.0.s8 %v330
        %v332 = vlaneseq
        %v333 = vshrl.u32 %v332, 7
        %v334 = vsub.s32 %v331, %v333
        %v335 = vrot.slane %v321, %v334
        %v336 = vcombine.high %v328, %v328
        %v338 = vunpack.c.l.s4 1966171168
        %v339 = vunpack.c.0.s8 %v338
        %v340 = vlaneseq
        %v341 = vshrl.u32 %v340, 7
        %v342 = vsub.s32 %v339, %v341
        %v343 = vrot.slane %v187, %v342
        %v344 = vcombine.high %v343, %v343
        %v346 = vunpack.c.l.s4 1966171168
        %v347 = vunpack.c.0.s8 %v346
        %v348 = vlaneseq
        %v349 = vshrl.u32 %v348, 7
        %v350 = vsub.s32 %v347, %v349
        %v351 = vrot.slane %v343, %v350
        %v353 = vunpack.c.l.s4 1966171168
        %v354 = vunpack.c.0.s8 %v353
        %v355 = vlaneseq
        %v356 = vshrl.u32 %v355, 7
        %v357 = vsub.s32 %v354, %v356
        %v358 = vrot.slane %v344, %v357
        %v359 = vcombine.high %v351, %v351
        %v360 = vcombine.high %v358, %v358
        %v362 = vunpack.c.l.s4 1966171168
        %v363 = vunpack.c.0.s8 %v362
        %v364 = vlaneseq
        %v365 = vshrl.u32 %v364, 7
        %v366 = vsub.s32 %v363, %v365
        %v367 = vrot.slane %v188, %v366
        %v368 = vcombine.high %v367, %v367
        %v370 = vunpack.c.l.s4 1966171168
        %v371 = vunpack.c.0.s8 %v370
        %v372 = vlaneseq
        %v373 = vshrl.u32 %v372, 7
        %v374 = vsub.s32 %v371, %v373
        %v375 = vrot.slane %v367, %v374
        %v377 = vunpack.c.l.s4 1966171168
        %v378 = vunpack.c.0.s8 %v377
        %v379 = vlaneseq
        %v380 = vshrl.u32 %v379, 7
        %v381 = vsub.s32 %v378, %v380
        %v382 = vrot.slane %v368, %v381
        %v383 = vcombine.high %v375, %v375
        %v385 = vunpack.c.l.s4 1966171168
        %v386 = vunpack.c.0.s8 %v385
        %v387 = vlaneseq
        %v388 = vshrl.u32 %v387, 7
        %v389 = vsub.s32 %v386, %v388
        %v390 = vrot.slane %v189, %v389
        %v391 = vcombine.high %v390, %v390
        %v393 = vunpack.c.l.s4 1966171168
        %v394 = vunpack.c.0.s8 %v393
        %v395 = vlaneseq
        %v396 = vshrl.u32 %v395, 7
        %v397 = vsub.s32 %v394, %v396
        %v398 = vrot.slane %v390, %v397
        %v400 = vunpack.c.l.s4 1966171168
        %v401 = vunpack.c.0.s8 %v400
        %v402 = vlaneseq
        %v403 = vshrl.u32 %v402, 7
        %v404 = vsub.s32 %v401, %v403
        %v405 = vrot.slane %v391, %v404
        %v406 = vcombine.high %v398, %v398
        %v407 = vcombine.high %v405, %v405
        %v409 = vunpack.c.l.s4 1966171168
        %v410 = vunpack.c.0.s8 %v409
        %v411 = vlaneseq
        %v412 = vshrl.u32 %v411, 7
        %v413 = vsub.s32 %v410, %v412
        %v414 = vrot.slane %v190, %v413
        %v415 = vcombine.high %v414, %v414
        %v417 = vunpack.c.l.s4 1966171168
        %v418 = vunpack.c.0.s8 %v417
        %v419 = vlaneseq
        %v420 = vshrl.u32 %v419, 7
        %v421 = vsub.s32 %v418, %v420
        %v422 = vrot.slane %v414, %v421
        %v424 = vunpack.c.l.s4 1966171168
        %v425 = vunpack.c.0.s8 %v424
        %v426 = vlaneseq
        %v427 = vshrl.u32 %v426, 7
        %v428 = vsub.s32 %v425, %v427
        %v429 = vrot.slane %v415, %v428
        %v430 = vcombine.high %v422, %v422
        %v432 = vunpack.c.l.s4 1966171168
        %v433 = vunpack.c.0.s8 %v432
        %v434 = vlaneseq
        %v435 = vshrl.u32 %v434, 7
        %v436 = vsub.s32 %v433, %v435
        %v437 = vrot.slane %v191, %v436
        %v438 = vcombine.high %v437, %v437
        %v440 = vunpack.c.l.s4 1966171168
        %v441 = vunpack.c.0.s8 %v440
        %v442 = vlaneseq
        %v443 = vshrl.u32 %v442, 7
        %v444 = vsub.s32 %v441, %v443
        %v445 = vrot.slane %v437, %v444
        %v447 = vunpack.c.l.s4 1966171168
        %v448 = vunpack.c.0.s8 %v447
        %v449 = vlaneseq
        %v450 = vshrl.u32 %v449, 7
        %v451 = vsub.s32 %v448, %v450
        %v452 = vrot.slane %v438, %v451
        %v453 = vcombine.high %v445, %v445
        %v454 = vcombine.high %v452, %v452
        %v456 = vunpack.c.l.s4 1966171168
        %v457 = vunpack.c.0.s8 %v456
        %v458 = vlaneseq
        %v459 = vshrl.u32 %v458, 7
        %v460 = vsub.s32 %v457, %v459
        %v461 = vrot.slane %v192, %v460
        %v462 = vcombine.high %v461, %v461
        %v464 = vunpack.c.l.s4 1966171168
        %v465 = vunpack.c.0.s8 %v464
        %v466 = vlaneseq
        %v467 = vshrl.u32 %v466, 7
        %v468 = vsub.s32 %v465, %v467
        %v469 = vrot.slane %v461, %v468
        %v471 = vunpack.c.l.s4 1966171168
        %v472 = vunpack.c.0.s8 %v471
        %v473 = vlaneseq
        %v474 = vshrl.u32 %v473, 7
        %v475 = vsub.s32 %v472, %v474
        %v476 = vrot.slane %v462, %v475
        %v477 = vcombine.high %v469, %v469
        %v479 = vunpack.c.l.s4 1966171168
        %v480 = vunpack.c.0.s8 %v479
        %v481 = vlaneseq
        %v482 = vshrl.u32 %v481, 7
        %v483 = vsub.s32 %v480, %v482
        %v484 = vrot.slane %v193, %v483
        %v485 = vcombine.high %v484, %v484
        %v487 = vunpack.c.l.s4 1966171168
        %v488 = vunpack.c.0.s8 %v487
        %v489 = vlaneseq
        %v490 = vshrl.u32 %v489, 7
        %v491 = vsub.s32 %v488, %v490
        %v492 = vrot.slane %v484, %v491
        %v494 = vunpack.c.l.s4 1966171168
        %v495 = vunpack.c.0.s8 %v494
        %v496 = vlaneseq
        %v497 = vshrl.u32 %v496, 7
        %v498 = vsub.s32 %v495, %v497
        %v499 = vrot.slane %v485, %v498
        %v500 = vcombine.high %v492, %v492
        %v501 = vcombine.high %v499, %v499
        %v503 = vunpack.c.l.s4 1966171168
        %v504 = vunpack.c.0.s8 %v503
        %v505 = vlaneseq
        %v506 = vshrl.u32 %v505, 7
        %v507 = vsub.s32 %v504, %v506
        %v508 = vrot.slane %v194, %v507
        %v509 = vcombine.high %v508, %v508
        %v511 = vunpack.c.l.s4 1966171168
        %v512 = vunpack.c.0.s8 %v511
        %v513 = vlaneseq
        %v514 = vshrl.u32 %v513, 7
        %v515 = vsub.s32 %v512, %v514
        %v516 = vrot.slane %v508, %v515
        %v518 = vunpack.c.l.s4 1966171168
        %v519 = vunpack.c.0.s8 %v518
        %v520 = vlaneseq
        %v521 = vshrl.u32 %v520, 7
        %v522 = vsub.s32 %v519, %v521
        %v523 = vrot.slane %v509, %v522
        %v524 = vcombine.high %v516, %v516
        %v526 = vunpack.c.l.s4 1966171168
        %v527 = vunpack.c.0.s8 %v526
        %v528 = vlaneseq
        %v529 = vshrl.u32 %v528, 7
        %v530 = vsub.s32 %v527, %v529
        %v531 = vrot.slane %v195, %v530
        %v532 = vcombine.high %v531, %v531
        %v534 = vunpack.c.l.s4 1966171168
        %v535 = vunpack.c.0.s8 %v534
        %v536 = vlaneseq
        %v537 = vshrl.u32 %v536, 7
        %v538 = vsub.s32 %v535, %v537
        %v539 = vrot.slane %v531, %v538
        %v541 = vunpack.c.l.s4 1966171168
        %v542 = vunpack.c.0.s8 %v541
        %v543 = vlaneseq
        %v544 = vshrl.u32 %v543, 7
        %v545 = vsub.s32 %v542, %v544
        %v546 = vrot.slane %v532, %v545
        %v547 = vcombine.high %v539, %v539
        %v548 = vcombine.high %v546, %v546
        %v550 = vunpack.c.l.s4 1966171168
        %v551 = vunpack.c.0.s8 %v550
        %v552 = vlaneseq
        %v553 = vshrl.u32 %v552, 7
        %v554 = vsub.s32 %v551, %v553
        %v555 = vrot.slane %v196, %v554
        %v556 = vcombine.high %v555, %v555
        %v558 = vunpack.c.l.s4 1966171168
        %v559 = vunpack.c.0.s8 %v558
        %v560 = vlaneseq
        %v561 = vshrl.u32 %v560, 7
        %v562 = vsub.s32 %v559, %v561
        %v563 = vrot.slane %v555, %v562
        %v565 = vunpack.c.l.s4 1966171168
        %v566 = vunpack.c.0.s8 %v565
        %v567 = vlaneseq
        %v568 = vshrl.u32 %v567, 7
        %v569 = vsub.s32 %v566, %v568
        %v570 = vrot.slane %v556, %v569
        %v571 = vcombine.high %v563, %v563
        %v573 = vunpack.c.l.s4 1966171168
        %v574 = vunpack.c.0.s8 %v573
        %v575 = vlaneseq
        %v576 = vshrl.u32 %v575, 7
        %v577 = vsub.s32 %v574, %v576
        %v578 = vrot.slane %v197, %v577
        %v579 = vcombine.high %v578, %v578
        %v581 = vunpack.c.l.s4 1966171168
        %v582 = vunpack.c.0.s8 %v581
        %v583 = vlaneseq
        %v584 = vshrl.u32 %v583, 7
        %v585 = vsub.s32 %v582, %v584
        %v586 = vrot.slane %v578, %v585
        %v588 = vunpack.c.l.s4 1966171168
        %v589 = vunpack.c.0.s8 %v588
        %v590 = vlaneseq
        %v591 = vshrl.u32 %v590, 7
        %v592 = vsub.s32 %v589, %v591
        %v593 = vrot.slane %v579, %v592
        %v594 = vcombine.high %v586, %v586
        %v595 = vcombine.high %v593, %v593
        %v597 = vunpack.c.l.s4 1966171168
        %v598 = vunpack.c.0.s8 %v597
        %v599 = vlaneseq
        %v600 = vshrl.u32 %v599, 7
        %v601 = vsub.s32 %v598, %v600
        %v602 = vrot.slane %v198, %v601
        %v603 = vcombine.high %v602, %v602
        %v605 = vunpack.c.l.s4 1966171168
        %v606 = vunpack.c.0.s8 %v605
        %v607 = vlaneseq
        %v608 = vshrl.u32 %v607, 7
        %v609 = vsub.s32 %v606, %v608
        %v610 = vrot.slane %v602, %v609
        %v612 = vunpack.c.l.s4 1966171168
        %v613 = vunpack.c.0.s8 %v612
        %v614 = vlaneseq
        %v615 = vshrl.u32 %v614, 7
        %v616 = vsub.s32 %v613, %v615
        %v617 = vrot.slane %v603, %v616
        %v618 = vcombine.high %v610, %v610
        %v620 = vunpack.c.l.s4 1966171168
        %v621 = vunpack.c.0.s8 %v620
        %v622 = vlaneseq
        %v623 = vshrl.u32 %v622, 7
        %v624 = vsub.s32 %v621, %v623
        %v625 = vrot.slane %v199, %v624
        %v626 = vcombine.high %v625, %v625
        %v628 = vunpack.c.l.s4 1966171168
        %v629 = vunpack.c.0.s8 %v628
        %v630 = vlaneseq
        %v631 = vshrl.u32 %v630, 7
        %v632 = vsub.s32 %v629, %v631
        %v633 = vrot.slane %v625, %v632
        %v635 = vunpack.c.l.s4 1966171168
        %v636 = vunpack.c.0.s8 %v635
        %v637 = vlaneseq
        %v638 = vshrl.u32 %v637, 7
        %v639 = vsub.s32 %v636, %v638
        %v640 = vrot.slane %v626, %v639
        %v641 = vcombine.high %v633, %v633
        %v642 = vcombine.high %v640, %v640
        %v644 = vunpack.c.l.s4 1966171168
        %v645 = vunpack.c.0.s8 %v644
        %v646 = vlaneseq
        %v647 = vshrl.u32 %v646, 7
        %v648 = vsub.s32 %v645, %v647
        %v649 = vrot.slane %v200, %v648
        %v650 = vcombine.high %v649, %v649
        %v652 = vunpack.c.l.s4 1966171168
        %v653 = vunpack.c.0.s8 %v652
        %v654 = vlaneseq
        %v655 = vshrl.u32 %v654, 7
        %v656 = vsub.s32 %v653, %v655
        %v657 = vrot.slane %v649, %v656
        %v659 = vunpack.c.l.s4 1966171168
        %v660 = vunpack.c.0.s8 %v659
        %v661 = vlaneseq
        %v662 = vshrl.u32 %v661, 7
        %v663 = vsub.s32 %v660, %v662
        %v664 = vrot.slane %v650, %v663
        %v665 = vcombine.high %v657, %v657
        %v667 = vunpack.c.l.s4 1966171168
        %v668 = vunpack.c.0.s8 %v667
        %v669 = vlaneseq
        %v670 = vshrl.u32 %v669, 7
        %v671 = vsub.s32 %v668, %v670
        %v672 = vrot.slane %v201, %v671
        %v673 = vcombine.high %v672, %v672
        %v675 = vunpack.c.l.s4 1966171168
        %v676 = vunpack.c.0.s8 %v675
        %v677 = vlaneseq
        %v678 = vshrl.u32 %v677, 7
        %v679 = vsub.s32 %v676, %v678
        %v680 = vrot.slane %v672, %v679
        %v682 = vunpack.c.l.s4 1966171168
        %v683 = vunpack.c.0.s8 %v682
        %v684 = vlaneseq
        %v685 = vshrl.u32 %v684, 7
        %v686 = vsub.s32 %v683, %v685
        %v687 = vrot.slane %v673, %v686
        %v688 = vcombine.high %v680, %v680
        %v689 = vcombine.high %v687, %v687
        %v691 = vunpack.c.l.s4 1966171168
        %v692 = vunpack.c.0.s8 %v691
        %v693 = vlaneseq
        %v694 = vshrl.u32 %v693, 7
        %v695 = vsub.s32 %v692, %v694
        %v696 = vrot.slane %v202, %v695
        %v697 = vcombine.high %v696, %v696
        %v699 = vunpack.c.l.s4 1966171168
        %v700 = vunpack.c.0.s8 %v699
        %v701 = vlaneseq
        %v702 = vshrl.u32 %v701, 7
        %v703 = vsub.s32 %v700, %v702
        %v704 = vrot.slane %v696, %v703
        %v706 = vunpack.c.l.s4 1966171168
        %v707 = vunpack.c.0.s8 %v706
        %v708 = vlaneseq
        %v709 = vshrl.u32 %v708, 7
        %v710 = vsub.s32 %v707, %v709
        %v711 = vrot.slane %v697, %v710
        %v712 = vcombine.high %v704, %v704
        %v714 = vunpack.c.l.s4 1966171168
        %v715 = vunpack.c.0.s8 %v714
        %v716 = vlaneseq
        %v717 = vshrl.u32 %v716, 7
        %v718 = vsub.s32 %v715, %v717
        %v719 = vrot.slane %v203, %v718
        %v720 = vcombine.high %v719, %v719
        %v722 = vunpack.c.l.s4 1966171168
        %v723 = vunpack.c.0.s8 %v722
        %v724 = vlaneseq
        %v725 = vshrl.u32 %v724, 7
        %v726 = vsub.s32 %v723, %v725
        %v727 = vrot.slane %v719, %v726
        %v729 = vunpack.c.l.s4 1966171168
        %v730 = vunpack.c.0.s8 %v729
        %v731 = vlaneseq
        %v732 = vshrl.u32 %v731, 7
        %v733 = vsub.s32 %v730, %v732
        %v734 = vrot.slane %v720, %v733
        %v735 = vcombine.high %v727, %v727
        %v736 = vcombine.high %v734, %v734
        %v738 = vunpack.c.l.s4 1966171168
        %v739 = vunpack.c.0.s8 %v738
        %v740 = vlaneseq
        %v741 = vshrl.u32 %v740, 7
        %v742 = vsub.s32 %v739, %v741
        %v743 = vrot.slane %v204, %v742
        %v744 = vcombine.high %v743, %v743
        %v746 = vunpack.c.l.s4 1966171168
        %v747 = vunpack.c.0.s8 %v746
        %v748 = vlaneseq
        %v749 = vshrl.u32 %v748, 7
        %v750 = vsub.s32 %v747, %v749
        %v751 = vrot.slane %v743, %v750
        %v753 = vunpack.c.l.s4 1966171168
        %v754 = vunpack.c.0.s8 %v753
        %v755 = vlaneseq
        %v756 = vshrl.u32 %v755, 7
        %v757 = vsub.s32 %v754, %v756
        %v758 = vrot.slane %v744, %v757
        %v759 = vcombine.high %v751, %v751
        %v761 = vunpack.c.l.s4 1966171168
        %v762 = vunpack.c.0.s8 %v761
        %v763 = vlaneseq
        %v764 = vshrl.u32 %v763, 7
        %v765 = vsub.s32 %v762, %v764
        %v766 = vrot.slane %v205, %v765
        %v767 = vcombine.high %v766, %v766
        %v769 = vunpack.c.l.s4 1966171168
        %v770 = vunpack.c.0.s8 %v769
        %v771 = vlaneseq
        %v772 = vshrl.u32 %v771, 7
        %v773 = vsub.s32 %v770, %v772
        %v774 = vrot.slane %v766, %v773
        %v776 = vunpack.c.l.s4 1966171168
        %v777 = vunpack.c.0.s8 %v776
        %v778 = vlaneseq
        %v779 = vshrl.u32 %v778, 7
        %v780 = vsub.s32 %v777, %v779
        %v781 = vrot.slane %v767, %v780
        %v782 = vcombine.high %v774, %v774
        %v783 = vcombine.high %v781, %v781
        %v785 = vunpack.c.l.s4 1966171168
        %v786 = vunpack.c.0.s8 %v785
        %v787 = vlaneseq
        %v788 = vshrl.u32 %v787, 7
        %v789 = vsub.s32 %v786, %v788
        %v790 = vrot.slane %v206, %v789
        %v791 = vcombine.high %v790, %v790
        %v793 = vunpack.c.l.s4 1966171168
        %v794 = vunpack.c.0.s8 %v793
        %v795 = vlaneseq
        %v796 = vshrl.u32 %v795, 7
        %v797 = vsub.s32 %v794, %v796
        %v798 = vrot.slane %v790, %v797
        %v800 = vunpack.c.l.s4 1966171168
        %v801 = vunpack.c.0.s8 %v800
        %v802 = vlaneseq
        %v803 = vshrl.u32 %v802, 7
        %v804 = vsub.s32 %v801, %v803
        %v805 = vrot.slane %v791, %v804
        %v806 = vcombine.high %v798, %v798
        %v808 = vunpack.c.l.s4 1966171168
        %v809 = vunpack.c.0.s8 %v808
        %v810 = vlaneseq
        %v811 = vshrl.u32 %v810, 7
        %v812 = vsub.s32 %v809, %v811
        %v813 = vrot.slane %v207, %v812
        %v814 = vcombine.high %v813, %v813
        %v816 = vunpack.c.l.s4 1966171168
        %v817 = vunpack.c.0.s8 %v816
        %v818 = vlaneseq
        %v819 = vshrl.u32 %v818, 7
        %v820 = vsub.s32 %v817, %v819
        %v821 = vrot.slane %v813, %v820
        %v823 = vunpack.c.l.s4 1966171168
        %v824 = vunpack.c.0.s8 %v823
        %v825 = vlaneseq
        %v826 = vshrl.u32 %v825, 7
        %v827 = vsub.s32 %v824, %v826
        %v828 = vrot.slane %v814, %v827
        %v829 = vcombine.high %v821, %v821
        %v830 = vcombine.high %v828, %v828
        %v832 = vunpack.c.l.s4 1966171168
        %v833 = vunpack.c.0.s8 %v832
        %v834 = vlaneseq
        %v835 = vshrl.u32 %v834, 7
        %v836 = vsub.s32 %v833, %v835
        %v837 = vrot.slane %v208, %v836
        %v838 = vcombine.high %v837, %v837
        %v840 = vunpack.c.l.s4 1966171168
        %v841 = vunpack.c.0.s8 %v840
        %v842 = vlaneseq
        %v843 = vshrl.u32 %v842, 7
        %v844 = vsub.s32 %v841, %v843
        %v845 = vrot.slane %v837, %v844
        %v847 = vunpack.c.l.s4 1966171168
        %v848 = vunpack.c.0.s8 %v847
        %v849 = vlaneseq
        %v850 = vshrl.u32 %v849, 7
        %v851 = vsub.s32 %v848, %v850
        %v852 = vrot.slane %v838, %v851
        %v853 = vcombine.high %v845, %v845
        %v855 = vunpack.c.l.s4 1966171168
        %v856 = vunpack.c.0.s8 %v855
        %v857 = vlaneseq
        %v858 = vshrl.u32 %v857, 7
        %v859 = vsub.s32 %v856, %v858
        %v860 = vrot.slane %v209, %v859
        %v861 = vcombine.high %v860, %v860
        %v863 = vunpack.c.l.s4 1966171168
        %v864 = vunpack.c.0.s8 %v863
        %v865 = vlaneseq
        %v866 = vshrl.u32 %v865, 7
        %v867 = vsub.s32 %v864, %v866
        %v868 = vrot.slane %v860, %v867
        %v870 = vunpack.c.l.s4 1966171168
        %v871 = vunpack.c.0.s8 %v870
        %v872 = vlaneseq
        %v873 = vshrl.u32 %v872, 7
        %v874 = vsub.s32 %v871, %v873
        %v875 = vrot.slane %v861, %v874
        %v876 = vcombine.high %v868, %v868
        %v877 = vcombine.high %v875, %v875
        %v879 = vunpack.c.l.s4 1966171168
        %v880 = vunpack.c.0.s8 %v879
        %v881 = vlaneseq
        %v882 = vshrl.u32 %v881, 7
        %v883 = vsub.s32 %v880, %v882
        %v884 = vrot.slane %v210, %v883
        %v885 = vcombine.high %v884, %v884
        %v887 = vunpack.c.l.s4 1966171168
        %v888 = vunpack.c.0.s8 %v887
        %v889 = vlaneseq
        %v890 = vshrl.u32 %v889, 7
        %v891 = vsub.s32 %v888, %v890
        %v892 = vrot.slane %v884, %v891
        %v894 = vunpack.c.l.s4 1966171168
        %v895 = vunpack.c.0.s8 %v894
        %v896 = vlaneseq
        %v897 = vshrl.u32 %v896, 7
        %v898 = vsub.s32 %v895, %v897
        %v899 = vrot.slane %v885, %v898
        %v900 = vcombine.high %v892, %v892
        %v901 = vcombine.low %v257, %v265
        %v902 = vcombine.low %v264, %v266
        %v904 = vunpack.c.l.s4 1935823168
        %v905 = vunpack.c.0.s8 %v904
        %v906 = vlaneseq
        %v907 = vshrl.u32 %v906, 7
        %v908 = vsub.s32 %v905, %v907
        %v909 = vrot.slane %v901, %v908
        %v911 = vunpack.c.l.s4 1935823168
        %v912 = vunpack.c.0.s8 %v911
        %v913 = vlaneseq
        %v914 = vshrl.u32 %v913, 7
        %v915 = vsub.s32 %v912, %v914
        %v916 = vrot.slane %v902, %v915
        %v917 = vcombine.low %v909, %v916
        %v919 = vunpack.c.l.s4 1935823168
        %v920 = vunpack.c.0.s8 %v919
        %v921 = vlaneseq
        %v922 = vshrl.u32 %v921, 7
        %v923 = vsub.s32 %v920, %v922
        %v924 = vrot.slane %v917, %v923
        %v925 = vcombine.low %v281, %v289
        %v926 = vcombine.low %v288, %v304
        %v928 = vunpack.c.l.s4 1935823168
        %v929 = vunpack.c.0.s8 %v928
        %v930 = vlaneseq
        %v931 = vshrl.u32 %v930, 7
        %v932 = vsub.s32 %v929, %v931
        %v933 = vrot.slane %v925, %v932
        %v935 = vunpack.c.l.s4 1935823168
        %v936 = vunpack.c.0.s8 %v935
        %v937 = vlaneseq
        %v938 = vshrl.u32 %v937, 7
        %v939 = vsub.s32 %v936, %v938
        %v940 = vrot.slane %v926, %v939
        %v941 = vcombine.low %v933, %v940
        %v943 = vunpack.c.l.s4 1935823168
        %v944 = vunpack.c.0.s8 %v943
        %v945 = vlaneseq
        %v946 = vshrl.u32 %v945, 7
        %v947 = vsub.s32 %v944, %v946
        %v948 = vrot.slane %v941, %v947
        %v949 = vcombine.low %v311, %v313
        %v950 = vcombine.low %v312, %v328
        %v952 = vunpack.c.l.s4 1935823168
        %v953 = vunpack.c.0.s8 %v952
        %v954 = vlaneseq
        %v955 = vshrl.u32 %v954, 7
        %v956 = vsub.s32 %v953, %v955
        %v957 = vrot.slane %v949, %v956
        %v959 = vunpack.c.l.s4 1935823168
        %v960 = vunpack.c.0.s8 %v959
        %v961 = vlaneseq
        %v962 = vshrl.u32 %v961, 7
        %v963 = vsub.s32 %v960, %v962
        %v964 = vrot.slane %v950, %v963
        %v965 = vcombine.low %v957, %v964
        %v967 = vunpack.c.l.s4 1935823168
        %v968 = vunpack.c.0.s8 %v967
        %v969 = vlaneseq
        %v970 = vshrl.u32 %v969, 7
        %v971 = vsub.s32 %v968, %v970
        %v972 = vrot.slane %v965, %v971
        %v973 = vcombine.low %v335, %v351
        %v974 = vcombine.low %v336, %v358
        %v976 = vunpack.c.l.s4 1935823168
        %v977 = vunpack.c.0.s8 %v976
        %v978 = vlaneseq
        %v979 = vshrl.u32 %v978, 7
        %v980 = vsub.s32 %v977, %v979
        %v981 = vrot.slane %v973, %v980
        %v983 = vunpack.c.l.s4 1935823168
        %v984 = vunpack.c.0.s8 %v983
        %v985 = vlaneseq
        %v986 = vshrl.u32 %v985, 7
        %v987 = vsub.s32 %v984, %v986
        %v988 = vrot.slane %v974, %v987
        %v989 = vcombine.low %v981, %v988
        %v991 = vunpack.c.l.s4 1935823168
        %v992 = vunpack.c.0.s8 %v991
        %v993 = vlaneseq
        %v994 = vshrl.u32 %v993, 7
        %v995 = vsub.s32 %v992, %v994
        %v996 = vrot.slane %v989, %v995
        %v997 = vcombine.low %v359, %v375
        %v998 = vcombine.low %v360, %v382
        %v1000 = vunpack.c.l.s4 1935823168
        %v1001 = vunpack.c.0.s8 %v1000
        %v1002 = vlaneseq
        %v1003 = vshrl.u32 %v1002, 7
        %v1004 = vsub.s32 %v1001, %v1003
        %v1005 = vrot.slane %v997, %v1004
        %v1007 = vunpack.c.l.s4 1935823168
        %v1008 = vunpack.c.0.s8 %v1007
        %v1009 = vlaneseq
        %v1010 = vshrl.u32 %v1009, 7
        %v1011 = vsub.s32 %v1008, %v1010
        %v1012 = vrot.slane %v998, %v1011
        %v1013 = vcombine.low %v1005, %v1012
        %v1015 = vunpack.c.l.s4 1935823168
        %v1016 = vunpack.c.0.s8 %v1015
        %v1017 = vlaneseq
        %v1018 = vshrl.u32 %v1017, 7
        %v1019 = vsub.s32 %v1016, %v1018
        %v1020 = vrot.slane %v1013, %v1019
        %v1021 = vcombine.low %v383, %v405
        %v1022 = vcombine.low %v398, %v406
        %v1024 = vunpack.c.l.s4 1935823168
        %v1025 = vunpack.c.0.s8 %v1024
        %v1026 = vlaneseq
        %v1027 = vshrl.u32 %v1026, 7
        %v1028 = vsub.s32 %v1025, %v1027
        %v1029 = vrot.slane %v1021, %v1028
        %v1031 = vunpack.c.l.s4 1935823168
        %v1032 = vunpack.c.0.s8 %v1031
        %v1033 = vlaneseq
        %v1034 = vshrl.u32 %v1033, 7
        %v1035 = vsub.s32 %v1032, %v1034
        %v1036 = vrot.slane %v1022, %v1035
        %v1037 = vcombine.low %v1029, %v1036
        %v1039 = vunpack.c.l.s4 1935823168
        %v1040 = vunpack.c.0.s8 %v1039
        %v1041 = vlaneseq
        %v1042 = vshrl.u32 %v1041, 7
        %v1043 = vsub.s32 %v1040, %v1042
        %v1044 = vrot.slane %v1037, %v1043
        %v1045 = vcombine.low %v407, %v429
        %v1046 = vcombine.low %v422, %v430
        %v1048 = vunpack.c.l.s4 1935823168
        %v1049 = vunpack.c.0.s8 %v1048
        %v1050 = vlaneseq
        %v1051 = vshrl.u32 %v1050, 7
        %v1052 = vsub.s32 %v1049, %v1051
        %v1053 = vrot.slane %v1045, %v1052
        %v1055 = vunpack.c.l.s4 1935823168
        %v1056 = vunpack.c.0.s8 %v1055
        %v1057 = vlaneseq
        %v1058 = vshrl.u32 %v1057, 7
        %v1059 = vsub.s32 %v1056, %v1058
        %v1060 = vrot.slane %v1046, %v1059
        %v1061 = vcombine.low %v1053, %v1060
        %v1063 = vunpack.c.l.s4 1935823168
        %v1064 = vunpack.c.0.s8 %v1063
        %v1065 = vlaneseq
        %v1066 = vshrl.u32 %v1065, 7
        %v1067 = vsub.s32 %v1064, %v1066
        %v1068 = vrot.slane %v1061, %v1067
        %v1069 = vcombine.low %v445, %v453
        %v1070 = vcombine.low %v452, %v454
        %v1072 = vunpack.c.l.s4 1935823168
        %v1073 = vunpack.c.0.s8 %v1072
        %v1074 = vlaneseq
        %v1075 = vshrl.u32 %v1074, 7
        %v1076 = vsub.s32 %v1073, %v1075
        %v1077 = vrot.slane %v1069, %v1076
        %v1079 = vunpack.c.l.s4 1935823168
        %v1080 = vunpack.c.0.s8 %v1079
        %v1081 = vlaneseq
        %v1082 = vshrl.u32 %v1081, 7
        %v1083 = vsub.s32 %v1080, %v1082
        %v1084 = vrot.slane %v1070, %v1083
        %v1085 = vcombine.low %v1077, %v1084
        %v1087 = vunpack.c.l.s4 1935823168
        %v1088 = vunpack.c.0.s8 %v1087
        %v1089 = vlaneseq
        %v1090 = vshrl.u32 %v1089, 7
        %v1091 = vsub.s32 %v1088, %v1090
        %v1092 = vrot.slane %v1085, %v1091
        %v1093 = vcombine.low %v469, %v477
        %v1094 = vcombine.low %v476, %v492
        %v1096 = vunpack.c.l.s4 1935823168
        %v1097 = vunpack.c.0.s8 %v1096
        %v1098 = vlaneseq
        %v1099 = vshrl.u32 %v1098, 7
        %v1100 = vsub.s32 %v1097, %v1099
        %v1101 = vrot.slane %v1093, %v1100
        %v1103 = vunpack.c.l.s4 1935823168
        %v1104 = vunpack.c.0.s8 %v1103
        %v1105 = vlaneseq
        %v1106 = vshrl.u32 %v1105, 7
        %v1107 = vsub.s32 %v1104, %v1106
        %v1108 = vrot.slane %v1094, %v1107
        %v1109 = vcombine.low %v1101, %v1108
        %v1111 = vunpack.c.l.s4 1935823168
        %v1112 = vunpack.c.0.s8 %v1111
        %v1113 = vlaneseq
        %v1114 = vshrl.u32 %v1113, 7
        %v1115 = vsub.s32 %v1112, %v1114
        %v1116 = vrot.slane %v1109, %v1115
        %v1117 = vcombine.low %v499, %v501
        %v1118 = vcombine.low %v500, %v516
        %v1120 = vunpack.c.l.s4 1935823168
        %v1121 = vunpack.c.0.s8 %v1120
        %v1122 = vlaneseq
        %v1123 = vshrl.u32 %v1122, 7
        %v1124 = vsub.s32 %v1121, %v1123
        %v1125 = vrot.slane %v1117, %v1124
        %v1127 = vunpack.c.l.s4 1935823168
        %v1128 = vunpack.c.0.s8 %v1127
        %v1129 = vlaneseq
        %v1130 = vshrl.u32 %v1129, 7
        %v1131 = vsub.s32 %v1128, %v1130
        %v1132 = vrot.slane %v1118, %v1131
        %v1133 = vcombine.low %v1125, %v1132
        %v1135 = vunpack.c.l.s4 1935823168
        %v1136 = vunpack.c.0.s8 %v1135
        %v1137 = vlaneseq
        %v1138 = vshrl.u32 %v1137, 7
        %v1139 = vsub.s32 %v1136, %v1138
        %v1140 = vrot.slane %v1133, %v1139
        %v1141 = vcombine.low %v523, %v539
        %v1142 = vcombine.low %v524, %v546
        %v1144 = vunpack.c.l.s4 1935823168
        %v1145 = vunpack.c.0.s8 %v1144
        %v1146 = vlaneseq
        %v1147 = vshrl.u32 %v1146, 7
        %v1148 = vsub.s32 %v1145, %v1147
        %v1149 = vrot.slane %v1141, %v1148
        %v1151 = vunpack.c.l.s4 1935823168
        %v1152 = vunpack.c.0.s8 %v1151
        %v1153 = vlaneseq
        %v1154 = vshrl.u32 %v1153, 7
        %v1155 = vsub.s32 %v1152, %v1154
        %v1156 = vrot.slane %v1142, %v1155
        %v1157 = vcombine.low %v1149, %v1156
        %v1159 = vunpack.c.l.s4 1935823168
        %v1160 = vunpack.c.0.s8 %v1159
        %v1161 = vlaneseq
        %v1162 = vshrl.u32 %v1161, 7
        %v1163 = vsub.s32 %v1160, %v1162
        %v1164 = vrot.slane %v1157, %v1163
        %v1165 = vcombine.low %v547, %v563
        %v1166 = vcombine.low %v548, %v570
        %v1168 = vunpack.c.l.s4 1935823168
        %v1169 = vunpack.c.0.s8 %v1168
        %v1170 = vlaneseq
        %v1171 = vshrl.u32 %v1170, 7
        %v1172 = vsub.s32 %v1169, %v1171
        %v1173 = vrot.slane %v1165, %v1172
        %v1175 = vunpack.c.l.s4 1935823168
        %v1176 = vunpack.c.0.s8 %v1175
        %v1177 = vlaneseq
        %v1178 = vshrl.u32 %v1177, 7
        %v1179 = vsub.s32 %v1176, %v1178
        %v1180 = vrot.slane %v1166, %v1179
        %v1181 = vcombine.low %v1173, %v1180
        %v1183 = vunpack.c.l.s4 1935823168
        %v1184 = vunpack.c.0.s8 %v1183
        %v1185 = vlaneseq
        %v1186 = vshrl.u32 %v1185, 7
        %v1187 = vsub.s32 %v1184, %v1186
        %v1188 = vrot.slane %v1181, %v1187
        %v1189 = vcombine.low %v571, %v593
        %v1190 = vcombine.low %v586, %v594
        %v1192 = vunpack.c.l.s4 1935823168
        %v1193 = vunpack.c.0.s8 %v1192
        %v1194 = vlaneseq
        %v1195 = vshrl.u32 %v1194, 7
        %v1196 = vsub.s32 %v1193, %v1195
        %v1197 = vrot.slane %v1189, %v1196
        %v1199 = vunpack.c.l.s4 1935823168
        %v1200 = vunpack.c.0.s8 %v1199
        %v1201 = vlaneseq
        %v1202 = vshrl.u32 %v1201, 7
        %v1203 = vsub.s32 %v1200, %v1202
        %v1204 = vrot.slane %v1190, %v1203
        %v1205 = vcombine.low %v1197, %v1204
        %v1207 = vunpack.c.l.s4 1935823168
        %v1208 = vunpack.c.0.s8 %v1207
        %v1209 = vlaneseq
        %v1210 = vshrl.u32 %v1209, 7
        %v1211 = vsub.s32 %v1208, %v1210
        %v1212 = vrot.slane %v1205, %v1211
        %v1213 = vcombine.low %v595, %v617
        %v1214 = vcombine.low %v610, %v618
        %v1216 = vunpack.c.l.s4 1935823168
        %v1217 = vunpack.c.0.s8 %v1216
        %v1218 = vlaneseq
        %v1219 = vshrl.u32 %v1218, 7
        %v1220 = vsub.s32 %v1217, %v1219
        %v1221 = vrot.slane %v1213, %v1220
        %v1223 = vunpack.c.l.s4 1935823168
        %v1224 = vunpack.c.0.s8 %v1223
        %v1225 = vlaneseq
        %v1226 = vshrl.u32 %v1225, 7
        %v1227 = vsub.s32 %v1224, %v1226
        %v1228 = vrot.slane %v1214, %v1227
        %v1229 = vcombine.low %v1221, %v1228
        %v1231 = vunpack.c.l.s4 1935823168
        %v1232 = vunpack.c.0.s8 %v1231
        %v1233 = vlaneseq
        %v1234 = vshrl.u32 %v1233, 7
        %v1235 = vsub.s32 %v1232, %v1234
        %v1236 = vrot.slane %v1229, %v1235
        %v1237 = vcombine.low %v633, %v641
        %v1238 = vcombine.low %v640, %v642
        %v1240 = vunpack.c.l.s4 1935823168
        %v1241 = vunpack.c.0.s8 %v1240
        %v1242 = vlaneseq
        %v1243 = vshrl.u32 %v1242, 7
        %v1244 = vsub.s32 %v1241, %v1243
        %v1245 = vrot.slane %v1237, %v1244
        %v1247 = vunpack.c.l.s4 1935823168
        %v1248 = vunpack.c.0.s8 %v1247
        %v1249 = vlaneseq
        %v1250 = vshrl.u32 %v1249, 7
        %v1251 = vsub.s32 %v1248, %v1250
        %v1252 = vrot.slane %v1238, %v1251
        %v1253 = vcombine.low %v1245, %v1252
        %v1255 = vunpack.c.l.s4 1935823168
        %v1256 = vunpack.c.0.s8 %v1255
        %v1257 = vlaneseq
        %v1258 = vshrl.u32 %v1257, 7
        %v1259 = vsub.s32 %v1256, %v1258
        %v1260 = vrot.slane %v1253, %v1259
        %v1261 = vcombine.low %v657, %v665
        %v1262 = vcombine.low %v664, %v680
        %v1264 = vunpack.c.l.s4 1935823168
        %v1265 = vunpack.c.0.s8 %v1264
        %v1266 = vlaneseq
        %v1267 = vshrl.u32 %v1266, 7
        %v1268 = vsub.s32 %v1265, %v1267
        %v1269 = vrot.slane %v1261, %v1268
        %v1271 = vunpack.c.l.s4 1935823168
        %v1272 = vunpack.c.0.s8 %v1271
        %v1273 = vlaneseq
        %v1274 = vshrl.u32 %v1273, 7
        %v1275 = vsub.s32 %v1272, %v1274
        %v1276 = vrot.slane %v1262, %v1275
        %v1277 = vcombine.low %v1269, %v1276
        %v1279 = vunpack.c.l.s4 1935823168
        %v1280 = vunpack.c.0.s8 %v1279
        %v1281 = vlaneseq
        %v1282 = vshrl.u32 %v1281, 7
        %v1283 = vsub.s32 %v1280, %v1282
        %v1284 = vrot.slane %v1277, %v1283
        %v1285 = vcombine.low %v687, %v689
        %v1286 = vcombine.low %v688, %v704
        %v1288 = vunpack.c.l.s4 1935823168
        %v1289 = vunpack.c.0.s8 %v1288
        %v1290 = vlaneseq
        %v1291 = vshrl.u32 %v1290, 7
        %v1292 = vsub.s32 %v1289, %v1291
        %v1293 = vrot.slane %v1285, %v1292
        %v1295 = vunpack.c.l.s4 1935823168
        %v1296 = vunpack.c.0.s8 %v1295
        %v1297 = vlaneseq
        %v1298 = vshrl.u32 %v1297, 7
        %v1299 = vsub.s32 %v1296, %v1298
        %v1300 = vrot.slane %v1286, %v1299
        %v1301 = vcombine.low %v1293, %v1300
        %v1303 = vunpack.c.l.s4 1935823168
        %v1304 = vunpack.c.0.s8 %v1303
        %v1305 = vlaneseq
        %v1306 = vshrl.u32 %v1305, 7
        %v1307 = vsub.s32 %v1304, %v1306
        %v1308 = vrot.slane %v1301, %v1307
        %v1309 = vcombine.low %v711, %v727
        %v1310 = vcombine.low %v712, %v734
        %v1312 = vunpack.c.l.s4 1935823168
        %v1313 = vunpack.c.0.s8 %v1312
        %v1314 = vlaneseq
        %v1315 = vshrl.u32 %v1314, 7
        %v1316 = vsub.s32 %v1313, %v1315
        %v1317 = vrot.slane %v1309, %v1316
        %v1319 = vunpack.c.l.s4 1935823168
        %v1320 = vunpack.c.0.s8 %v1319
        %v1321 = vlaneseq
        %v1322 = vshrl.u32 %v1321, 7
        %v1323 = vsub.s32 %v1320, %v1322
        %v1324 = vrot.slane %v1310, %v1323
        %v1325 = vcombine.low %v1317, %v1324
        %v1327 = vunpack.c.l.s4 1935823168
        %v1328 = vunpack.c.0.s8 %v1327
        %v1329 = vlaneseq
        %v1330 = vshrl.u32 %v1329, 7
        %v1331 = vsub.s32 %v1328, %v1330
        %v1332 = vrot.slane %v1325, %v1331
        %v1333 = vcombine.low %v735, %v751
        %v1334 = vcombine.low %v736, %v758
        %v1336 = vunpack.c.l.s4 1935823168
        %v1337 = vunpack.c.0.s8 %v1336
        %v1338 = vlaneseq
        %v1339 = vshrl.u32 %v1338, 7
        %v1340 = vsub.s32 %v1337, %v1339
        %v1341 = vrot.slane %v1333, %v1340
        %v1343 = vunpack.c.l.s4 1935823168
        %v1344 = vunpack.c.0.s8 %v1343
        %v1345 = vlaneseq
        %v1346 = vshrl.u32 %v1345, 7
        %v1347 = vsub.s32 %v1344, %v1346
        %v1348 = vrot.slane %v1334, %v1347
        %v1349 = vcombine.low %v1341, %v1348
        %v1351 = vunpack.c.l.s4 1935823168
        %v1352 = vunpack.c.0.s8 %v1351
        %v1353 = vlaneseq
        %v1354 = vshrl.u32 %v1353, 7
        %v1355 = vsub.s32 %v1352, %v1354
        %v1356 = vrot.slane %v1349, %v1355
        %v1357 = vcombine.low %v759, %v781
        %v1358 = vcombine.low %v774, %v782
        %v1360 = vunpack.c.l.s4 1935823168
        %v1361 = vunpack.c.0.s8 %v1360
        %v1362 = vlaneseq
        %v1363 = vshrl.u32 %v1362, 7
        %v1364 = vsub.s32 %v1361, %v1363
        %v1365 = vrot.slane %v1357, %v1364
        %v1367 = vunpack.c.l.s4 1935823168
        %v1368 = vunpack.c.0.s8 %v1367
        %v1369 = vlaneseq
        %v1370 = vshrl.u32 %v1369, 7
        %v1371 = vsub.s32 %v1368, %v1370
        %v1372 = vrot.slane %v1358, %v1371
        %v1373 = vcombine.low %v1365, %v1372
        %v1375 = vunpack.c.l.s4 1935823168
        %v1376 = vunpack.c.0.s8 %v1375
        %v1377 = vlaneseq
        %v1378 = vshrl.u32 %v1377, 7
        %v1379 = vsub.s32 %v1376, %v1378
        %v1380 = vrot.slane %v1373, %v1379
        %v1381 = vcombine.low %v783, %v805
        %v1382 = vcombine.low %v798, %v806
        %v1384 = vunpack.c.l.s4 1935823168
        %v1385 = vunpack.c.0.s8 %v1384
        %v1386 = vlaneseq
        %v1387 = vshrl.u32 %v1386, 7
        %v1388 = vsub.s32 %v1385, %v1387
        %v1389 = vrot.slane %v1381, %v1388
        %v1391 = vunpack.c.l.s4 1935823168
        %v1392 = vunpack.c.0.s8 %v1391
        %v1393 = vlaneseq
        %v1394 = vshrl.u32 %v1393, 7
        %v1395 = vsub.s32 %v1392, %v1394
        %v1396 = vrot.slane %v1382, %v1395
        %v1397 = vcombine.low %v1389, %v1396
        %v1399 = vunpack.c.l.s4 1935823168
        %v1400 = vunpack.c.0.s8 %v1399
        %v1401 = vlaneseq
        %v1402 = vshrl.u32 %v1401, 7
        %v1403 = vsub.s32 %v1400, %v1402
        %v1404 = vrot.slane %v1397, %v1403
        %v1405 = vcombine.low %v821, %v829
        %v1406 = vcombine.low %v828, %v830
        %v1408 = vunpack.c.l.s4 1935823168
        %v1409 = vunpack.c.0.s8 %v1408
        %v1410 = vlaneseq
        %v1411 = vshrl.u32 %v1410, 7
        %v1412 = vsub.s32 %v1409, %v1411
        %v1413 = vrot.slane %v1405, %v1412
        %v1415 = vunpack.c.l.s4 1935823168
        %v1416 = vunpack.c.0.s8 %v1415
        %v1417 = vlaneseq
        %v1418 = vshrl.u32 %v1417, 7
        %v1419 = vsub.s32 %v1416, %v1418
        %v1420 = vrot.slane %v1406, %v1419
        %v1421 = vcombine.low %v1413, %v1420
        %v1423 = vunpack.c.l.s4 1935823168
        %v1424 = vunpack.c.0.s8 %v1423
        %v1425 = vlaneseq
        %v1426 = vshrl.u32 %v1425, 7
        %v1427 = vsub.s32 %v1424, %v1426
        %v1428 = vrot.slane %v1421, %v1427
        %v1429 = vcombine.low %v845, %v853
        %v1430 = vcombine.low %v852, %v868
        %v1432 = vunpack.c.l.s4 1935823168
        %v1433 = vunpack.c.0.s8 %v1432
        %v1434 = vlaneseq
        %v1435 = vshrl.u32 %v1434, 7
        %v1436 = vsub.s32 %v1433, %v1435
        %v1437 = vrot.slane %v1429, %v1436
        %v1439 = vunpack.c.l.s4 1935823168
        %v1440 = vunpack.c.0.s8 %v1439
        %v1441 = vlaneseq
        %v1442 = vshrl.u32 %v1441, 7
        %v1443 = vsub.s32 %v1440, %v1442
        %v1444 = vrot.slane %v1430, %v1443
        %v1445 = vcombine.low %v1437, %v1444
        %v1447 = vunpack.c.l.s4 1935823168
        %v1448 = vunpack.c.0.s8 %v1447
        %v1449 = vlaneseq
        %v1450 = vshrl.u32 %v1449, 7
        %v1451 = vsub.s32 %v1448, %v1450
        %v1452 = vrot.slane %v1445, %v1451
        %v1453 = vcombine.low %v875, %v877
        %v1454 = vcombine.low %v876, %v892
        %v1456 = vunpack.c.l.s4 1935823168
        %v1457 = vunpack.c.0.s8 %v1456
        %v1458 = vlaneseq
        %v1459 = vshrl.u32 %v1458, 7
        %v1460 = vsub.s32 %v1457, %v1459
        %v1461 = vrot.slane %v1453, %v1460
        %v1463 = vunpack.c.l.s4 1935823168
        %v1464 = vunpack.c.0.s8 %v1463
        %v1465 = vlaneseq
        %v1466 = vshrl.u32 %v1465, 7
        %v1467 = vsub.s32 %v1464, %v1466
        %v1468 = vrot.slane %v1454, %v1467
        %v1469 = vcombine.low %v1461, %v1468
        %v1471 = vunpack.c.l.s4 1935823168
        %v1472 = vunpack.c.0.s8 %v1471
        %v1473 = vlaneseq
        %v1474 = vshrl.u32 %v1473, 7
        %v1475 = vsub.s32 %v1472, %v1474
        %v1476 = vrot.slane %v1469, %v1475
        %v1478 = vunpack.c.l.s4 1935823168
        %v1479 = vunpack.c.0.s8 %v1478
        %v1480 = vlaneseq
        %v1481 = vshrl.u32 %v1480, 7
        %v1482 = vsub.s32 %v1479, %v1481
        %v1483 = vrot.slane %v899, %v1482
        %v1485 = vunpack.c.l.s4 1935823168
        %v1486 = vunpack.c.0.s8 %v1485
        %v1487 = vlaneseq
        %v1488 = vshrl.u32 %v1487, 7
        %v1489 = vsub.s32 %v1486, %v1488
        %v1490 = vrot.slane %v900, %v1489
        %v1491 = vcombine.low %v1483, %v1490
        %v1493 = vunpack.c.l.s4 1935823168
        %v1494 = vunpack.c.0.s8 %v1493
        %v1495 = vlaneseq
        %v1496 = vshrl.u32 %v1495, 7
        %v1497 = vsub.s32 %v1494, %v1496
        %v1498 = vrot.slane %v1491, %v1497
        %vm1524 = vcmask 27648
        %1525 = vst.msk [vmem:[#allocation2] sm:$0xf] %vm1524, %v924
        %1526 = vst.msk [vmem:[#allocation2 + $0x4] sm:$0xf] %vm1524, %v948
        %1527 = vst.msk [vmem:[#allocation2 + $0x8] sm:$0xf] %vm1524, %v972
        %1528 = vst.msk [vmem:[#allocation2 + $0xc] sm:$0xf] %vm1524, %v996
        %1529 = vst.msk [vmem:[#allocation2 + $0x10] sm:$0xf] %vm1524, %v1020
        %1530 = vst.msk [vmem:[#allocation2 + $0x14] sm:$0xf] %vm1524, %v1044
        %1531 = vst.msk [vmem:[#allocation2 + $0x18] sm:$0xf] %vm1524, %v1068
        %1532 = vst.msk [vmem:[#allocation2 + $0x1c] sm:$0xf] %vm1524, %v1092
        %1533 = vst.msk [vmem:[#allocation2 + $0x20] sm:$0xf] %vm1524, %v1116
        %1534 = vst.msk [vmem:[#allocation2 + $0x24] sm:$0xf] %vm1524, %v1140
        %1535 = vst.msk [vmem:[#allocation2 + $0x28] sm:$0xf] %vm1524, %v1164
        %1536 = vst.msk [vmem:[#allocation2 + $0x2c] sm:$0xf] %vm1524, %v1188
        %1537 = vst.msk [vmem:[#allocation2 + $0x30] sm:$0xf] %vm1524, %v1212
        %1538 = vst.msk [vmem:[#allocation2 + $0x34] sm:$0xf] %vm1524, %v1236
        %1539 = vst.msk [vmem:[#allocation2 + $0x38] sm:$0xf] %vm1524, %v1260
        %1540 = vst.msk [vmem:[#allocation2 + $0x3c] sm:$0xf] %vm1524, %v1284
        %1541 = vst.msk [vmem:[#allocation2 + $0x40] sm:$0xf] %vm1524, %v1308
        %1542 = vst.msk [vmem:[#allocation2 + $0x44] sm:$0xf] %vm1524, %v1332
        %1543 = vst.msk [vmem:[#allocation2 + $0x48] sm:$0xf] %vm1524, %v1356
        %1544 = vst.msk [vmem:[#allocation2 + $0x4c] sm:$0xf] %vm1524, %v1380
        %1545 = vst.msk [vmem:[#allocation2 + $0x50] sm:$0xf] %vm1524, %v1404
        %1546 = vst.msk [vmem:[#allocation2 + $0x54] sm:$0xf] %vm1524, %v1428
        %1547 = vst.msk [vmem:[#allocation2 + $0x58] sm:$0xf] %vm1524, %v1452
        %1548 = vst.msk [vmem:[#allocation2 + $0x5c] sm:$0xf] %vm1524, %v1476
        %vm1549 = vcmask 25600
        %1550 = vst.msk [vmem:[#allocation2 + $0x60] sm:$0x3] %vm1549, %v1498
        %v1551 = vcombine.high %v288, %v288
        %v1552 = vcombine.high %v335, %v335
        %v1553 = vcombine.high %v382, %v382
        %v1554 = vcombine.high %v429, %v429
        %v1555 = vcombine.high %v476, %v476
        %v1556 = vcombine.high %v523, %v523
        %v1557 = vcombine.high %v570, %v570
        %v1558 = vcombine.high %v617, %v617
        %v1559 = vcombine.high %v664, %v664
        %v1560 = vcombine.high %v711, %v711
        %v1561 = vcombine.high %v758, %v758
        %v1562 = vcombine.high %v805, %v805
        %v1563 = vcombine.high %v852, %v852
        %v1564 = vcombine.high %v899, %v899
        %vm1565 = vsmask.f32 256
        %vm1566 = vsmask.f32 1284
        %vm1567 = vmor %vm1565, %vm1566
        %vm1568 = vsmask.f32 2312
        %vm1569 = vmor %vm1567, %vm1568
        %vm1570 = vsmask.f32 3340
        %vm1571 = vmor %vm1569, %vm1570
        %vm1572 = vsmask.f32 4368
        %vm1573 = vmor %vm1571, %vm1572
        %vm1574 = vsmask.f32 5396
        %vm1575 = vmor %vm1573, %vm1574
        %vm1576 = vsmask.f32 6424
        %vm1577 = vmor %vm1575, %vm1576
        %vm1578 = vsmask.f32 7452
        %vm1579 = vmor %vm1577, %vm1578
        %v1581 = vshrl.u32 %v257, 16
        %v1583 = vrot.slane %v1581, 7
        %v1584 = vrot.slane %v1583, 1
        %v1586 = vshll.u32 %v264, 16
        %v1588 = vsel %vm1579, %v1584, %v1586
        %v1589 = vshrl.u32 %v264, 16
        %v1591 = vrot.slane %v1589, 7
        %v1592 = vrot.slane %v1591, 1
        %v1594 = vshll.u32 %v265, 16
        %v1596 = vsel %vm1579, %v1592, %v1594
        %v1597 = vshrl.u32 %v265, 16
        %v1599 = vrot.slane %v1597, 7
        %v1600 = vrot.slane %v1599, 1
        %v1602 = vshll.u32 %v266, 16
        %v1604 = vsel %vm1579, %v1600, %v1602
        %v1605 = vshrl.u32 %v266, 16
        %v1607 = vrot.slane %v1605, 7
        %v1608 = vrot.slane %v1607, 1
        %v1610 = vshll.u32 %v281, 16
        %v1612 = vsel %vm1579, %v1608, %v1610
        %v1613 = vshrl.u32 %v281, 16
        %v1615 = vrot.slane %v1613, 7
        %v1616 = vrot.slane %v1615, 1
        %v1618 = vshll.u32 %v288, 16
        %v1620 = vsel %vm1579, %v1616, %v1618
        %v1621 = vshrl.u32 %v288, 16
        %v1623 = vrot.slane %v1621, 7
        %v1624 = vrot.slane %v1623, 1
        %v1626 = vshll.u32 %v289, 16
        %v1628 = vsel %vm1579, %v1624, %v1626
        %v1629 = vshrl.u32 %v289, 16
        %v1631 = vrot.slane %v1629, 7
        %v1632 = vrot.slane %v1631, 1
        %v1634 = vshll.u32 %v1551, 16
        %v1636 = vsel %vm1579, %v1632, %v1634
        %v1638 = vshrl.u32 %v304, 16
        %v1640 = vrot.slane %v1638, 7
        %v1641 = vrot.slane %v1640, 1
        %v1643 = vshll.u32 %v311, 16
        %v1645 = vsel %vm1579, %v1641, %v1643
        %v1646 = vshrl.u32 %v311, 16
        %v1648 = vrot.slane %v1646, 7
        %v1649 = vrot.slane %v1648, 1
        %v1651 = vshll.u32 %v312, 16
        %v1653 = vsel %vm1579, %v1649, %v1651
        %v1654 = vshrl.u32 %v312, 16
        %v1656 = vrot.slane %v1654, 7
        %v1657 = vrot.slane %v1656, 1
        %v1659 = vshll.u32 %v313, 16
        %v1661 = vsel %vm1579, %v1657, %v1659
        %v1662 = vshrl.u32 %v313, 16
        %v1664 = vrot.slane %v1662, 7
        %v1665 = vrot.slane %v1664, 1
        %v1667 = vshll.u32 %v328, 16
        %v1669 = vsel %vm1579, %v1665, %v1667
        %v1670 = vshrl.u32 %v328, 16
        %v1672 = vrot.slane %v1670, 7
        %v1673 = vrot.slane %v1672, 1
        %v1675 = vshll.u32 %v335, 16
        %v1677 = vsel %vm1579, %v1673, %v1675
        %v1678 = vshrl.u32 %v335, 16
        %v1680 = vrot.slane %v1678, 7
        %v1681 = vrot.slane %v1680, 1
        %v1683 = vshll.u32 %v336, 16
        %v1685 = vsel %vm1579, %v1681, %v1683
        %v1686 = vshrl.u32 %v336, 16
        %v1688 = vrot.slane %v1686, 7
        %v1689 = vrot.slane %v1688, 1
        %v1691 = vshll.u32 %v1552, 16
        %v1693 = vsel %vm1579, %v1689, %v1691
        %v1695 = vshrl.u32 %v351, 16
        %v1697 = vrot.slane %v1695, 7
        %v1698 = vrot.slane %v1697, 1
        %v1700 = vshll.u32 %v358, 16
        %v1702 = vsel %vm1579, %v1698, %v1700
        %v1703 = vshrl.u32 %v358, 16
        %v1705 = vrot.slane %v1703, 7
        %v1706 = vrot.slane %v1705, 1
        %v1708 = vshll.u32 %v359, 16
        %v1710 = vsel %vm1579, %v1706, %v1708
        %v1711 = vshrl.u32 %v359, 16
        %v1713 = vrot.slane %v1711, 7
        %v1714 = vrot.slane %v1713, 1
        %v1716 = vshll.u32 %v360, 16
        %v1718 = vsel %vm1579, %v1714, %v1716
        %v1719 = vshrl.u32 %v360, 16
        %v1721 = vrot.slane %v1719, 7
        %v1722 = vrot.slane %v1721, 1
        %v1724 = vshll.u32 %v375, 16
        %v1726 = vsel %vm1579, %v1722, %v1724
        %v1727 = vshrl.u32 %v375, 16
        %v1729 = vrot.slane %v1727, 7
        %v1730 = vrot.slane %v1729, 1
        %v1732 = vshll.u32 %v382, 16
        %v1734 = vsel %vm1579, %v1730, %v1732
        %v1735 = vshrl.u32 %v382, 16
        %v1737 = vrot.slane %v1735, 7
        %v1738 = vrot.slane %v1737, 1
        %v1740 = vshll.u32 %v383, 16
        %v1742 = vsel %vm1579, %v1738, %v1740
        %v1743 = vshrl.u32 %v383, 16
        %v1745 = vrot.slane %v1743, 7
        %v1746 = vrot.slane %v1745, 1
        %v1748 = vshll.u32 %v1553, 16
        %v1750 = vsel %vm1579, %v1746, %v1748
        %v1752 = vshrl.u32 %v398, 16
        %v1754 = vrot.slane %v1752, 7
        %v1755 = vrot.slane %v1754, 1
        %v1757 = vshll.u32 %v405, 16
        %v1759 = vsel %vm1579, %v1755, %v1757
        %v1760 = vshrl.u32 %v405, 16
        %v1762 = vrot.slane %v1760, 7
        %v1763 = vrot.slane %v1762, 1
        %v1765 = vshll.u32 %v406, 16
        %v1767 = vsel %vm1579, %v1763, %v1765
        %v1768 = vshrl.u32 %v406, 16
        %v1770 = vrot.slane %v1768, 7
        %v1771 = vrot.slane %v1770, 1
        %v1773 = vshll.u32 %v407, 16
        %v1775 = vsel %vm1579, %v1771, %v1773
        %v1776 = vshrl.u32 %v407, 16
        %v1778 = vrot.slane %v1776, 7
        %v1779 = vrot.slane %v1778, 1
        %v1781 = vshll.u32 %v422, 16
        %v1783 = vsel %vm1579, %v1779, %v1781
        %v1784 = vshrl.u32 %v422, 16
        %v1786 = vrot.slane %v1784, 7
        %v1787 = vrot.slane %v1786, 1
        %v1789 = vshll.u32 %v429, 16
        %v1791 = vsel %vm1579, %v1787, %v1789
        %v1792 = vshrl.u32 %v429, 16
        %v1794 = vrot.slane %v1792, 7
        %v1795 = vrot.slane %v1794, 1
        %v1797 = vshll.u32 %v430, 16
        %v1799 = vsel %vm1579, %v1795, %v1797
        %v1800 = vshrl.u32 %v430, 16
        %v1802 = vrot.slane %v1800, 7
        %v1803 = vrot.slane %v1802, 1
        %v1805 = vshll.u32 %v1554, 16
        %v1807 = vsel %vm1579, %v1803, %v1805
        %v1809 = vshrl.u32 %v445, 16
        %v1811 = vrot.slane %v1809, 7
        %v1812 = vrot.slane %v1811, 1
        %v1814 = vshll.u32 %v452, 16
        %v1816 = vsel %vm1579, %v1812, %v1814
        %v1817 = vshrl.u32 %v452, 16
        %v1819 = vrot.slane %v1817, 7
        %v1820 = vrot.slane %v1819, 1
        %v1822 = vshll.u32 %v453, 16
        %v1824 = vsel %vm1579, %v1820, %v1822
        %v1825 = vshrl.u32 %v453, 16
        %v1827 = vrot.slane %v1825, 7
        %v1828 = vrot.slane %v1827, 1
        %v1830 = vshll.u32 %v454, 16
        %v1832 = vsel %vm1579, %v1828, %v1830
        %v1833 = vshrl.u32 %v454, 16
        %v1835 = vrot.slane %v1833, 7
        %v1836 = vrot.slane %v1835, 1
        %v1838 = vshll.u32 %v469, 16
        %v1840 = vsel %vm1579, %v1836, %v1838
        %v1841 = vshrl.u32 %v469, 16
        %v1843 = vrot.slane %v1841, 7
        %v1844 = vrot.slane %v1843, 1
        %v1846 = vshll.u32 %v476, 16
        %v1848 = vsel %vm1579, %v1844, %v1846
        %v1849 = vshrl.u32 %v476, 16
        %v1851 = vrot.slane %v1849, 7
        %v1852 = vrot.slane %v1851, 1
        %v1854 = vshll.u32 %v477, 16
        %v1856 = vsel %vm1579, %v1852, %v1854
        %v1857 = vshrl.u32 %v477, 16
        %v1859 = vrot.slane %v1857, 7
        %v1860 = vrot.slane %v1859, 1
        %v1862 = vshll.u32 %v1555, 16
        %v1864 = vsel %vm1579, %v1860, %v1862
        %v1866 = vshrl.u32 %v492, 16
        %v1868 = vrot.slane %v1866, 7
        %v1869 = vrot.slane %v1868, 1
        %v1871 = vshll.u32 %v499, 16
        %v1873 = vsel %vm1579, %v1869, %v1871
        %v1874 = vshrl.u32 %v499, 16
        %v1876 = vrot.slane %v1874, 7
        %v1877 = vrot.slane %v1876, 1
        %v1879 = vshll.u32 %v500, 16
        %v1881 = vsel %vm1579, %v1877, %v1879
        %v1882 = vshrl.u32 %v500, 16
        %v1884 = vrot.slane %v1882, 7
        %v1885 = vrot.slane %v1884, 1
        %v1887 = vshll.u32 %v501, 16
        %v1889 = vsel %vm1579, %v1885, %v1887
        %v1890 = vshrl.u32 %v501, 16
        %v1892 = vrot.slane %v1890, 7
        %v1893 = vrot.slane %v1892, 1
        %v1895 = vshll.u32 %v516, 16
        %v1897 = vsel %vm1579, %v1893, %v1895
        %v1898 = vshrl.u32 %v516, 16
        %v1900 = vrot.slane %v1898, 7
        %v1901 = vrot.slane %v1900, 1
        %v1903 = vshll.u32 %v523, 16
        %v1905 = vsel %vm1579, %v1901, %v1903
        %v1906 = vshrl.u32 %v523, 16
        %v1908 = vrot.slane %v1906, 7
        %v1909 = vrot.slane %v1908, 1
        %v1911 = vshll.u32 %v524, 16
        %v1913 = vsel %vm1579, %v1909, %v1911
        %v1914 = vshrl.u32 %v524, 16
        %v1916 = vrot.slane %v1914, 7
        %v1917 = vrot.slane %v1916, 1
        %v1919 = vshll.u32 %v1556, 16
        %v1921 = vsel %vm1579, %v1917, %v1919
        %v1923 = vshrl.u32 %v539, 16
        %v1925 = vrot.slane %v1923, 7
        %v1926 = vrot.slane %v1925, 1
        %v1928 = vshll.u32 %v546, 16
        %v1930 = vsel %vm1579, %v1926, %v1928
        %v1931 = vshrl.u32 %v546, 16
        %v1933 = vrot.slane %v1931, 7
        %v1934 = vrot.slane %v1933, 1
        %v1936 = vshll.u32 %v547, 16
        %v1938 = vsel %vm1579, %v1934, %v1936
        %v1939 = vshrl.u32 %v547, 16
        %v1941 = vrot.slane %v1939, 7
        %v1942 = vrot.slane %v1941, 1
        %v1944 = vshll.u32 %v548, 16
        %v1946 = vsel %vm1579, %v1942, %v1944
        %v1947 = vshrl.u32 %v548, 16
        %v1949 = vrot.slane %v1947, 7
        %v1950 = vrot.slane %v1949, 1
        %v1952 = vshll.u32 %v563, 16
        %v1954 = vsel %vm1579, %v1950, %v1952
        %v1955 = vshrl.u32 %v563, 16
        %v1957 = vrot.slane %v1955, 7
        %v1958 = vrot.slane %v1957, 1
        %v1960 = vshll.u32 %v570, 16
        %v1962 = vsel %vm1579, %v1958, %v1960
        %v1963 = vshrl.u32 %v570, 16
        %v1965 = vrot.slane %v1963, 7
        %v1966 = vrot.slane %v1965, 1
        %v1968 = vshll.u32 %v571, 16
        %v1970 = vsel %vm1579, %v1966, %v1968
        %v1971 = vshrl.u32 %v571, 16
        %v1973 = vrot.slane %v1971, 7
        %v1974 = vrot.slane %v1973, 1
        %v1976 = vshll.u32 %v1557, 16
        %v1978 = vsel %vm1579, %v1974, %v1976
        %v1980 = vshrl.u32 %v586, 16
        %v1982 = vrot.slane %v1980, 7
        %v1983 = vrot.slane %v1982, 1
        %v1985 = vshll.u32 %v593, 16
        %v1987 = vsel %vm1579, %v1983, %v1985
        %v1988 = vshrl.u32 %v593, 16
        %v1990 = vrot.slane %v1988, 7
        %v1991 = vrot.slane %v1990, 1
        %v1993 = vshll.u32 %v594, 16
        %v1995 = vsel %vm1579, %v1991, %v1993
        %v1996 = vshrl.u32 %v594, 16
        %v1998 = vrot.slane %v1996, 7
        %v1999 = vrot.slane %v1998, 1
        %v2001 = vshll.u32 %v595, 16
        %v2003 = vsel %vm1579, %v1999, %v2001
        %v2004 = vshrl.u32 %v595, 16
        %v2006 = vrot.slane %v2004, 7
        %v2007 = vrot.slane %v2006, 1
        %v2009 = vshll.u32 %v610, 16
        %v2011 = vsel %vm1579, %v2007, %v2009
        %v2012 = vshrl.u32 %v610, 16
        %v2014 = vrot.slane %v2012, 7
        %v2015 = vrot.slane %v2014, 1
        %v2017 = vshll.u32 %v617, 16
        %v2019 = vsel %vm1579, %v2015, %v2017
        %v2020 = vshrl.u32 %v617, 16
        %v2022 = vrot.slane %v2020, 7
        %v2023 = vrot.slane %v2022, 1
        %v2025 = vshll.u32 %v618, 16
        %v2027 = vsel %vm1579, %v2023, %v2025
        %v2028 = vshrl.u32 %v618, 16
        %v2030 = vrot.slane %v2028, 7
        %v2031 = vrot.slane %v2030, 1
        %v2033 = vshll.u32 %v1558, 16
        %v2035 = vsel %vm1579, %v2031, %v2033
        %v2037 = vshrl.u32 %v633, 16
        %v2039 = vrot.slane %v2037, 7
        %v2040 = vrot.slane %v2039, 1
        %v2042 = vshll.u32 %v640, 16
        %v2044 = vsel %vm1579, %v2040, %v2042
        %v2045 = vshrl.u32 %v640, 16
        %v2047 = vrot.slane %v2045, 7
        %v2048 = vrot.slane %v2047, 1
        %v2050 = vshll.u32 %v641, 16
        %v2052 = vsel %vm1579, %v2048, %v2050
        %v2053 = vshrl.u32 %v641, 16
        %v2055 = vrot.slane %v2053, 7
        %v2056 = vrot.slane %v2055, 1
        %v2058 = vshll.u32 %v642, 16
        %v2060 = vsel %vm1579, %v2056, %v2058
        %v2061 = vshrl.u32 %v642, 16
        %v2063 = vrot.slane %v2061, 7
        %v2064 = vrot.slane %v2063, 1
        %v2066 = vshll.u32 %v657, 16
        %v2068 = vsel %vm1579, %v2064, %v2066
        %v2069 = vshrl.u32 %v657, 16
        %v2071 = vrot.slane %v2069, 7
        %v2072 = vrot.slane %v2071, 1
        %v2074 = vshll.u32 %v664, 16
        %v2076 = vsel %vm1579, %v2072, %v2074
        %v2077 = vshrl.u32 %v664, 16
        %v2079 = vrot.slane %v2077, 7
        %v2080 = vrot.slane %v2079, 1
        %v2082 = vshll.u32 %v665, 16
        %v2084 = vsel %vm1579, %v2080, %v2082
        %v2085 = vshrl.u32 %v665, 16
        %v2087 = vrot.slane %v2085, 7
        %v2088 = vrot.slane %v2087, 1
        %v2090 = vshll.u32 %v1559, 16
        %v2092 = vsel %vm1579, %v2088, %v2090
        %v2094 = vshrl.u32 %v680, 16
        %v2096 = vrot.slane %v2094, 7
        %v2097 = vrot.slane %v2096, 1
        %v2099 = vshll.u32 %v687, 16
        %v2101 = vsel %vm1579, %v2097, %v2099
        %v2102 = vshrl.u32 %v687, 16
        %v2104 = vrot.slane %v2102, 7
        %v2105 = vrot.slane %v2104, 1
        %v2107 = vshll.u32 %v688, 16
        %v2109 = vsel %vm1579, %v2105, %v2107
        %v2110 = vshrl.u32 %v688, 16
        %v2112 = vrot.slane %v2110, 7
        %v2113 = vrot.slane %v2112, 1
        %v2115 = vshll.u32 %v689, 16
        %v2117 = vsel %vm1579, %v2113, %v2115
        %v2118 = vshrl.u32 %v689, 16
        %v2120 = vrot.slane %v2118, 7
        %v2121 = vrot.slane %v2120, 1
        %v2123 = vshll.u32 %v704, 16
        %v2125 = vsel %vm1579, %v2121, %v2123
        %v2126 = vshrl.u32 %v704, 16
        %v2128 = vrot.slane %v2126, 7
        %v2129 = vrot.slane %v2128, 1
        %v2131 = vshll.u32 %v711, 16
        %v2133 = vsel %vm1579, %v2129, %v2131
        %v2134 = vshrl.u32 %v711, 16
        %v2136 = vrot.slane %v2134, 7
        %v2137 = vrot.slane %v2136, 1
        %v2139 = vshll.u32 %v712, 16
        %v2141 = vsel %vm1579, %v2137, %v2139
        %v2142 = vshrl.u32 %v712, 16
        %v2144 = vrot.slane %v2142, 7
        %v2145 = vrot.slane %v2144, 1
        %v2147 = vshll.u32 %v1560, 16
        %v2149 = vsel %vm1579, %v2145, %v2147
        %v2151 = vshrl.u32 %v727, 16
        %v2153 = vrot.slane %v2151, 7
        %v2154 = vrot.slane %v2153, 1
        %v2156 = vshll.u32 %v734, 16
        %v2158 = vsel %vm1579, %v2154, %v2156
        %v2159 = vshrl.u32 %v734, 16
        %v2161 = vrot.slane %v2159, 7
        %v2162 = vrot.slane %v2161, 1
        %v2164 = vshll.u32 %v735, 16
        %v2166 = vsel %vm1579, %v2162, %v2164
        %v2167 = vshrl.u32 %v735, 16
        %v2169 = vrot.slane %v2167, 7
        %v2170 = vrot.slane %v2169, 1
        %v2172 = vshll.u32 %v736, 16
        %v2174 = vsel %vm1579, %v2170, %v2172
        %v2175 = vshrl.u32 %v736, 16
        %v2177 = vrot.slane %v2175, 7
        %v2178 = vrot.slane %v2177, 1
        %v2180 = vshll.u32 %v751, 16
        %v2182 = vsel %vm1579, %v2178, %v2180
        %v2183 = vshrl.u32 %v751, 16
        %v2185 = vrot.slane %v2183, 7
        %v2186 = vrot.slane %v2185, 1
        %v2188 = vshll.u32 %v758, 16
        %v2190 = vsel %vm1579, %v2186, %v2188
        %v2191 = vshrl.u32 %v758, 16
        %v2193 = vrot.slane %v2191, 7
        %v2194 = vrot.slane %v2193, 1
        %v2196 = vshll.u32 %v759, 16
        %v2198 = vsel %vm1579, %v2194, %v2196
        %v2199 = vshrl.u32 %v759, 16
        %v2201 = vrot.slane %v2199, 7
        %v2202 = vrot.slane %v2201, 1
        %v2204 = vshll.u32 %v1561, 16
        %v2206 = vsel %vm1579, %v2202, %v2204
        %v2208 = vshrl.u32 %v774, 16
        %v2210 = vrot.slane %v2208, 7
        %v2211 = vrot.slane %v2210, 1
        %v2213 = vshll.u32 %v781, 16
        %v2215 = vsel %vm1579, %v2211, %v2213
        %v2216 = vshrl.u32 %v781, 16
        %v2218 = vrot.slane %v2216, 7
        %v2219 = vrot.slane %v2218, 1
        %v2221 = vshll.u32 %v782, 16
        %v2223 = vsel %vm1579, %v2219, %v2221
        %v2224 = vshrl.u32 %v782, 16
        %v2226 = vrot.slane %v2224, 7
        %v2227 = vrot.slane %v2226, 1
        %v2229 = vshll.u32 %v783, 16
        %v2231 = vsel %vm1579, %v2227, %v2229
        %v2232 = vshrl.u32 %v783, 16
        %v2234 = vrot.slane %v2232, 7
        %v2235 = vrot.slane %v2234, 1
        %v2237 = vshll.u32 %v798, 16
        %v2239 = vsel %vm1579, %v2235, %v2237
        %v2240 = vshrl.u32 %v798, 16
        %v2242 = vrot.slane %v2240, 7
        %v2243 = vrot.slane %v2242, 1
        %v2245 = vshll.u32 %v805, 16
        %v2247 = vsel %vm1579, %v2243, %v2245
        %v2248 = vshrl.u32 %v805, 16
        %v2250 = vrot.slane %v2248, 7
        %v2251 = vrot.slane %v2250, 1
        %v2253 = vshll.u32 %v806, 16
        %v2255 = vsel %vm1579, %v2251, %v2253
        %v2256 = vshrl.u32 %v806, 16
        %v2258 = vrot.slane %v2256, 7
        %v2259 = vrot.slane %v2258, 1
        %v2261 = vshll.u32 %v1562, 16
        %v2263 = vsel %vm1579, %v2259, %v2261
        %v2265 = vshrl.u32 %v821, 16
        %v2267 = vrot.slane %v2265, 7
        %v2268 = vrot.slane %v2267, 1
        %v2270 = vshll.u32 %v828, 16
        %v2272 = vsel %vm1579, %v2268, %v2270
        %v2273 = vshrl.u32 %v828, 16
        %v2275 = vrot.slane %v2273, 7
        %v2276 = vrot.slane %v2275, 1
        %v2278 = vshll.u32 %v829, 16
        %v2280 = vsel %vm1579, %v2276, %v2278
        %v2281 = vshrl.u32 %v829, 16
        %v2283 = vrot.slane %v2281, 7
        %v2284 = vrot.slane %v2283, 1
        %v2286 = vshll.u32 %v830, 16
        %v2288 = vsel %vm1579, %v2284, %v2286
        %v2289 = vshrl.u32 %v830, 16
        %v2291 = vrot.slane %v2289, 7
        %v2292 = vrot.slane %v2291, 1
        %v2294 = vshll.u32 %v845, 16
        %v2296 = vsel %vm1579, %v2292, %v2294
        %v2297 = vshrl.u32 %v845, 16
        %v2299 = vrot.slane %v2297, 7
        %v2300 = vrot.slane %v2299, 1
        %v2302 = vshll.u32 %v852, 16
        %v2304 = vsel %vm1579, %v2300, %v2302
        %v2305 = vshrl.u32 %v852, 16
        %v2307 = vrot.slane %v2305, 7
        %v2308 = vrot.slane %v2307, 1
        %v2310 = vshll.u32 %v853, 16
        %v2312 = vsel %vm1579, %v2308, %v2310
        %v2313 = vshrl.u32 %v853, 16
        %v2315 = vrot.slane %v2313, 7
        %v2316 = vrot.slane %v2315, 1
        %v2318 = vshll.u32 %v1563, 16
        %v2320 = vsel %vm1579, %v2316, %v2318
        %v2322 = vshrl.u32 %v868, 16
        %v2324 = vrot.slane %v2322, 7
        %v2325 = vrot.slane %v2324, 1
        %v2327 = vshll.u32 %v875, 16
        %v2329 = vsel %vm1579, %v2325, %v2327
        %v2330 = vshrl.u32 %v875, 16
        %v2332 = vrot.slane %v2330, 7
        %v2333 = vrot.slane %v2332, 1
        %v2335 = vshll.u32 %v876, 16
        %v2337 = vsel %vm1579, %v2333, %v2335
        %v2338 = vshrl.u32 %v876, 16
        %v2340 = vrot.slane %v2338, 7
        %v2341 = vrot.slane %v2340, 1
        %v2343 = vshll.u32 %v877, 16
        %v2345 = vsel %vm1579, %v2341, %v2343
        %v2346 = vshrl.u32 %v877, 16
        %v2348 = vrot.slane %v2346, 7
        %v2349 = vrot.slane %v2348, 1
        %v2351 = vshll.u32 %v892, 16
        %v2353 = vsel %vm1579, %v2349, %v2351
        %v2354 = vshrl.u32 %v892, 16
        %v2356 = vrot.slane %v2354, 7
        %v2357 = vrot.slane %v2356, 1
        %v2359 = vshll.u32 %v899, 16
        %v2361 = vsel %vm1579, %v2357, %v2359
        %v2362 = vshrl.u32 %v899, 16
        %v2364 = vrot.slane %v2362, 7
        %v2365 = vrot.slane %v2364, 1
        %v2367 = vshll.u32 %v900, 16
        %v2369 = vsel %vm1579, %v2365, %v2367
        %v2370 = vshrl.u32 %v900, 16
        %v2372 = vrot.slane %v2370, 7
        %v2373 = vrot.slane %v2372, 1
        %v2375 = vshll.u32 %v1564, 16
        %v2377 = vsel %vm1579, %v2373, %v2375
        %v2378 = vcombine.low %v1588, %v1604
        %v2379 = vcombine.low %v1596, %v1612
        %v2381 = vunpack.c.l.s4 1935823168
        %v2382 = vunpack.c.0.s8 %v2381
        %v2383 = vlaneseq
        %v2384 = vshrl.u32 %v2383, 7
        %v2385 = vsub.s32 %v2382, %v2384
        %v2386 = vrot.slane %v2378, %v2385
        %v2388 = vunpack.c.l.s4 1935823168
        %v2389 = vunpack.c.0.s8 %v2388
        %v2390 = vlaneseq
        %v2391 = vshrl.u32 %v2390, 7
        %v2392 = vsub.s32 %v2389, %v2391
        %v2393 = vrot.slane %v2379, %v2392
        %v2394 = vcombine.low %v2386, %v2393
        %v2396 = vunpack.c.l.s4 1935823168
        %v2397 = vunpack.c.0.s8 %v2396
        %v2398 = vlaneseq
        %v2399 = vshrl.u32 %v2398, 7
        %v2400 = vsub.s32 %v2397, %v2399
        %v2401 = vrot.slane %v2394, %v2400
        %v2402 = vcombine.low %v1620, %v1636
        %v2403 = vcombine.low %v1628, %v1645
        %v2405 = vunpack.c.l.s4 1935823168
        %v2406 = vunpack.c.0.s8 %v2405
        %v2407 = vlaneseq
        %v2408 = vshrl.u32 %v2407, 7
        %v2409 = vsub.s32 %v2406, %v2408
        %v2410 = vrot.slane %v2402, %v2409
        %v2412 = vunpack.c.l.s4 1935823168
        %v2413 = vunpack.c.0.s8 %v2412
        %v2414 = vlaneseq
        %v2415 = vshrl.u32 %v2414, 7
        %v2416 = vsub.s32 %v2413, %v2415
        %v2417 = vrot.slane %v2403, %v2416
        %v2418 = vcombine.low %v2410, %v2417
        %v2420 = vunpack.c.l.s4 1935823168
        %v2421 = vunpack.c.0.s8 %v2420
        %v2422 = vlaneseq
        %v2423 = vshrl.u32 %v2422, 7
        %v2424 = vsub.s32 %v2421, %v2423
        %v2425 = vrot.slane %v2418, %v2424
        %v2426 = vcombine.low %v1653, %v1669
        %v2427 = vcombine.low %v1661, %v1677
        %v2429 = vunpack.c.l.s4 1935823168
        %v2430 = vunpack.c.0.s8 %v2429
        %v2431 = vlaneseq
        %v2432 = vshrl.u32 %v2431, 7
        %v2433 = vsub.s32 %v2430, %v2432
        %v2434 = vrot.slane %v2426, %v2433
        %v2436 = vunpack.c.l.s4 1935823168
        %v2437 = vunpack.c.0.s8 %v2436
        %v2438 = vlaneseq
        %v2439 = vshrl.u32 %v2438, 7
        %v2440 = vsub.s32 %v2437, %v2439
        %v2441 = vrot.slane %v2427, %v2440
        %v2442 = vcombine.low %v2434, %v2441
        %v2444 = vunpack.c.l.s4 1935823168
        %v2445 = vunpack.c.0.s8 %v2444
        %v2446 = vlaneseq
        %v2447 = vshrl.u32 %v2446, 7
        %v2448 = vsub.s32 %v2445, %v2447
        %v2449 = vrot.slane %v2442, %v2448
        %v2450 = vcombine.low %v1685, %v1702
        %v2451 = vcombine.low %v1693, %v1710
        %v2453 = vunpack.c.l.s4 1935823168
        %v2454 = vunpack.c.0.s8 %v2453
        %v2455 = vlaneseq
        %v2456 = vshrl.u32 %v2455, 7
        %v2457 = vsub.s32 %v2454, %v2456
        %v2458 = vrot.slane %v2450, %v2457
        %v2460 = vunpack.c.l.s4 1935823168
        %v2461 = vunpack.c.0.s8 %v2460
        %v2462 = vlaneseq
        %v2463 = vshrl.u32 %v2462, 7
        %v2464 = vsub.s32 %v2461, %v2463
        %v2465 = vrot.slane %v2451, %v2464
        %v2466 = vcombine.low %v2458, %v2465
        %v2468 = vunpack.c.l.s4 1935823168
        %v2469 = vunpack.c.0.s8 %v2468
        %v2470 = vlaneseq
        %v2471 = vshrl.u32 %v2470, 7
        %v2472 = vsub.s32 %v2469, %v2471
        %v2473 = vrot.slane %v2466, %v2472
        %v2474 = vcombine.low %v1718, %v1734
        %v2475 = vcombine.low %v1726, %v1742
        %v2477 = vunpack.c.l.s4 1935823168
        %v2478 = vunpack.c.0.s8 %v2477
        %v2479 = vlaneseq
        %v2480 = vshrl.u32 %v2479, 7
        %v2481 = vsub.s32 %v2478, %v2480
        %v2482 = vrot.slane %v2474, %v2481
        %v2484 = vunpack.c.l.s4 1935823168
        %v2485 = vunpack.c.0.s8 %v2484
        %v2486 = vlaneseq
        %v2487 = vshrl.u32 %v2486, 7
        %v2488 = vsub.s32 %v2485, %v2487
        %v2489 = vrot.slane %v2475, %v2488
        %v2490 = vcombine.low %v2482, %v2489
        %v2492 = vunpack.c.l.s4 1935823168
        %v2493 = vunpack.c.0.s8 %v2492
        %v2494 = vlaneseq
        %v2495 = vshrl.u32 %v2494, 7
        %v2496 = vsub.s32 %v2493, %v2495
        %v2497 = vrot.slane %v2490, %v2496
        %v2498 = vcombine.low %v1750, %v1767
        %v2499 = vcombine.low %v1759, %v1775
        %v2501 = vunpack.c.l.s4 1935823168
        %v2502 = vunpack.c.0.s8 %v2501
        %v2503 = vlaneseq
        %v2504 = vshrl.u32 %v2503, 7
        %v2505 = vsub.s32 %v2502, %v2504
        %v2506 = vrot.slane %v2498, %v2505
        %v2508 = vunpack.c.l.s4 1935823168
        %v2509 = vunpack.c.0.s8 %v2508
        %v2510 = vlaneseq
        %v2511 = vshrl.u32 %v2510, 7
        %v2512 = vsub.s32 %v2509, %v2511
        %v2513 = vrot.slane %v2499, %v2512
        %v2514 = vcombine.low %v2506, %v2513
        %v2516 = vunpack.c.l.s4 1935823168
        %v2517 = vunpack.c.0.s8 %v2516
        %v2518 = vlaneseq
        %v2519 = vshrl.u32 %v2518, 7
        %v2520 = vsub.s32 %v2517, %v2519
        %v2521 = vrot.slane %v2514, %v2520
        %v2522 = vcombine.low %v1783, %v1799
        %v2523 = vcombine.low %v1791, %v1807
        %v2525 = vunpack.c.l.s4 1935823168
        %v2526 = vunpack.c.0.s8 %v2525
        %v2527 = vlaneseq
        %v2528 = vshrl.u32 %v2527, 7
        %v2529 = vsub.s32 %v2526, %v2528
        %v2530 = vrot.slane %v2522, %v2529
        %v2532 = vunpack.c.l.s4 1935823168
        %v2533 = vunpack.c.0.s8 %v2532
        %v2534 = vlaneseq
        %v2535 = vshrl.u32 %v2534, 7
        %v2536 = vsub.s32 %v2533, %v2535
        %v2537 = vrot.slane %v2523, %v2536
        %v2538 = vcombine.low %v2530, %v2537
        %v2540 = vunpack.c.l.s4 1935823168
        %v2541 = vunpack.c.0.s8 %v2540
        %v2542 = vlaneseq
        %v2543 = vshrl.u32 %v2542, 7
        %v2544 = vsub.s32 %v2541, %v2543
        %v2545 = vrot.slane %v2538, %v2544
        %v2546 = vcombine.low %v1816, %v1832
        %v2547 = vcombine.low %v1824, %v1840
        %v2549 = vunpack.c.l.s4 1935823168
        %v2550 = vunpack.c.0.s8 %v2549
        %v2551 = vlaneseq
        %v2552 = vshrl.u32 %v2551, 7
        %v2553 = vsub.s32 %v2550, %v2552
        %v2554 = vrot.slane %v2546, %v2553
        %v2556 = vunpack.c.l.s4 1935823168
        %v2557 = vunpack.c.0.s8 %v2556
        %v2558 = vlaneseq
        %v2559 = vshrl.u32 %v2558, 7
        %v2560 = vsub.s32 %v2557, %v2559
        %v2561 = vrot.slane %v2547, %v2560
        %v2562 = vcombine.low %v2554, %v2561
        %v2564 = vunpack.c.l.s4 1935823168
        %v2565 = vunpack.c.0.s8 %v2564
        %v2566 = vlaneseq
        %v2567 = vshrl.u32 %v2566, 7
        %v2568 = vsub.s32 %v2565, %v2567
        %v2569 = vrot.slane %v2562, %v2568
        %v2570 = vcombine.low %v1848, %v1864
        %v2571 = vcombine.low %v1856, %v1873
        %v2573 = vunpack.c.l.s4 1935823168
        %v2574 = vunpack.c.0.s8 %v2573
        %v2575 = vlaneseq
        %v2576 = vshrl.u32 %v2575, 7
        %v2577 = vsub.s32 %v2574, %v2576
        %v2578 = vrot.slane %v2570, %v2577
        %v2580 = vunpack.c.l.s4 1935823168
        %v2581 = vunpack.c.0.s8 %v2580
        %v2582 = vlaneseq
        %v2583 = vshrl.u32 %v2582, 7
        %v2584 = vsub.s32 %v2581, %v2583
        %v2585 = vrot.slane %v2571, %v2584
        %v2586 = vcombine.low %v2578, %v2585
        %v2588 = vunpack.c.l.s4 1935823168
        %v2589 = vunpack.c.0.s8 %v2588
        %v2590 = vlaneseq
        %v2591 = vshrl.u32 %v2590, 7
        %v2592 = vsub.s32 %v2589, %v2591
        %v2593 = vrot.slane %v2586, %v2592
        %v2594 = vcombine.low %v1881, %v1897
        %v2595 = vcombine.low %v1889, %v1905
        %v2597 = vunpack.c.l.s4 1935823168
        %v2598 = vunpack.c.0.s8 %v2597
        %v2599 = vlaneseq
        %v2600 = vshrl.u32 %v2599, 7
        %v2601 = vsub.s32 %v2598, %v2600
        %v2602 = vrot.slane %v2594, %v2601
        %v2604 = vunpack.c.l.s4 1935823168
        %v2605 = vunpack.c.0.s8 %v2604
        %v2606 = vlaneseq
        %v2607 = vshrl.u32 %v2606, 7
        %v2608 = vsub.s32 %v2605, %v2607
        %v2609 = vrot.slane %v2595, %v2608
        %v2610 = vcombine.low %v2602, %v2609
        %v2612 = vunpack.c.l.s4 1935823168
        %v2613 = vunpack.c.0.s8 %v2612
        %v2614 = vlaneseq
        %v2615 = vshrl.u32 %v2614, 7
        %v2616 = vsub.s32 %v2613, %v2615
        %v2617 = vrot.slane %v2610, %v2616
        %v2618 = vcombine.low %v1913, %v1930
        %v2619 = vcombine.low %v1921, %v1938
        %v2621 = vunpack.c.l.s4 1935823168
        %v2622 = vunpack.c.0.s8 %v2621
        %v2623 = vlaneseq
        %v2624 = vshrl.u32 %v2623, 7
        %v2625 = vsub.s32 %v2622, %v2624
        %v2626 = vrot.slane %v2618, %v2625
        %v2628 = vunpack.c.l.s4 1935823168
        %v2629 = vunpack.c.0.s8 %v2628
        %v2630 = vlaneseq
        %v2631 = vshrl.u32 %v2630, 7
        %v2632 = vsub.s32 %v2629, %v2631
        %v2633 = vrot.slane %v2619, %v2632
        %v2634 = vcombine.low %v2626, %v2633
        %v2636 = vunpack.c.l.s4 1935823168
        %v2637 = vunpack.c.0.s8 %v2636
        %v2638 = vlaneseq
        %v2639 = vshrl.u32 %v2638, 7
        %v2640 = vsub.s32 %v2637, %v2639
        %v2641 = vrot.slane %v2634, %v2640
        %v2642 = vcombine.low %v1946, %v1962
        %v2643 = vcombine.low %v1954, %v1970
        %v2645 = vunpack.c.l.s4 1935823168
        %v2646 = vunpack.c.0.s8 %v2645
        %v2647 = vlaneseq
        %v2648 = vshrl.u32 %v2647, 7
        %v2649 = vsub.s32 %v2646, %v2648
        %v2650 = vrot.slane %v2642, %v2649
        %v2652 = vunpack.c.l.s4 1935823168
        %v2653 = vunpack.c.0.s8 %v2652
        %v2654 = vlaneseq
        %v2655 = vshrl.u32 %v2654, 7
        %v2656 = vsub.s32 %v2653, %v2655
        %v2657 = vrot.slane %v2643, %v2656
        %v2658 = vcombine.low %v2650, %v2657
        %v2660 = vunpack.c.l.s4 1935823168
        %v2661 = vunpack.c.0.s8 %v2660
        %v2662 = vlaneseq
        %v2663 = vshrl.u32 %v2662, 7
        %v2664 = vsub.s32 %v2661, %v2663
        %v2665 = vrot.slane %v2658, %v2664
        %v2666 = vcombine.low %v1978, %v1995
        %v2667 = vcombine.low %v1987, %v2003
        %v2669 = vunpack.c.l.s4 1935823168
        %v2670 = vunpack.c.0.s8 %v2669
        %v2671 = vlaneseq
        %v2672 = vshrl.u32 %v2671, 7
        %v2673 = vsub.s32 %v2670, %v2672
        %v2674 = vrot.slane %v2666, %v2673
        %v2676 = vunpack.c.l.s4 1935823168
        %v2677 = vunpack.c.0.s8 %v2676
        %v2678 = vlaneseq
        %v2679 = vshrl.u32 %v2678, 7
        %v2680 = vsub.s32 %v2677, %v2679
        %v2681 = vrot.slane %v2667, %v2680
        %v2682 = vcombine.low %v2674, %v2681
        %v2684 = vunpack.c.l.s4 1935823168
        %v2685 = vunpack.c.0.s8 %v2684
        %v2686 = vlaneseq
        %v2687 = vshrl.u32 %v2686, 7
        %v2688 = vsub.s32 %v2685, %v2687
        %v2689 = vrot.slane %v2682, %v2688
        %v2690 = vcombine.low %v2011, %v2027
        %v2691 = vcombine.low %v2019, %v2035
        %v2693 = vunpack.c.l.s4 1935823168
        %v2694 = vunpack.c.0.s8 %v2693
        %v2695 = vlaneseq
        %v2696 = vshrl.u32 %v2695, 7
        %v2697 = vsub.s32 %v2694, %v2696
        %v2698 = vrot.slane %v2690, %v2697
        %v2700 = vunpack.c.l.s4 1935823168
        %v2701 = vunpack.c.0.s8 %v2700
        %v2702 = vlaneseq
        %v2703 = vshrl.u32 %v2702, 7
        %v2704 = vsub.s32 %v2701, %v2703
        %v2705 = vrot.slane %v2691, %v2704
        %v2706 = vcombine.low %v2698, %v2705
        %v2708 = vunpack.c.l.s4 1935823168
        %v2709 = vunpack.c.0.s8 %v2708
        %v2710 = vlaneseq
        %v2711 = vshrl.u32 %v2710, 7
        %v2712 = vsub.s32 %v2709, %v2711
        %v2713 = vrot.slane %v2706, %v2712
        %v2714 = vcombine.low %v2044, %v2060
        %v2715 = vcombine.low %v2052, %v2068
        %v2717 = vunpack.c.l.s4 1935823168
        %v2718 = vunpack.c.0.s8 %v2717
        %v2719 = vlaneseq
        %v2720 = vshrl.u32 %v2719, 7
        %v2721 = vsub.s32 %v2718, %v2720
        %v2722 = vrot.slane %v2714, %v2721
        %v2724 = vunpack.c.l.s4 1935823168
        %v2725 = vunpack.c.0.s8 %v2724
        %v2726 = vlaneseq
        %v2727 = vshrl.u32 %v2726, 7
        %v2728 = vsub.s32 %v2725, %v2727
        %v2729 = vrot.slane %v2715, %v2728
        %v2730 = vcombine.low %v2722, %v2729
        %v2732 = vunpack.c.l.s4 1935823168
        %v2733 = vunpack.c.0.s8 %v2732
        %v2734 = vlaneseq
        %v2735 = vshrl.u32 %v2734, 7
        %v2736 = vsub.s32 %v2733, %v2735
        %v2737 = vrot.slane %v2730, %v2736
        %v2738 = vcombine.low %v2076, %v2092
        %v2739 = vcombine.low %v2084, %v2101
        %v2741 = vunpack.c.l.s4 1935823168
        %v2742 = vunpack.c.0.s8 %v2741
        %v2743 = vlaneseq
        %v2744 = vshrl.u32 %v2743, 7
        %v2745 = vsub.s32 %v2742, %v2744
        %v2746 = vrot.slane %v2738, %v2745
        %v2748 = vunpack.c.l.s4 1935823168
        %v2749 = vunpack.c.0.s8 %v2748
        %v2750 = vlaneseq
        %v2751 = vshrl.u32 %v2750, 7
        %v2752 = vsub.s32 %v2749, %v2751
        %v2753 = vrot.slane %v2739, %v2752
        %v2754 = vcombine.low %v2746, %v2753
        %v2756 = vunpack.c.l.s4 1935823168
        %v2757 = vunpack.c.0.s8 %v2756
        %v2758 = vlaneseq
        %v2759 = vshrl.u32 %v2758, 7
        %v2760 = vsub.s32 %v2757, %v2759
        %v2761 = vrot.slane %v2754, %v2760
        %v2762 = vcombine.low %v2109, %v2125
        %v2763 = vcombine.low %v2117, %v2133
        %v2765 = vunpack.c.l.s4 1935823168
        %v2766 = vunpack.c.0.s8 %v2765
        %v2767 = vlaneseq
        %v2768 = vshrl.u32 %v2767, 7
        %v2769 = vsub.s32 %v2766, %v2768
        %v2770 = vrot.slane %v2762, %v2769
        %v2772 = vunpack.c.l.s4 1935823168
        %v2773 = vunpack.c.0.s8 %v2772
        %v2774 = vlaneseq
        %v2775 = vshrl.u32 %v2774, 7
        %v2776 = vsub.s32 %v2773, %v2775
        %v2777 = vrot.slane %v2763, %v2776
        %v2778 = vcombine.low %v2770, %v2777
        %v2780 = vunpack.c.l.s4 1935823168
        %v2781 = vunpack.c.0.s8 %v2780
        %v2782 = vlaneseq
        %v2783 = vshrl.u32 %v2782, 7
        %v2784 = vsub.s32 %v2781, %v2783
        %v2785 = vrot.slane %v2778, %v2784
        %v2786 = vcombine.low %v2141, %v2158
        %v2787 = vcombine.low %v2149, %v2166
        %v2789 = vunpack.c.l.s4 1935823168
        %v2790 = vunpack.c.0.s8 %v2789
        %v2791 = vlaneseq
        %v2792 = vshrl.u32 %v2791, 7
        %v2793 = vsub.s32 %v2790, %v2792
        %v2794 = vrot.slane %v2786, %v2793
        %v2796 = vunpack.c.l.s4 1935823168
        %v2797 = vunpack.c.0.s8 %v2796
        %v2798 = vlaneseq
        %v2799 = vshrl.u32 %v2798, 7
        %v2800 = vsub.s32 %v2797, %v2799
        %v2801 = vrot.slane %v2787, %v2800
        %v2802 = vcombine.low %v2794, %v2801
        %v2804 = vunpack.c.l.s4 1935823168
        %v2805 = vunpack.c.0.s8 %v2804
        %v2806 = vlaneseq
        %v2807 = vshrl.u32 %v2806, 7
        %v2808 = vsub.s32 %v2805, %v2807
        %v2809 = vrot.slane %v2802, %v2808
        %v2810 = vcombine.low %v2174, %v2190
        %v2811 = vcombine.low %v2182, %v2198
        %v2813 = vunpack.c.l.s4 1935823168
        %v2814 = vunpack.c.0.s8 %v2813
        %v2815 = vlaneseq
        %v2816 = vshrl.u32 %v2815, 7
        %v2817 = vsub.s32 %v2814, %v2816
        %v2818 = vrot.slane %v2810, %v2817
        %v2820 = vunpack.c.l.s4 1935823168
        %v2821 = vunpack.c.0.s8 %v2820
        %v2822 = vlaneseq
        %v2823 = vshrl.u32 %v2822, 7
        %v2824 = vsub.s32 %v2821, %v2823
        %v2825 = vrot.slane %v2811, %v2824
        %v2826 = vcombine.low %v2818, %v2825
        %v2828 = vunpack.c.l.s4 1935823168
        %v2829 = vunpack.c.0.s8 %v2828
        %v2830 = vlaneseq
        %v2831 = vshrl.u32 %v2830, 7
        %v2832 = vsub.s32 %v2829, %v2831
        %v2833 = vrot.slane %v2826, %v2832
        %v2834 = vcombine.low %v2206, %v2223
        %v2835 = vcombine.low %v2215, %v2231
        %v2837 = vunpack.c.l.s4 1935823168
        %v2838 = vunpack.c.0.s8 %v2837
        %v2839 = vlaneseq
        %v2840 = vshrl.u32 %v2839, 7
        %v2841 = vsub.s32 %v2838, %v2840
        %v2842 = vrot.slane %v2834, %v2841
        %v2844 = vunpack.c.l.s4 1935823168
        %v2845 = vunpack.c.0.s8 %v2844
        %v2846 = vlaneseq
        %v2847 = vshrl.u32 %v2846, 7
        %v2848 = vsub.s32 %v2845, %v2847
        %v2849 = vrot.slane %v2835, %v2848
        %v2850 = vcombine.low %v2842, %v2849
        %v2852 = vunpack.c.l.s4 1935823168
        %v2853 = vunpack.c.0.s8 %v2852
        %v2854 = vlaneseq
        %v2855 = vshrl.u32 %v2854, 7
        %v2856 = vsub.s32 %v2853, %v2855
        %v2857 = vrot.slane %v2850, %v2856
        %v2858 = vcombine.low %v2239, %v2255
        %v2859 = vcombine.low %v2247, %v2263
        %v2861 = vunpack.c.l.s4 1935823168
        %v2862 = vunpack.c.0.s8 %v2861
        %v2863 = vlaneseq
        %v2864 = vshrl.u32 %v2863, 7
        %v2865 = vsub.s32 %v2862, %v2864
        %v2866 = vrot.slane %v2858, %v2865
        %v2868 = vunpack.c.l.s4 1935823168
        %v2869 = vunpack.c.0.s8 %v2868
        %v2870 = vlaneseq
        %v2871 = vshrl.u32 %v2870, 7
        %v2872 = vsub.s32 %v2869, %v2871
        %v2873 = vrot.slane %v2859, %v2872
        %v2874 = vcombine.low %v2866, %v2873
        %v2876 = vunpack.c.l.s4 1935823168
        %v2877 = vunpack.c.0.s8 %v2876
        %v2878 = vlaneseq
        %v2879 = vshrl.u32 %v2878, 7
        %v2880 = vsub.s32 %v2877, %v2879
        %v2881 = vrot.slane %v2874, %v2880
        %v2882 = vcombine.low %v2272, %v2288
        %v2883 = vcombine.low %v2280, %v2296
        %v2885 = vunpack.c.l.s4 1935823168
        %v2886 = vunpack.c.0.s8 %v2885
        %v2887 = vlaneseq
        %v2888 = vshrl.u32 %v2887, 7
        %v2889 = vsub.s32 %v2886, %v2888
        %v2890 = vrot.slane %v2882, %v2889
        %v2892 = vunpack.c.l.s4 1935823168
        %v2893 = vunpack.c.0.s8 %v2892
        %v2894 = vlaneseq
        %v2895 = vshrl.u32 %v2894, 7
        %v2896 = vsub.s32 %v2893, %v2895
        %v2897 = vrot.slane %v2883, %v2896
        %v2898 = vcombine.low %v2890, %v2897
        %v2900 = vunpack.c.l.s4 1935823168
        %v2901 = vunpack.c.0.s8 %v2900
        %v2902 = vlaneseq
        %v2903 = vshrl.u32 %v2902, 7
        %v2904 = vsub.s32 %v2901, %v2903
        %v2905 = vrot.slane %v2898, %v2904
        %v2906 = vcombine.low %v2304, %v2320
        %v2907 = vcombine.low %v2312, %v2329
        %v2909 = vunpack.c.l.s4 1935823168
        %v2910 = vunpack.c.0.s8 %v2909
        %v2911 = vlaneseq
        %v2912 = vshrl.u32 %v2911, 7
        %v2913 = vsub.s32 %v2910, %v2912
        %v2914 = vrot.slane %v2906, %v2913
        %v2916 = vunpack.c.l.s4 1935823168
        %v2917 = vunpack.c.0.s8 %v2916
        %v2918 = vlaneseq
        %v2919 = vshrl.u32 %v2918, 7
        %v2920 = vsub.s32 %v2917, %v2919
        %v2921 = vrot.slane %v2907, %v2920
        %v2922 = vcombine.low %v2914, %v2921
        %v2924 = vunpack.c.l.s4 1935823168
        %v2925 = vunpack.c.0.s8 %v2924
        %v2926 = vlaneseq
        %v2927 = vshrl.u32 %v2926, 7
        %v2928 = vsub.s32 %v2925, %v2927
        %v2929 = vrot.slane %v2922, %v2928
        %v2930 = vcombine.low %v2337, %v2353
        %v2931 = vcombine.low %v2345, %v2361
        %v2933 = vunpack.c.l.s4 1935823168
        %v2934 = vunpack.c.0.s8 %v2933
        %v2935 = vlaneseq
        %v2936 = vshrl.u32 %v2935, 7
        %v2937 = vsub.s32 %v2934, %v2936
        %v2938 = vrot.slane %v2930, %v2937
        %v2940 = vunpack.c.l.s4 1935823168
        %v2941 = vunpack.c.0.s8 %v2940
        %v2942 = vlaneseq
        %v2943 = vshrl.u32 %v2942, 7
        %v2944 = vsub.s32 %v2941, %v2943
        %v2945 = vrot.slane %v2931, %v2944
        %v2946 = vcombine.low %v2938, %v2945
        %v2948 = vunpack.c.l.s4 1935823168
        %v2949 = vunpack.c.0.s8 %v2948
        %v2950 = vlaneseq
        %v2951 = vshrl.u32 %v2950, 7
        %v2952 = vsub.s32 %v2949, %v2951
        %v2953 = vrot.slane %v2946, %v2952
        %v2955 = vunpack.c.l.s4 1935823168
        %v2956 = vunpack.c.0.s8 %v2955
        %v2957 = vlaneseq
        %v2958 = vshrl.u32 %v2957, 7
        %v2959 = vsub.s32 %v2956, %v2958
        %v2960 = vrot.slane %v2369, %v2959
        %v2962 = vunpack.c.l.s4 1935823168
        %v2963 = vunpack.c.0.s8 %v2962
        %v2964 = vlaneseq
        %v2965 = vshrl.u32 %v2964, 7
        %v2966 = vsub.s32 %v2963, %v2965
        %v2967 = vrot.slane %v2377, %v2966
        %v2968 = vcombine.low %v2960, %v2967
        %v2970 = vunpack.c.l.s4 1935823168
        %v2971 = vunpack.c.0.s8 %v2970
        %v2972 = vlaneseq
        %v2973 = vshrl.u32 %v2972, 7
        %v2974 = vsub.s32 %v2971, %v2973
        %v2975 = vrot.slane %v2968, %v2974
        %2976 = vrot.lane.b32.xlu0 %v2401, 4
        %v2977 = vpop.permute.xlu0 %2976
        %2978 = vrot.lane.b32.xlu0 %v2425, 4
        %v2979 = vpop.permute.xlu0 %2978
        %2980 = vrot.lane.b32.xlu0 %v2449, 4
        %v2981 = vpop.permute.xlu0 %2980
        %2982 = vrot.lane.b32.xlu0 %v2473, 4
        %v2983 = vpop.permute.xlu0 %2982
        %2984 = vrot.lane.b32.xlu0 %v2497, 4
        %v2985 = vpop.permute.xlu0 %2984
        %2986 = vrot.lane.b32.xlu0 %v2521, 4
        %v2987 = vpop.permute.xlu0 %2986
        %2988 = vrot.lane.b32.xlu0 %v2545, 4
        %v2989 = vpop.permute.xlu0 %2988
        %2990 = vrot.lane.b32.xlu0 %v2569, 4
        %v2991 = vpop.permute.xlu0 %2990
        %2992 = vrot.lane.b32.xlu0 %v2593, 4
        %v2993 = vpop.permute.xlu0 %2992
        %2994 = vrot.lane.b32.xlu0 %v2617, 4
        %v2995 = vpop.permute.xlu0 %2994
        %2996 = vrot.lane.b32.xlu0 %v2641, 4
        %v2997 = vpop.permute.xlu0 %2996
        %2998 = vrot.lane.b32.xlu0 %v2665, 4
        %v2999 = vpop.permute.xlu0 %2998
        %3000 = vrot.lane.b32.xlu0 %v2689, 4
        %v3001 = vpop.permute.xlu0 %3000
        %3002 = vrot.lane.b32.xlu0 %v2713, 4
        %v3003 = vpop.permute.xlu0 %3002
        %3004 = vrot.lane.b32.xlu0 %v2737, 4
        %v3005 = vpop.permute.xlu0 %3004
        %3006 = vrot.lane.b32.xlu0 %v2761, 4
        %v3007 = vpop.permute.xlu0 %3006
        %3008 = vrot.lane.b32.xlu0 %v2785, 4
        %v3009 = vpop.permute.xlu0 %3008
        %3010 = vrot.lane.b32.xlu0 %v2809, 4
        %v3011 = vpop.permute.xlu0 %3010
        %3012 = vrot.lane.b32.xlu0 %v2833, 4
        %v3013 = vpop.permute.xlu0 %3012
        %3014 = vrot.lane.b32.xlu0 %v2857, 4
        %v3015 = vpop.permute.xlu0 %3014
        %3016 = vrot.lane.b32.xlu0 %v2881, 4
        %v3017 = vpop.permute.xlu0 %3016
        %3018 = vrot.lane.b32.xlu0 %v2905, 4
        %v3019 = vpop.permute.xlu0 %3018
        %3020 = vrot.lane.b32.xlu0 %v2929, 4
        %v3021 = vpop.permute.xlu0 %3020
        %3022 = vrot.lane.b32.xlu0 %v2953, 4
        %v3023 = vpop.permute.xlu0 %3022
        %3024 = vrot.lane.b32.xlu0 %v2975, 4
        %v3025 = vpop.permute.xlu0 %3024
        %vm3051 = vcmask 60448
        %3052 = vst.msk [vmem:[#allocation2] sm:$0xf] %vm3051, %v2977
        %3053 = vst.msk [vmem:[#allocation2 + $0x4] sm:$0xf] %vm3051, %v2979
        %3054 = vst.msk [vmem:[#allocation2 + $0x8] sm:$0xf] %vm3051, %v2981
        %3055 = vst.msk [vmem:[#allocation2 + $0xc] sm:$0xf] %vm3051, %v2983
        %3056 = vst.msk [vmem:[#allocation2 + $0x10] sm:$0xf] %vm3051, %v2985
        %3057 = vst.msk [vmem:[#allocation2 + $0x14] sm:$0xf] %vm3051, %v2987
        %3058 = vst.msk [vmem:[#allocation2 + $0x18] sm:$0xf] %vm3051, %v2989
        %3059 = vst.msk [vmem:[#allocation2 + $0x1c] sm:$0xf] %vm3051, %v2991
        %3060 = vst.msk [vmem:[#allocation2 + $0x20] sm:$0xf] %vm3051, %v2993
        %3061 = vst.msk [vmem:[#allocation2 + $0x24] sm:$0xf] %vm3051, %v2995
        %3062 = vst.msk [vmem:[#allocation2 + $0x28] sm:$0xf] %vm3051, %v2997
        %3063 = vst.msk [vmem:[#allocation2 + $0x2c] sm:$0xf] %vm3051, %v2999
        %3064 = vst.msk [vmem:[#allocation2 + $0x30] sm:$0xf] %vm3051, %v3001
        %3065 = vst.msk [vmem:[#allocation2 + $0x34] sm:$0xf] %vm3051, %v3003
        %3066 = vst.msk [vmem:[#allocation2 + $0x38] sm:$0xf] %vm3051, %v3005
        %3067 = vst.msk [vmem:[#allocation2 + $0x3c] sm:$0xf] %vm3051, %v3007
        %3068 = vst.msk [vmem:[#allocation2 + $0x40] sm:$0xf] %vm3051, %v3009
        %3069 = vst.msk [vmem:[#allocation2 + $0x44] sm:$0xf] %vm3051, %v3011
        %3070 = vst.msk [vmem:[#allocation2 + $0x48] sm:$0xf] %vm3051, %v3013
        %3071 = vst.msk [vmem:[#allocation2 + $0x4c] sm:$0xf] %vm3051, %v3015
        %3072 = vst.msk [vmem:[#allocation2 + $0x50] sm:$0xf] %vm3051, %v3017
        %3073 = vst.msk [vmem:[#allocation2 + $0x54] sm:$0xf] %vm3051, %v3019
        %3074 = vst.msk [vmem:[#allocation2 + $0x58] sm:$0xf] %vm3051, %v3021
        %3075 = vst.msk [vmem:[#allocation2 + $0x5c] sm:$0xf] %vm3051, %v3023
        %vm3076 = vcmask 58400
        %3077 = vst.msk [vmem:[#allocation2 + $0x60] sm:$0x3] %vm3076, %v3025
        %v3078 = vcombine.low %v265, %v281
        %v3080 = vunpack.c.l.s4 1935823168
        %v3081 = vunpack.c.0.s8 %v3080
        %v3082 = vlaneseq
        %v3083 = vshrl.u32 %v3082, 7
        %v3084 = vsub.s32 %v3081, %v3083
        %v3085 = vrot.slane %v3078, %v3084
        %v3086 = vcombine.low %v916, %v3085
        %v3088 = vunpack.c.l.s4 1935823168
        %v3089 = vunpack.c.0.s8 %v3088
        %v3090 = vlaneseq
        %v3091 = vshrl.u32 %v3090, 7
        %v3092 = vsub.s32 %v3089, %v3091
        %v3093 = vrot.slane %v3086, %v3092
        %v3094 = vcombine.low %v288, %v1551
        %v3095 = vcombine.low %v289, %v311
        %v3097 = vunpack.c.l.s4 1935823168
        %v3098 = vunpack.c.0.s8 %v3097
        %v3099 = vlaneseq
        %v3100 = vshrl.u32 %v3099, 7
        %v3101 = vsub.s32 %v3098, %v3100
        %v3102 = vrot.slane %v3094, %v3101
        %v3104 = vunpack.c.l.s4 1935823168
        %v3105 = vunpack.c.0.s8 %v3104
        %v3106 = vlaneseq
        %v3107 = vshrl.u32 %v3106, 7
        %v3108 = vsub.s32 %v3105, %v3107
        %v3109 = vrot.slane %v3095, %v3108
        %v3110 = vcombine.low %v3102, %v3109
        %v3112 = vunpack.c.l.s4 1935823168
        %v3113 = vunpack.c.0.s8 %v3112
        %v3114 = vlaneseq
        %v3115 = vshrl.u32 %v3114, 7
        %v3116 = vsub.s32 %v3113, %v3115
        %v3117 = vrot.slane %v3110, %v3116
        %v3118 = vcombine.low %v313, %v335
        %v3120 = vunpack.c.l.s4 1935823168
        %v3121 = vunpack.c.0.s8 %v3120
        %v3122 = vlaneseq
        %v3123 = vshrl.u32 %v3122, 7
        %v3124 = vsub.s32 %v3121, %v3123
        %v3125 = vrot.slane %v3118, %v3124
        %v3126 = vcombine.low %v964, %v3125
        %v3128 = vunpack.c.l.s4 1935823168
        %v3129 = vunpack.c.0.s8 %v3128
        %v3130 = vlaneseq
        %v3131 = vshrl.u32 %v3130, 7
        %v3132 = vsub.s32 %v3129, %v3131
        %v3133 = vrot.slane %v3126, %v3132
        %v3134 = vcombine.low %v1552, %v359
        %v3136 = vunpack.c.l.s4 1935823168
        %v3137 = vunpack.c.0.s8 %v3136
        %v3138 = vlaneseq
        %v3139 = vshrl.u32 %v3138, 7
        %v3140 = vsub.s32 %v3137, %v3139
        %v3141 = vrot.slane %v3134, %v3140
        %v3142 = vcombine.low %v988, %v3141
        %v3144 = vunpack.c.l.s4 1935823168
        %v3145 = vunpack.c.0.s8 %v3144
        %v3146 = vlaneseq
        %v3147 = vshrl.u32 %v3146, 7
        %v3148 = vsub.s32 %v3145, %v3147
        %v3149 = vrot.slane %v3142, %v3148
        %v3150 = vcombine.low %v375, %v383
        %v3152 = vunpack.c.l.s4 1935823168
        %v3153 = vunpack.c.0.s8 %v3152
        %v3154 = vlaneseq
        %v3155 = vshrl.u32 %v3154, 7
        %v3156 = vsub.s32 %v3153, %v3155
        %v3157 = vrot.slane %v3150, %v3156
        %v3158 = vcombine.low %v1012, %v3157
        %v3160 = vunpack.c.l.s4 1935823168
        %v3161 = vunpack.c.0.s8 %v3160
        %v3162 = vlaneseq
        %v3163 = vshrl.u32 %v3162, 7
        %v3164 = vsub.s32 %v3161, %v3163
        %v3165 = vrot.slane %v3158, %v3164
        %v3166 = vcombine.low %v1553, %v406
        %v3167 = vcombine.low %v405, %v407
        %v3169 = vunpack.c.l.s4 1935823168
        %v3170 = vunpack.c.0.s8 %v3169
        %v3171 = vlaneseq
        %v3172 = vshrl.u32 %v3171, 7
        %v3173 = vsub.s32 %v3170, %v3172
        %v3174 = vrot.slane %v3166, %v3173
        %v3176 = vunpack.c.l.s4 1935823168
        %v3177 = vunpack.c.0.s8 %v3176
        %v3178 = vlaneseq
        %v3179 = vshrl.u32 %v3178, 7
        %v3180 = vsub.s32 %v3177, %v3179
        %v3181 = vrot.slane %v3167, %v3180
        %v3182 = vcombine.low %v3174, %v3181
        %v3184 = vunpack.c.l.s4 1935823168
        %v3185 = vunpack.c.0.s8 %v3184
        %v3186 = vlaneseq
        %v3187 = vshrl.u32 %v3186, 7
        %v3188 = vsub.s32 %v3185, %v3187
        %v3189 = vrot.slane %v3182, %v3188
        %v3190 = vcombine.low %v429, %v1554
        %v3192 = vunpack.c.l.s4 1935823168
        %v3193 = vunpack.c.0.s8 %v3192
        %v3194 = vlaneseq
        %v3195 = vshrl.u32 %v3194, 7
        %v3196 = vsub.s32 %v3193, %v3195
        %v3197 = vrot.slane %v3190, %v3196
        %v3198 = vcombine.low %v1060, %v3197
        %v3200 = vunpack.c.l.s4 1935823168
        %v3201 = vunpack.c.0.s8 %v3200
        %v3202 = vlaneseq
        %v3203 = vshrl.u32 %v3202, 7
        %v3204 = vsub.s32 %v3201, %v3203
        %v3205 = vrot.slane %v3198, %v3204
        %v3206 = vcombine.low %v453, %v469
        %v3208 = vunpack.c.l.s4 1935823168
        %v3209 = vunpack.c.0.s8 %v3208
        %v3210 = vlaneseq
        %v3211 = vshrl.u32 %v3210, 7
        %v3212 = vsub.s32 %v3209, %v3211
        %v3213 = vrot.slane %v3206, %v3212
        %v3214 = vcombine.low %v1084, %v3213
        %v3216 = vunpack.c.l.s4 1935823168
        %v3217 = vunpack.c.0.s8 %v3216
        %v3218 = vlaneseq
        %v3219 = vshrl.u32 %v3218, 7
        %v3220 = vsub.s32 %v3217, %v3219
        %v3221 = vrot.slane %v3214, %v3220
        %v3222 = vcombine.low %v476, %v1555
        %v3223 = vcombine.low %v477, %v499
        %v3225 = vunpack.c.l.s4 1935823168
        %v3226 = vunpack.c.0.s8 %v3225
        %v3227 = vlaneseq
        %v3228 = vshrl.u32 %v3227, 7
        %v3229 = vsub.s32 %v3226, %v3228
        %v3230 = vrot.slane %v3222, %v3229
        %v3232 = vunpack.c.l.s4 1935823168
        %v3233 = vunpack.c.0.s8 %v3232
        %v3234 = vlaneseq
        %v3235 = vshrl.u32 %v3234, 7
        %v3236 = vsub.s32 %v3233, %v3235
        %v3237 = vrot.slane %v3223, %v3236
        %v3238 = vcombine.low %v3230, %v3237
        %v3240 = vunpack.c.l.s4 1935823168
        %v3241 = vunpack.c.0.s8 %v3240
        %v3242 = vlaneseq
        %v3243 = vshrl.u32 %v3242, 7
        %v3244 = vsub.s32 %v3241, %v3243
        %v3245 = vrot.slane %v3238, %v3244
        %v3246 = vcombine.low %v501, %v523
        %v3248 = vunpack.c.l.s4 1935823168
        %v3249 = vunpack.c.0.s8 %v3248
        %v3250 = vlaneseq
        %v3251 = vshrl.u32 %v3250, 7
        %v3252 = vsub.s32 %v3249, %v3251
        %v3253 = vrot.slane %v3246, %v3252
        %v3254 = vcombine.low %v1132, %v3253
        %v3256 = vunpack.c.l.s4 1935823168
        %v3257 = vunpack.c.0.s8 %v3256
        %v3258 = vlaneseq
        %v3259 = vshrl.u32 %v3258, 7
        %v3260 = vsub.s32 %v3257, %v3259
        %v3261 = vrot.slane %v3254, %v3260
        %v3262 = vcombine.low %v1556, %v547
        %v3264 = vunpack.c.l.s4 1935823168
        %v3265 = vunpack.c.0.s8 %v3264
        %v3266 = vlaneseq
        %v3267 = vshrl.u32 %v3266, 7
        %v3268 = vsub.s32 %v3265, %v3267
        %v3269 = vrot.slane %v3262, %v3268
        %v3270 = vcombine.low %v1156, %v3269
        %v3272 = vunpack.c.l.s4 1935823168
        %v3273 = vunpack.c.0.s8 %v3272
        %v3274 = vlaneseq
        %v3275 = vshrl.u32 %v3274, 7
        %v3276 = vsub.s32 %v3273, %v3275
        %v3277 = vrot.slane %v3270, %v3276
        %v3278 = vcombine.low %v563, %v571
        %v3280 = vunpack.c.l.s4 1935823168
        %v3281 = vunpack.c.0.s8 %v3280
        %v3282 = vlaneseq
        %v3283 = vshrl.u32 %v3282, 7
        %v3284 = vsub.s32 %v3281, %v3283
        %v3285 = vrot.slane %v3278, %v3284
        %v3286 = vcombine.low %v1180, %v3285
        %v3288 = vunpack.c.l.s4 1935823168
        %v3289 = vunpack.c.0.s8 %v3288
        %v3290 = vlaneseq
        %v3291 = vshrl.u32 %v3290, 7
        %v3292 = vsub.s32 %v3289, %v3291
        %v3293 = vrot.slane %v3286, %v3292
        %v3294 = vcombine.low %v1557, %v594
        %v3295 = vcombine.low %v593, %v595
        %v3297 = vunpack.c.l.s4 1935823168
        %v3298 = vunpack.c.0.s8 %v3297
        %v3299 = vlaneseq
        %v3300 = vshrl.u32 %v3299, 7
        %v3301 = vsub.s32 %v3298, %v3300
        %v3302 = vrot.slane %v3294, %v3301
        %v3304 = vunpack.c.l.s4 1935823168
        %v3305 = vunpack.c.0.s8 %v3304
        %v3306 = vlaneseq
        %v3307 = vshrl.u32 %v3306, 7
        %v3308 = vsub.s32 %v3305, %v3307
        %v3309 = vrot.slane %v3295, %v3308
        %v3310 = vcombine.low %v3302, %v3309
        %v3312 = vunpack.c.l.s4 1935823168
        %v3313 = vunpack.c.0.s8 %v3312
        %v3314 = vlaneseq
        %v3315 = vshrl.u32 %v3314, 7
        %v3316 = vsub.s32 %v3313, %v3315
        %v3317 = vrot.slane %v3310, %v3316
        %v3318 = vcombine.low %v617, %v1558
        %v3320 = vunpack.c.l.s4 1935823168
        %v3321 = vunpack.c.0.s8 %v3320
        %v3322 = vlaneseq
        %v3323 = vshrl.u32 %v3322, 7
        %v3324 = vsub.s32 %v3321, %v3323
        %v3325 = vrot.slane %v3318, %v3324
        %v3326 = vcombine.low %v1228, %v3325
        %v3328 = vunpack.c.l.s4 1935823168
        %v3329 = vunpack.c.0.s8 %v3328
        %v3330 = vlaneseq
        %v3331 = vshrl.u32 %v3330, 7
        %v3332 = vsub.s32 %v3329, %v3331
        %v3333 = vrot.slane %v3326, %v3332
        %v3334 = vcombine.low %v641, %v657
        %v3336 = vunpack.c.l.s4 1935823168
        %v3337 = vunpack.c.0.s8 %v3336
        %v3338 = vlaneseq
        %v3339 = vshrl.u32 %v3338, 7
        %v3340 = vsub.s32 %v3337, %v3339
        %v3341 = vrot.slane %v3334, %v3340
        %v3342 = vcombine.low %v1252, %v3341
        %v3344 = vunpack.c.l.s4 1935823168
        %v3345 = vunpack.c.0.s8 %v3344
        %v3346 = vlaneseq
        %v3347 = vshrl.u32 %v3346, 7
        %v3348 = vsub.s32 %v3345, %v3347
        %v3349 = vrot.slane %v3342, %v3348
        %v3350 = vcombine.low %v664, %v1559
        %v3351 = vcombine.low %v665, %v687
        %v3353 = vunpack.c.l.s4 1935823168
        %v3354 = vunpack.c.0.s8 %v3353
        %v3355 = vlaneseq
        %v3356 = vshrl.u32 %v3355, 7
        %v3357 = vsub.s32 %v3354, %v3356
        %v3358 = vrot.slane %v3350, %v3357
        %v3360 = vunpack.c.l.s4 1935823168
        %v3361 = vunpack.c.0.s8 %v3360
        %v3362 = vlaneseq
        %v3363 = vshrl.u32 %v3362, 7
        %v3364 = vsub.s32 %v3361, %v3363
        %v3365 = vrot.slane %v3351, %v3364
        %v3366 = vcombine.low %v3358, %v3365
        %v3368 = vunpack.c.l.s4 1935823168
        %v3369 = vunpack.c.0.s8 %v3368
        %v3370 = vlaneseq
        %v3371 = vshrl.u32 %v3370, 7
        %v3372 = vsub.s32 %v3369, %v3371
        %v3373 = vrot.slane %v3366, %v3372
        %v3374 = vcombine.low %v689, %v711
        %v3376 = vunpack.c.l.s4 1935823168
        %v3377 = vunpack.c.0.s8 %v3376
        %v3378 = vlaneseq
        %v3379 = vshrl.u32 %v3378, 7
        %v3380 = vsub.s32 %v3377, %v3379
        %v3381 = vrot.slane %v3374, %v3380
        %v3382 = vcombine.low %v1300, %v3381
        %v3384 = vunpack.c.l.s4 1935823168
        %v3385 = vunpack.c.0.s8 %v3384
        %v3386 = vlaneseq
        %v3387 = vshrl.u32 %v3386, 7
        %v3388 = vsub.s32 %v3385, %v3387
        %v3389 = vrot.slane %v3382, %v3388
        %v3390 = vcombine.low %v1560, %v735
        %v3392 = vunpack.c.l.s4 1935823168
        %v3393 = vunpack.c.0.s8 %v3392
        %v3394 = vlaneseq
        %v3395 = vshrl.u32 %v3394, 7
        %v3396 = vsub.s32 %v3393, %v3395
        %v3397 = vrot.slane %v3390, %v3396
        %v3398 = vcombine.low %v1324, %v3397
        %v3400 = vunpack.c.l.s4 1935823168
        %v3401 = vunpack.c.0.s8 %v3400
        %v3402 = vlaneseq
        %v3403 = vshrl.u32 %v3402, 7
        %v3404 = vsub.s32 %v3401, %v3403
        %v3405 = vrot.slane %v3398, %v3404
        %v3406 = vcombine.low %v751, %v759
        %v3408 = vunpack.c.l.s4 1935823168
        %v3409 = vunpack.c.0.s8 %v3408
        %v3410 = vlaneseq
        %v3411 = vshrl.u32 %v3410, 7
        %v3412 = vsub.s32 %v3409, %v3411
        %v3413 = vrot.slane %v3406, %v3412
        %v3414 = vcombine.low %v1348, %v3413
        %v3416 = vunpack.c.l.s4 1935823168
        %v3417 = vunpack.c.0.s8 %v3416
        %v3418 = vlaneseq
        %v3419 = vshrl.u32 %v3418, 7
        %v3420 = vsub.s32 %v3417, %v3419
        %v3421 = vrot.slane %v3414, %v3420
        %v3422 = vcombine.low %v1561, %v782
        %v3423 = vcombine.low %v781, %v783
        %v3425 = vunpack.c.l.s4 1935823168
        %v3426 = vunpack.c.0.s8 %v3425
        %v3427 = vlaneseq
        %v3428 = vshrl.u32 %v3427, 7
        %v3429 = vsub.s32 %v3426, %v3428
        %v3430 = vrot.slane %v3422, %v3429
        %v3432 = vunpack.c.l.s4 1935823168
        %v3433 = vunpack.c.0.s8 %v3432
        %v3434 = vlaneseq
        %v3435 = vshrl.u32 %v3434, 7
        %v3436 = vsub.s32 %v3433, %v3435
        %v3437 = vrot.slane %v3423, %v3436
        %v3438 = vcombine.low %v3430, %v3437
        %v3440 = vunpack.c.l.s4 1935823168
        %v3441 = vunpack.c.0.s8 %v3440
        %v3442 = vlaneseq
        %v3443 = vshrl.u32 %v3442, 7
        %v3444 = vsub.s32 %v3441, %v3443
        %v3445 = vrot.slane %v3438, %v3444
        %v3446 = vcombine.low %v805, %v1562
        %v3448 = vunpack.c.l.s4 1935823168
        %v3449 = vunpack.c.0.s8 %v3448
        %v3450 = vlaneseq
        %v3451 = vshrl.u32 %v3450, 7
        %v3452 = vsub.s32 %v3449, %v3451
        %v3453 = vrot.slane %v3446, %v3452
        %v3454 = vcombine.low %v1396, %v3453
        %v3456 = vunpack.c.l.s4 1935823168
        %v3457 = vunpack.c.0.s8 %v3456
        %v3458 = vlaneseq
        %v3459 = vshrl.u32 %v3458, 7
        %v3460 = vsub.s32 %v3457, %v3459
        %v3461 = vrot.slane %v3454, %v3460
        %v3462 = vcombine.low %v829, %v845
        %v3464 = vunpack.c.l.s4 1935823168
        %v3465 = vunpack.c.0.s8 %v3464
        %v3466 = vlaneseq
        %v3467 = vshrl.u32 %v3466, 7
        %v3468 = vsub.s32 %v3465, %v3467
        %v3469 = vrot.slane %v3462, %v3468
        %v3470 = vcombine.low %v1420, %v3469
        %v3472 = vunpack.c.l.s4 1935823168
        %v3473 = vunpack.c.0.s8 %v3472
        %v3474 = vlaneseq
        %v3475 = vshrl.u32 %v3474, 7
        %v3476 = vsub.s32 %v3473, %v3475
        %v3477 = vrot.slane %v3470, %v3476
        %v3478 = vcombine.low %v852, %v1563
        %v3479 = vcombine.low %v853, %v875
        %v3481 = vunpack.c.l.s4 1935823168
        %v3482 = vunpack.c.0.s8 %v3481
        %v3483 = vlaneseq
        %v3484 = vshrl.u32 %v3483, 7
        %v3485 = vsub.s32 %v3482, %v3484
        %v3486 = vrot.slane %v3478, %v3485
        %v3488 = vunpack.c.l.s4 1935823168
        %v3489 = vunpack.c.0.s8 %v3488
        %v3490 = vlaneseq
        %v3491 = vshrl.u32 %v3490, 7
        %v3492 = vsub.s32 %v3489, %v3491
        %v3493 = vrot.slane %v3479, %v3492
        %v3494 = vcombine.low %v3486, %v3493
        %v3496 = vunpack.c.l.s4 1935823168
        %v3497 = vunpack.c.0.s8 %v3496
        %v3498 = vlaneseq
        %v3499 = vshrl.u32 %v3498, 7
        %v3500 = vsub.s32 %v3497, %v3499
        %v3501 = vrot.slane %v3494, %v3500
        %v3502 = vcombine.low %v877, %v899
        %v3504 = vunpack.c.l.s4 1935823168
        %v3505 = vunpack.c.0.s8 %v3504
        %v3506 = vlaneseq
        %v3507 = vshrl.u32 %v3506, 7
        %v3508 = vsub.s32 %v3505, %v3507
        %v3509 = vrot.slane %v3502, %v3508
        %v3510 = vcombine.low %v1468, %v3509
        %v3512 = vunpack.c.l.s4 1935823168
        %v3513 = vunpack.c.0.s8 %v3512
        %v3514 = vlaneseq
        %v3515 = vshrl.u32 %v3514, 7
        %v3516 = vsub.s32 %v3513, %v3515
        %v3517 = vrot.slane %v3510, %v3516
        %v3519 = vunpack.c.l.s4 1935823168
        %v3520 = vunpack.c.0.s8 %v3519
        %v3521 = vlaneseq
        %v3522 = vshrl.u32 %v3521, 7
        %v3523 = vsub.s32 %v3520, %v3522
        %v3524 = vrot.slane %v1564, %v3523
        %v3525 = vcombine.low %v1490, %v3524
        %v3527 = vunpack.c.l.s4 1935823168
        %v3528 = vunpack.c.0.s8 %v3527
        %v3529 = vlaneseq
        %v3530 = vshrl.u32 %v3529, 7
        %v3531 = vsub.s32 %v3528, %v3530
        %v3532 = vrot.slane %v3525, %v3531
        %3533 = vrot.lane.b32.xlu0 %v3093, 8
        %v3534 = vpop.permute.xlu0 %3533
        %3535 = vrot.lane.b32.xlu0 %v3117, 8
        %v3536 = vpop.permute.xlu0 %3535
        %3537 = vrot.lane.b32.xlu0 %v3133, 8
        %v3538 = vpop.permute.xlu0 %3537
        %3539 = vrot.lane.b32.xlu0 %v3149, 8
        %v3540 = vpop.permute.xlu0 %3539
        %3541 = vrot.lane.b32.xlu0 %v3165, 8
        %v3542 = vpop.permute.xlu0 %3541
        %3543 = vrot.lane.b32.xlu0 %v3189, 8
        %v3544 = vpop.permute.xlu0 %3543
        %3545 = vrot.lane.b32.xlu0 %v3205, 8
        %v3546 = vpop.permute.xlu0 %3545
        %3547 = vrot.lane.b32.xlu0 %v3221, 8
        %v3548 = vpop.permute.xlu0 %3547
        %3549 = vrot.lane.b32.xlu0 %v3245, 8
        %v3550 = vpop.permute.xlu0 %3549
        %3551 = vrot.lane.b32.xlu0 %v3261, 8
        %v3552 = vpop.permute.xlu0 %3551
        %3553 = vrot.lane.b32.xlu0 %v3277, 8
        %v3554 = vpop.permute.xlu0 %3553
        %3555 = vrot.lane.b32.xlu0 %v3293, 8
        %v3556 = vpop.permute.xlu0 %3555
        %3557 = vrot.lane.b32.xlu0 %v3317, 8
        %v3558 = vpop.permute.xlu0 %3557
        %3559 = vrot.lane.b32.xlu0 %v3333, 8
        %v3560 = vpop.permute.xlu0 %3559
        %3561 = vrot.lane.b32.xlu0 %v3349, 8
        %v3562 = vpop.permute.xlu0 %3561
        %3563 = vrot.lane.b32.xlu0 %v3373, 8
        %v3564 = vpop.permute.xlu0 %3563
        %3565 = vrot.lane.b32.xlu0 %v3389, 8
        %v3566 = vpop.permute.xlu0 %3565
        %3567 = vrot.lane.b32.xlu0 %v3405, 8
        %v3568 = vpop.permute.xlu0 %3567
        %3569 = vrot.lane.b32.xlu0 %v3421, 8
        %v3570 = vpop.permute.xlu0 %3569
        %3571 = vrot.lane.b32.xlu0 %v3445, 8
        %v3572 = vpop.permute.xlu0 %3571
        %3573 = vrot.lane.b32.xlu0 %v3461, 8
        %v3574 = vpop.permute.xlu0 %3573
        %3575 = vrot.lane.b32.xlu0 %v3477, 8
        %v3576 = vpop.permute.xlu0 %3575
        %3577 = vrot.lane.b32.xlu0 %v3501, 8
        %v3578 = vpop.permute.xlu0 %3577
        %3579 = vrot.lane.b32.xlu0 %v3517, 8
        %v3580 = vpop.permute.xlu0 %3579
        %3581 = vrot.lane.b32.xlu0 %v3532, 8
        %v3582 = vpop.permute.xlu0 %3581
        %vm3608 = vcmask 93248
        %3609 = vst.msk [vmem:[#allocation2] sm:$0xf] %vm3608, %v3534
        %3610 = vst.msk [vmem:[#allocation2 + $0x4] sm:$0xf] %vm3608, %v3536
        %3611 = vst.msk [vmem:[#allocation2 + $0x8] sm:$0xf] %vm3608, %v3538
        %3612 = vst.msk [vmem:[#allocation2 + $0xc] sm:$0xf] %vm3608, %v3540
        %3613 = vst.msk [vmem:[#allocation2 + $0x10] sm:$0xf] %vm3608, %v3542
        %3614 = vst.msk [vmem:[#allocation2 + $0x14] sm:$0xf] %vm3608, %v3544
        %3615 = vst.msk [vmem:[#allocation2 + $0x18] sm:$0xf] %vm3608, %v3546
        %3616 = vst.msk [vmem:[#allocation2 + $0x1c] sm:$0xf] %vm3608, %v3548
        %3617 = vst.msk [vmem:[#allocation2 + $0x20] sm:$0xf] %vm3608, %v3550
        %3618 = vst.msk [vmem:[#allocation2 + $0x24] sm:$0xf] %vm3608, %v3552
        %3619 = vst.msk [vmem:[#allocation2 + $0x28] sm:$0xf] %vm3608, %v3554
        %3620 = vst.msk [vmem:[#allocation2 + $0x2c] sm:$0xf] %vm3608, %v3556
        %3621 = vst.msk [vmem:[#allocation2 + $0x30] sm:$0xf] %vm3608, %v3558
        %3622 = vst.msk [vmem:[#allocation2 + $0x34] sm:$0xf] %vm3608, %v3560
        %3623 = vst.msk [vmem:[#allocation2 + $0x38] sm:$0xf] %vm3608, %v3562
        %3624 = vst.msk [vmem:[#allocation2 + $0x3c] sm:$0xf] %vm3608, %v3564
        %3625 = vst.msk [vmem:[#allocation2 + $0x40] sm:$0xf] %vm3608, %v3566
        %3626 = vst.msk [vmem:[#allocation2 + $0x44] sm:$0xf] %vm3608, %v3568
        %3627 = vst.msk [vmem:[#allocation2 + $0x48] sm:$0xf] %vm3608, %v3570
        %3628 = vst.msk [vmem:[#allocation2 + $0x4c] sm:$0xf] %vm3608, %v3572
        %3629 = vst.msk [vmem:[#allocation2 + $0x50] sm:$0xf] %vm3608, %v3574
        %3630 = vst.msk [vmem:[#allocation2 + $0x54] sm:$0xf] %vm3608, %v3576
        %3631 = vst.msk [vmem:[#allocation2 + $0x58] sm:$0xf] %vm3608, %v3578
        %3632 = vst.msk [vmem:[#allocation2 + $0x5c] sm:$0xf] %vm3608, %v3580
        %vm3633 = vcmask 91200
        %3634 = vst.msk [vmem:[#allocation2 + $0x60] sm:$0x3] %vm3633, %v3582
        %v3638 = vunpack.c.l.s4 1966171168
        %v3639 = vunpack.c.0.s8 %v3638
        %v3640 = vlaneseq
        %v3641 = vshrl.u32 %v3640, 7
        %v3642 = vsub.s32 %v3639, %v3641
        %v3643 = vrot.slane %v211, %v3642
        %v3644 = vcombine.high %v3643, %v3643
        %v3646 = vunpack.c.l.s4 1966171168
        %v3647 = vunpack.c.0.s8 %v3646
        %v3648 = vlaneseq
        %v3649 = vshrl.u32 %v3648, 7
        %v3650 = vsub.s32 %v3647, %v3649
        %v3651 = vrot.slane %v3643, %v3650
        %v3653 = vunpack.c.l.s4 1966171168
        %v3654 = vunpack.c.0.s8 %v3653
        %v3655 = vlaneseq
        %v3656 = vshrl.u32 %v3655, 7
        %v3657 = vsub.s32 %v3654, %v3656
        %v3658 = vrot.slane %v3644, %v3657
        %v3659 = vcombine.high %v3651, %v3651
        %v3660 = vcombine.high %v3658, %v3658
        %v3662 = vunpack.c.l.s4 1966171168
        %v3663 = vunpack.c.0.s8 %v3662
        %v3664 = vlaneseq
        %v3665 = vshrl.u32 %v3664, 7
        %v3666 = vsub.s32 %v3663, %v3665
        %v3667 = vrot.slane %v212, %v3666
        %v3668 = vcombine.high %v3667, %v3667
        %v3670 = vunpack.c.l.s4 1966171168
        %v3671 = vunpack.c.0.s8 %v3670
        %v3672 = vlaneseq
        %v3673 = vshrl.u32 %v3672, 7
        %v3674 = vsub.s32 %v3671, %v3673
        %v3675 = vrot.slane %v3667, %v3674
        %v3677 = vunpack.c.l.s4 1966171168
        %v3678 = vunpack.c.0.s8 %v3677
        %v3679 = vlaneseq
        %v3680 = vshrl.u32 %v3679, 7
        %v3681 = vsub.s32 %v3678, %v3680
        %v3682 = vrot.slane %v3668, %v3681
        %v3683 = vcombine.high %v3675, %v3675
        %v3684 = vcombine.low %v304, %v312
        %v3686 = vunpack.c.l.s4 1935823168
        %v3687 = vunpack.c.0.s8 %v3686
        %v3688 = vlaneseq
        %v3689 = vshrl.u32 %v3688, 7
        %v3690 = vsub.s32 %v3687, %v3689
        %v3691 = vrot.slane %v3684, %v3690
        %v3692 = vcombine.low %v3691, %v957
        %v3694 = vunpack.c.l.s4 1935823168
        %v3695 = vunpack.c.0.s8 %v3694
        %v3696 = vlaneseq
        %v3697 = vshrl.u32 %v3696, 7
        %v3698 = vsub.s32 %v3695, %v3697
        %v3699 = vrot.slane %v3692, %v3698
        %v3700 = vcombine.low %v328, %v336
        %v3702 = vunpack.c.l.s4 1935823168
        %v3703 = vunpack.c.0.s8 %v3702
        %v3704 = vlaneseq
        %v3705 = vshrl.u32 %v3704, 7
        %v3706 = vsub.s32 %v3703, %v3705
        %v3707 = vrot.slane %v3700, %v3706
        %v3708 = vcombine.low %v3707, %v981
        %v3710 = vunpack.c.l.s4 1935823168
        %v3711 = vunpack.c.0.s8 %v3710
        %v3712 = vlaneseq
        %v3713 = vshrl.u32 %v3712, 7
        %v3714 = vsub.s32 %v3711, %v3713
        %v3715 = vrot.slane %v3708, %v3714
        %v3716 = vcombine.low %v358, %v360
        %v3718 = vunpack.c.l.s4 1935823168
        %v3719 = vunpack.c.0.s8 %v3718
        %v3720 = vlaneseq
        %v3721 = vshrl.u32 %v3720, 7
        %v3722 = vsub.s32 %v3719, %v3721
        %v3723 = vrot.slane %v3716, %v3722
        %v3724 = vcombine.low %v3723, %v1005
        %v3726 = vunpack.c.l.s4 1935823168
        %v3727 = vunpack.c.0.s8 %v3726
        %v3728 = vlaneseq
        %v3729 = vshrl.u32 %v3728, 7
        %v3730 = vsub.s32 %v3727, %v3729
        %v3731 = vrot.slane %v3724, %v3730
        %v3732 = vcombine.low %v382, %v398
        %v3734 = vunpack.c.l.s4 1935823168
        %v3735 = vunpack.c.0.s8 %v3734
        %v3736 = vlaneseq
        %v3737 = vshrl.u32 %v3736, 7
        %v3738 = vsub.s32 %v3735, %v3737
        %v3739 = vrot.slane %v3732, %v3738
        %v3740 = vcombine.low %v3739, %v1029
        %v3742 = vunpack.c.l.s4 1935823168
        %v3743 = vunpack.c.0.s8 %v3742
        %v3744 = vlaneseq
        %v3745 = vshrl.u32 %v3744, 7
        %v3746 = vsub.s32 %v3743, %v3745
        %v3747 = vrot.slane %v3740, %v3746
        %v3748 = vcombine.low %v406, %v422
        %v3750 = vunpack.c.l.s4 1935823168
        %v3751 = vunpack.c.0.s8 %v3750
        %v3752 = vlaneseq
        %v3753 = vshrl.u32 %v3752, 7
        %v3754 = vsub.s32 %v3751, %v3753
        %v3755 = vrot.slane %v3748, %v3754
        %v3756 = vcombine.low %v3755, %v1053
        %v3758 = vunpack.c.l.s4 1935823168
        %v3759 = vunpack.c.0.s8 %v3758
        %v3760 = vlaneseq
        %v3761 = vshrl.u32 %v3760, 7
        %v3762 = vsub.s32 %v3759, %v3761
        %v3763 = vrot.slane %v3756, %v3762
        %v3764 = vcombine.low %v430, %v452
        %v3766 = vunpack.c.l.s4 1935823168
        %v3767 = vunpack.c.0.s8 %v3766
        %v3768 = vlaneseq
        %v3769 = vshrl.u32 %v3768, 7
        %v3770 = vsub.s32 %v3767, %v3769
        %v3771 = vrot.slane %v3764, %v3770
        %v3772 = vcombine.low %v3771, %v1077
        %v3774 = vunpack.c.l.s4 1935823168
        %v3775 = vunpack.c.0.s8 %v3774
        %v3776 = vlaneseq
        %v3777 = vshrl.u32 %v3776, 7
        %v3778 = vsub.s32 %v3775, %v3777
        %v3779 = vrot.slane %v3772, %v3778
        %v3780 = vcombine.low %v454, %v476
        %v3782 = vunpack.c.l.s4 1935823168
        %v3783 = vunpack.c.0.s8 %v3782
        %v3784 = vlaneseq
        %v3785 = vshrl.u32 %v3784, 7
        %v3786 = vsub.s32 %v3783, %v3785
        %v3787 = vrot.slane %v3780, %v3786
        %v3788 = vcombine.low %v3787, %v1101
        %v3790 = vunpack.c.l.s4 1935823168
        %v3791 = vunpack.c.0.s8 %v3790
        %v3792 = vlaneseq
        %v3793 = vshrl.u32 %v3792, 7
        %v3794 = vsub.s32 %v3791, %v3793
        %v3795 = vrot.slane %v3788, %v3794
        %v3796 = vcombine.low %v492, %v500
        %v3798 = vunpack.c.l.s4 1935823168
        %v3799 = vunpack.c.0.s8 %v3798
        %v3800 = vlaneseq
        %v3801 = vshrl.u32 %v3800, 7
        %v3802 = vsub.s32 %v3799, %v3801
        %v3803 = vrot.slane %v3796, %v3802
        %v3804 = vcombine.low %v3803, %v1125
        %v3806 = vunpack.c.l.s4 1935823168
        %v3807 = vunpack.c.0.s8 %v3806
        %v3808 = vlaneseq
        %v3809 = vshrl.u32 %v3808, 7
        %v3810 = vsub.s32 %v3807, %v3809
        %v3811 = vrot.slane %v3804, %v3810
        %v3812 = vcombine.low %v516, %v524
        %v3814 = vunpack.c.l.s4 1935823168
        %v3815 = vunpack.c.0.s8 %v3814
        %v3816 = vlaneseq
        %v3817 = vshrl.u32 %v3816, 7
        %v3818 = vsub.s32 %v3815, %v3817
        %v3819 = vrot.slane %v3812, %v3818
        %v3820 = vcombine.low %v3819, %v1149
        %v3822 = vunpack.c.l.s4 1935823168
        %v3823 = vunpack.c.0.s8 %v3822
        %v3824 = vlaneseq
        %v3825 = vshrl.u32 %v3824, 7
        %v3826 = vsub.s32 %v3823, %v3825
        %v3827 = vrot.slane %v3820, %v3826
        %v3828 = vcombine.low %v546, %v548
        %v3830 = vunpack.c.l.s4 1935823168
        %v3831 = vunpack.c.0.s8 %v3830
        %v3832 = vlaneseq
        %v3833 = vshrl.u32 %v3832, 7
        %v3834 = vsub.s32 %v3831, %v3833
        %v3835 = vrot.slane %v3828, %v3834
        %v3836 = vcombine.low %v3835, %v1173
        %v3838 = vunpack.c.l.s4 1935823168
        %v3839 = vunpack.c.0.s8 %v3838
        %v3840 = vlaneseq
        %v3841 = vshrl.u32 %v3840, 7
        %v3842 = vsub.s32 %v3839, %v3841
        %v3843 = vrot.slane %v3836, %v3842
        %v3844 = vcombine.low %v570, %v586
        %v3846 = vunpack.c.l.s4 1935823168
        %v3847 = vunpack.c.0.s8 %v3846
        %v3848 = vlaneseq
        %v3849 = vshrl.u32 %v3848, 7
        %v3850 = vsub.s32 %v3847, %v3849
        %v3851 = vrot.slane %v3844, %v3850
        %v3852 = vcombine.low %v3851, %v1197
        %v3854 = vunpack.c.l.s4 1935823168
        %v3855 = vunpack.c.0.s8 %v3854
        %v3856 = vlaneseq
        %v3857 = vshrl.u32 %v3856, 7
        %v3858 = vsub.s32 %v3855, %v3857
        %v3859 = vrot.slane %v3852, %v3858
        %v3860 = vcombine.low %v594, %v610
        %v3862 = vunpack.c.l.s4 1935823168
        %v3863 = vunpack.c.0.s8 %v3862
        %v3864 = vlaneseq
        %v3865 = vshrl.u32 %v3864, 7
        %v3866 = vsub.s32 %v3863, %v3865
        %v3867 = vrot.slane %v3860, %v3866
        %v3868 = vcombine.low %v3867, %v1221
        %v3870 = vunpack.c.l.s4 1935823168
        %v3871 = vunpack.c.0.s8 %v3870
        %v3872 = vlaneseq
        %v3873 = vshrl.u32 %v3872, 7
        %v3874 = vsub.s32 %v3871, %v3873
        %v3875 = vrot.slane %v3868, %v3874
        %v3876 = vcombine.low %v618, %v640
        %v3878 = vunpack.c.l.s4 1935823168
        %v3879 = vunpack.c.0.s8 %v3878
        %v3880 = vlaneseq
        %v3881 = vshrl.u32 %v3880, 7
        %v3882 = vsub.s32 %v3879, %v3881
        %v3883 = vrot.slane %v3876, %v3882
        %v3884 = vcombine.low %v3883, %v1245
        %v3886 = vunpack.c.l.s4 1935823168
        %v3887 = vunpack.c.0.s8 %v3886
        %v3888 = vlaneseq
        %v3889 = vshrl.u32 %v3888, 7
        %v3890 = vsub.s32 %v3887, %v3889
        %v3891 = vrot.slane %v3884, %v3890
        %v3892 = vcombine.low %v642, %v664
        %v3894 = vunpack.c.l.s4 1935823168
        %v3895 = vunpack.c.0.s8 %v3894
        %v3896 = vlaneseq
        %v3897 = vshrl.u32 %v3896, 7
        %v3898 = vsub.s32 %v3895, %v3897
        %v3899 = vrot.slane %v3892, %v3898
        %v3900 = vcombine.low %v3899, %v1269
        %v3902 = vunpack.c.l.s4 1935823168
        %v3903 = vunpack.c.0.s8 %v3902
        %v3904 = vlaneseq
        %v3905 = vshrl.u32 %v3904, 7
        %v3906 = vsub.s32 %v3903, %v3905
        %v3907 = vrot.slane %v3900, %v3906
        %v3908 = vcombine.low %v680, %v688
        %v3910 = vunpack.c.l.s4 1935823168
        %v3911 = vunpack.c.0.s8 %v3910
        %v3912 = vlaneseq
        %v3913 = vshrl.u32 %v3912, 7
        %v3914 = vsub.s32 %v3911, %v3913
        %v3915 = vrot.slane %v3908, %v3914
        %v3916 = vcombine.low %v3915, %v1293
        %v3918 = vunpack.c.l.s4 1935823168
        %v3919 = vunpack.c.0.s8 %v3918
        %v3920 = vlaneseq
        %v3921 = vshrl.u32 %v3920, 7
        %v3922 = vsub.s32 %v3919, %v3921
        %v3923 = vrot.slane %v3916, %v3922
        %v3924 = vcombine.low %v704, %v712
        %v3926 = vunpack.c.l.s4 1935823168
        %v3927 = vunpack.c.0.s8 %v3926
        %v3928 = vlaneseq
        %v3929 = vshrl.u32 %v3928, 7
        %v3930 = vsub.s32 %v3927, %v3929
        %v3931 = vrot.slane %v3924, %v3930
        %v3932 = vcombine.low %v3931, %v1317
        %v3934 = vunpack.c.l.s4 1935823168
        %v3935 = vunpack.c.0.s8 %v3934
        %v3936 = vlaneseq
        %v3937 = vshrl.u32 %v3936, 7
        %v3938 = vsub.s32 %v3935, %v3937
        %v3939 = vrot.slane %v3932, %v3938
        %v3940 = vcombine.low %v734, %v736
        %v3942 = vunpack.c.l.s4 1935823168
        %v3943 = vunpack.c.0.s8 %v3942
        %v3944 = vlaneseq
        %v3945 = vshrl.u32 %v3944, 7
        %v3946 = vsub.s32 %v3943, %v3945
        %v3947 = vrot.slane %v3940, %v3946
        %v3948 = vcombine.low %v3947, %v1341
        %v3950 = vunpack.c.l.s4 1935823168
        %v3951 = vunpack.c.0.s8 %v3950
        %v3952 = vlaneseq
        %v3953 = vshrl.u32 %v3952, 7
        %v3954 = vsub.s32 %v3951, %v3953
        %v3955 = vrot.slane %v3948, %v3954
        %v3956 = vcombine.low %v758, %v774
        %v3958 = vunpack.c.l.s4 1935823168
        %v3959 = vunpack.c.0.s8 %v3958
        %v3960 = vlaneseq
        %v3961 = vshrl.u32 %v3960, 7
        %v3962 = vsub.s32 %v3959, %v3961
        %v3963 = vrot.slane %v3956, %v3962
        %v3964 = vcombine.low %v3963, %v1365
        %v3966 = vunpack.c.l.s4 1935823168
        %v3967 = vunpack.c.0.s8 %v3966
        %v3968 = vlaneseq
        %v3969 = vshrl.u32 %v3968, 7
        %v3970 = vsub.s32 %v3967, %v3969
        %v3971 = vrot.slane %v3964, %v3970
        %v3972 = vcombine.low %v782, %v798
        %v3974 = vunpack.c.l.s4 1935823168
        %v3975 = vunpack.c.0.s8 %v3974
        %v3976 = vlaneseq
        %v3977 = vshrl.u32 %v3976, 7
        %v3978 = vsub.s32 %v3975, %v3977
        %v3979 = vrot.slane %v3972, %v3978
        %v3980 = vcombine.low %v3979, %v1389
        %v3982 = vunpack.c.l.s4 1935823168
        %v3983 = vunpack.c.0.s8 %v3982
        %v3984 = vlaneseq
        %v3985 = vshrl.u32 %v3984, 7
        %v3986 = vsub.s32 %v3983, %v3985
        %v3987 = vrot.slane %v3980, %v3986
        %v3988 = vcombine.low %v806, %v828
        %v3990 = vunpack.c.l.s4 1935823168
        %v3991 = vunpack.c.0.s8 %v3990
        %v3992 = vlaneseq
        %v3993 = vshrl.u32 %v3992, 7
        %v3994 = vsub.s32 %v3991, %v3993
        %v3995 = vrot.slane %v3988, %v3994
        %v3996 = vcombine.low %v3995, %v1413
        %v3998 = vunpack.c.l.s4 1935823168
        %v3999 = vunpack.c.0.s8 %v3998
        %v4000 = vlaneseq
        %v4001 = vshrl.u32 %v4000, 7
        %v4002 = vsub.s32 %v3999, %v4001
        %v4003 = vrot.slane %v3996, %v4002
        %v4004 = vcombine.low %v830, %v852
        %v4006 = vunpack.c.l.s4 1935823168
        %v4007 = vunpack.c.0.s8 %v4006
        %v4008 = vlaneseq
        %v4009 = vshrl.u32 %v4008, 7
        %v4010 = vsub.s32 %v4007, %v4009
        %v4011 = vrot.slane %v4004, %v4010
        %v4012 = vcombine.low %v4011, %v1437
        %v4014 = vunpack.c.l.s4 1935823168
        %v4015 = vunpack.c.0.s8 %v4014
        %v4016 = vlaneseq
        %v4017 = vshrl.u32 %v4016, 7
        %v4018 = vsub.s32 %v4015, %v4017
        %v4019 = vrot.slane %v4012, %v4018
        %v4020 = vcombine.low %v868, %v876
        %v4022 = vunpack.c.l.s4 1935823168
        %v4023 = vunpack.c.0.s8 %v4022
        %v4024 = vlaneseq
        %v4025 = vshrl.u32 %v4024, 7
        %v4026 = vsub.s32 %v4023, %v4025
        %v4027 = vrot.slane %v4020, %v4026
        %v4028 = vcombine.low %v4027, %v1461
        %v4030 = vunpack.c.l.s4 1935823168
        %v4031 = vunpack.c.0.s8 %v4030
        %v4032 = vlaneseq
        %v4033 = vshrl.u32 %v4032, 7
        %v4034 = vsub.s32 %v4031, %v4033
        %v4035 = vrot.slane %v4028, %v4034
        %v4036 = vcombine.low %v892, %v900
        %v4037 = vcombine.low %v899, %v3651
        %v4039 = vunpack.c.l.s4 1935823168
        %v4040 = vunpack.c.0.s8 %v4039
        %v4041 = vlaneseq
        %v4042 = vshrl.u32 %v4041, 7
        %v4043 = vsub.s32 %v4040, %v4042
        %v4044 = vrot.slane %v4036, %v4043
        %v4046 = vunpack.c.l.s4 1935823168
        %v4047 = vunpack.c.0.s8 %v4046
        %v4048 = vlaneseq
        %v4049 = vshrl.u32 %v4048, 7
        %v4050 = vsub.s32 %v4047, %v4049
        %v4051 = vrot.slane %v4037, %v4050
        %v4052 = vcombine.low %v4044, %v4051
        %v4054 = vunpack.c.l.s4 1935823168
        %v4055 = vunpack.c.0.s8 %v4054
        %v4056 = vlaneseq
        %v4057 = vshrl.u32 %v4056, 7
        %v4058 = vsub.s32 %v4055, %v4057
        %v4059 = vrot.slane %v4052, %v4058
        %v4060 = vcombine.low %v3658, %v3660
        %v4061 = vcombine.low %v3659, %v3675
        %v4063 = vunpack.c.l.s4 1935823168
        %v4064 = vunpack.c.0.s8 %v4063
        %v4065 = vlaneseq
        %v4066 = vshrl.u32 %v4065, 7
        %v4067 = vsub.s32 %v4064, %v4066
        %v4068 = vrot.slane %v4060, %v4067
        %v4070 = vunpack.c.l.s4 1935823168
        %v4071 = vunpack.c.0.s8 %v4070
        %v4072 = vlaneseq
        %v4073 = vshrl.u32 %v4072, 7
        %v4074 = vsub.s32 %v4071, %v4073
        %v4075 = vrot.slane %v4061, %v4074
        %v4076 = vcombine.low %v4068, %v4075
        %v4078 = vunpack.c.l.s4 1935823168
        %v4079 = vunpack.c.0.s8 %v4078
        %v4080 = vlaneseq
        %v4081 = vshrl.u32 %v4080, 7
        %v4082 = vsub.s32 %v4079, %v4081
        %v4083 = vrot.slane %v4076, %v4082
        %v4085 = vunpack.c.l.s4 1935823168
        %v4086 = vunpack.c.0.s8 %v4085
        %v4087 = vlaneseq
        %v4088 = vshrl.u32 %v4087, 7
        %v4089 = vsub.s32 %v4086, %v4088
        %v4090 = vrot.slane %v3682, %v4089
        %v4092 = vunpack.c.l.s4 1935823168
        %v4093 = vunpack.c.0.s8 %v4092
        %v4094 = vlaneseq
        %v4095 = vshrl.u32 %v4094, 7
        %v4096 = vsub.s32 %v4093, %v4095
        %v4097 = vrot.slane %v3683, %v4096
        %v4098 = vcombine.low %v4090, %v4097
        %v4100 = vunpack.c.l.s4 1935823168
        %v4101 = vunpack.c.0.s8 %v4100
        %v4102 = vlaneseq
        %v4103 = vshrl.u32 %v4102, 7
        %v4104 = vsub.s32 %v4101, %v4103
        %v4105 = vrot.slane %v4098, %v4104
        %4106 = vrot.lane.b32.xlu0 %v3699, 12
        %v4107 = vpop.permute.xlu0 %4106
        %4108 = vrot.lane.b32.xlu0 %v3715, 12
        %v4109 = vpop.permute.xlu0 %4108
        %4110 = vrot.lane.b32.xlu0 %v3731, 12
        %v4111 = vpop.permute.xlu0 %4110
        %4112 = vrot.lane.b32.xlu0 %v3747, 12
        %v4113 = vpop.permute.xlu0 %4112
        %4114 = vrot.lane.b32.xlu0 %v3763, 12
        %v4115 = vpop.permute.xlu0 %4114
        %4116 = vrot.lane.b32.xlu0 %v3779, 12
        %v4117 = vpop.permute.xlu0 %4116
        %4118 = vrot.lane.b32.xlu0 %v3795, 12
        %v4119 = vpop.permute.xlu0 %4118
        %4120 = vrot.lane.b32.xlu0 %v3811, 12
        %v4121 = vpop.permute.xlu0 %4120
        %4122 = vrot.lane.b32.xlu0 %v3827, 12
        %v4123 = vpop.permute.xlu0 %4122
        %4124 = vrot.lane.b32.xlu0 %v3843, 12
        %v4125 = vpop.permute.xlu0 %4124
        %4126 = vrot.lane.b32.xlu0 %v3859, 12
        %v4127 = vpop.permute.xlu0 %4126
        %4128 = vrot.lane.b32.xlu0 %v3875, 12
        %v4129 = vpop.permute.xlu0 %4128
        %4130 = vrot.lane.b32.xlu0 %v3891, 12
        %v4131 = vpop.permute.xlu0 %4130
        %4132 = vrot.lane.b32.xlu0 %v3907, 12
        %v4133 = vpop.permute.xlu0 %4132
        %4134 = vrot.lane.b32.xlu0 %v3923, 12
        %v4135 = vpop.permute.xlu0 %4134
        %4136 = vrot.lane.b32.xlu0 %v3939, 12
        %v4137 = vpop.permute.xlu0 %4136
        %4138 = vrot.lane.b32.xlu0 %v3955, 12
        %v4139 = vpop.permute.xlu0 %4138
        %4140 = vrot.lane.b32.xlu0 %v3971, 12
        %v4141 = vpop.permute.xlu0 %4140
        %4142 = vrot.lane.b32.xlu0 %v3987, 12
        %v4143 = vpop.permute.xlu0 %4142
        %4144 = vrot.lane.b32.xlu0 %v4003, 12
        %v4145 = vpop.permute.xlu0 %4144
        %4146 = vrot.lane.b32.xlu0 %v4019, 12
        %v4147 = vpop.permute.xlu0 %4146
        %4148 = vrot.lane.b32.xlu0 %v4035, 12
        %v4149 = vpop.permute.xlu0 %4148
        %4150 = vrot.lane.b32.xlu0 %v4059, 12
        %v4151 = vpop.permute.xlu0 %4150
        %4152 = vrot.lane.b32.xlu0 %v4083, 12
        %v4153 = vpop.permute.xlu0 %4152
        %4154 = vrot.lane.b32.xlu0 %v4105, 12
        %v4155 = vpop.permute.xlu0 %4154
        %vm4181 = vcmask 126048
        %4182 = vst.msk [vmem:[#allocation2] sm:$0xf] %vm4181, %v4107
        %4183 = vst.msk [vmem:[#allocation2 + $0x4] sm:$0xf] %vm4181, %v4109
        %4184 = vst.msk [vmem:[#allocation2 + $0x8] sm:$0xf] %vm4181, %v4111
        %4185 = vst.msk [vmem:[#allocation2 + $0xc] sm:$0xf] %vm4181, %v4113
        %4186 = vst.msk [vmem:[#allocation2 + $0x10] sm:$0xf] %vm4181, %v4115
        %4187 = vst.msk [vmem:[#allocation2 + $0x14] sm:$0xf] %vm4181, %v4117
        %4188 = vst.msk [vmem:[#allocation2 + $0x18] sm:$0xf] %vm4181, %v4119
        %4189 = vst.msk [vmem:[#allocation2 + $0x1c] sm:$0xf] %vm4181, %v4121
        %4190 = vst.msk [vmem:[#allocation2 + $0x20] sm:$0xf] %vm4181, %v4123
        %4191 = vst.msk [vmem:[#allocation2 + $0x24] sm:$0xf] %vm4181, %v4125
        %4192 = vst.msk [vmem:[#allocation2 + $0x28] sm:$0xf] %vm4181, %v4127
        %4193 = vst.msk [vmem:[#allocation2 + $0x2c] sm:$0xf] %vm4181, %v4129
        %4194 = vst.msk [vmem:[#allocation2 + $0x30] sm:$0xf] %vm4181, %v4131
        %4195 = vst.msk [vmem:[#allocation2 + $0x34] sm:$0xf] %vm4181, %v4133
        %4196 = vst.msk [vmem:[#allocation2 + $0x38] sm:$0xf] %vm4181, %v4135
        %4197 = vst.msk [vmem:[#allocation2 + $0x3c] sm:$0xf] %vm4181, %v4137
        %4198 = vst.msk [vmem:[#allocation2 + $0x40] sm:$0xf] %vm4181, %v4139
        %4199 = vst.msk [vmem:[#allocation2 + $0x44] sm:$0xf] %vm4181, %v4141
        %4200 = vst.msk [vmem:[#allocation2 + $0x48] sm:$0xf] %vm4181, %v4143
        %4201 = vst.msk [vmem:[#allocation2 + $0x4c] sm:$0xf] %vm4181, %v4145
        %4202 = vst.msk [vmem:[#allocation2 + $0x50] sm:$0xf] %vm4181, %v4147
        %4203 = vst.msk [vmem:[#allocation2 + $0x54] sm:$0xf] %vm4181, %v4149
        %4204 = vst.msk [vmem:[#allocation2 + $0x58] sm:$0xf] %vm4181, %v4151
        %4205 = vst.msk [vmem:[#allocation2 + $0x5c] sm:$0xf] %vm4181, %v4153
        %vm4206 = vcmask 124000
        %4207 = vst.msk [vmem:[#allocation2 + $0x60] sm:$0x3] %vm4206, %v4155
        %v4208 = vcombine.high %v3682, %v3682
        %v4210 = vshrl.u32 %v3651, 16
        %v4212 = vrot.slane %v4210, 7
        %v4213 = vrot.slane %v4212, 1
        %v4215 = vshll.u32 %v3658, 16
        %v4217 = vsel %vm1579, %v4213, %v4215
        %v4218 = vshrl.u32 %v3658, 16
        %v4220 = vrot.slane %v4218, 7
        %v4221 = vrot.slane %v4220, 1
        %v4223 = vshll.u32 %v3659, 16
        %v4225 = vsel %vm1579, %v4221, %v4223
        %v4226 = vshrl.u32 %v3659, 16
        %v4228 = vrot.slane %v4226, 7
        %v4229 = vrot.slane %v4228, 1
        %v4231 = vshll.u32 %v3660, 16
        %v4233 = vsel %vm1579, %v4229, %v4231
        %v4234 = vshrl.u32 %v3660, 16
        %v4236 = vrot.slane %v4234, 7
        %v4237 = vrot.slane %v4236, 1
        %v4239 = vshll.u32 %v3675, 16
        %v4241 = vsel %vm1579, %v4237, %v4239
        %v4242 = vshrl.u32 %v3675, 16
        %v4244 = vrot.slane %v4242, 7
        %v4245 = vrot.slane %v4244, 1
        %v4247 = vshll.u32 %v3682, 16
        %v4249 = vsel %vm1579, %v4245, %v4247
        %v4250 = vshrl.u32 %v3682, 16
        %v4252 = vrot.slane %v4250, 7
        %v4253 = vrot.slane %v4252, 1
        %v4255 = vshll.u32 %v3683, 16
        %v4257 = vsel %vm1579, %v4253, %v4255
        %v4258 = vshrl.u32 %v3683, 16
        %v4260 = vrot.slane %v4258, 7
        %v4261 = vrot.slane %v4260, 1
        %v4263 = vshll.u32 %v4208, 16
        %v4265 = vsel %vm1579, %v4261, %v4263
        %v4266 = vcombine.low %v1645, %v1661
        %v4268 = vunpack.c.l.s4 1935823168
        %v4269 = vunpack.c.0.s8 %v4268
        %v4270 = vlaneseq
        %v4271 = vshrl.u32 %v4270, 7
        %v4272 = vsub.s32 %v4269, %v4271
        %v4273 = vrot.slane %v4266, %v4272
        %v4274 = vcombine.low %v4273, %v2434
        %v4276 = vunpack.c.l.s4 1935823168
        %v4277 = vunpack.c.0.s8 %v4276
        %v4278 = vlaneseq
        %v4279 = vshrl.u32 %v4278, 7
        %v4280 = vsub.s32 %v4277, %v4279
        %v4281 = vrot.slane %v4274, %v4280
        %v4282 = vcombine.low %v1677, %v1693
        %v4284 = vunpack.c.l.s4 1935823168
        %v4285 = vunpack.c.0.s8 %v4284
        %v4286 = vlaneseq
        %v4287 = vshrl.u32 %v4286, 7
        %v4288 = vsub.s32 %v4285, %v4287
        %v4289 = vrot.slane %v4282, %v4288
        %v4290 = vcombine.low %v4289, %v2458
        %v4292 = vunpack.c.l.s4 1935823168
        %v4293 = vunpack.c.0.s8 %v4292
        %v4294 = vlaneseq
        %v4295 = vshrl.u32 %v4294, 7
        %v4296 = vsub.s32 %v4293, %v4295
        %v4297 = vrot.slane %v4290, %v4296
        %v4298 = vcombine.low %v1710, %v1726
        %v4300 = vunpack.c.l.s4 1935823168
        %v4301 = vunpack.c.0.s8 %v4300
        %v4302 = vlaneseq
        %v4303 = vshrl.u32 %v4302, 7
        %v4304 = vsub.s32 %v4301, %v4303
        %v4305 = vrot.slane %v4298, %v4304
        %v4306 = vcombine.low %v4305, %v2482
        %v4308 = vunpack.c.l.s4 1935823168
        %v4309 = vunpack.c.0.s8 %v4308
        %v4310 = vlaneseq
        %v4311 = vshrl.u32 %v4310, 7
        %v4312 = vsub.s32 %v4309, %v4311
        %v4313 = vrot.slane %v4306, %v4312
        %v4314 = vcombine.low %v1742, %v1759
        %v4316 = vunpack.c.l.s4 1935823168
        %v4317 = vunpack.c.0.s8 %v4316
        %v4318 = vlaneseq
        %v4319 = vshrl.u32 %v4318, 7
        %v4320 = vsub.s32 %v4317, %v4319
        %v4321 = vrot.slane %v4314, %v4320
        %v4322 = vcombine.low %v4321, %v2506
        %v4324 = vunpack.c.l.s4 1935823168
        %v4325 = vunpack.c.0.s8 %v4324
        %v4326 = vlaneseq
        %v4327 = vshrl.u32 %v4326, 7
        %v4328 = vsub.s32 %v4325, %v4327
        %v4329 = vrot.slane %v4322, %v4328
        %v4330 = vcombine.low %v1775, %v1791
        %v4332 = vunpack.c.l.s4 1935823168
        %v4333 = vunpack.c.0.s8 %v4332
        %v4334 = vlaneseq
        %v4335 = vshrl.u32 %v4334, 7
        %v4336 = vsub.s32 %v4333, %v4335
        %v4337 = vrot.slane %v4330, %v4336
        %v4338 = vcombine.low %v4337, %v2530
        %v4340 = vunpack.c.l.s4 1935823168
        %v4341 = vunpack.c.0.s8 %v4340
        %v4342 = vlaneseq
        %v4343 = vshrl.u32 %v4342, 7
        %v4344 = vsub.s32 %v4341, %v4343
        %v4345 = vrot.slane %v4338, %v4344
        %v4346 = vcombine.low %v1807, %v1824
        %v4348 = vunpack.c.l.s4 1935823168
        %v4349 = vunpack.c.0.s8 %v4348
        %v4350 = vlaneseq
        %v4351 = vshrl.u32 %v4350, 7
        %v4352 = vsub.s32 %v4349, %v4351
        %v4353 = vrot.slane %v4346, %v4352
        %v4354 = vcombine.low %v4353, %v2554
        %v4356 = vunpack.c.l.s4 1935823168
        %v4357 = vunpack.c.0.s8 %v4356
        %v4358 = vlaneseq
        %v4359 = vshrl.u32 %v4358, 7
        %v4360 = vsub.s32 %v4357, %v4359
        %v4361 = vrot.slane %v4354, %v4360
        %v4362 = vcombine.low %v1840, %v1856
        %v4364 = vunpack.c.l.s4 1935823168
        %v4365 = vunpack.c.0.s8 %v4364
        %v4366 = vlaneseq
        %v4367 = vshrl.u32 %v4366, 7
        %v4368 = vsub.s32 %v4365, %v4367
        %v4369 = vrot.slane %v4362, %v4368
        %v4370 = vcombine.low %v4369, %v2578
        %v4372 = vunpack.c.l.s4 1935823168
        %v4373 = vunpack.c.0.s8 %v4372
        %v4374 = vlaneseq
        %v4375 = vshrl.u32 %v4374, 7
        %v4376 = vsub.s32 %v4373, %v4375
        %v4377 = vrot.slane %v4370, %v4376
        %v4378 = vcombine.low %v1873, %v1889
        %v4380 = vunpack.c.l.s4 1935823168
        %v4381 = vunpack.c.0.s8 %v4380
        %v4382 = vlaneseq
        %v4383 = vshrl.u32 %v4382, 7
        %v4384 = vsub.s32 %v4381, %v4383
        %v4385 = vrot.slane %v4378, %v4384
        %v4386 = vcombine.low %v4385, %v2602
        %v4388 = vunpack.c.l.s4 1935823168
        %v4389 = vunpack.c.0.s8 %v4388
        %v4390 = vlaneseq
        %v4391 = vshrl.u32 %v4390, 7
        %v4392 = vsub.s32 %v4389, %v4391
        %v4393 = vrot.slane %v4386, %v4392
        %v4394 = vcombine.low %v1905, %v1921
        %v4396 = vunpack.c.l.s4 1935823168
        %v4397 = vunpack.c.0.s8 %v4396
        %v4398 = vlaneseq
        %v4399 = vshrl.u32 %v4398, 7
        %v4400 = vsub.s32 %v4397, %v4399
        %v4401 = vrot.slane %v4394, %v4400
        %v4402 = vcombine.low %v4401, %v2626
        %v4404 = vunpack.c.l.s4 1935823168
        %v4405 = vunpack.c.0.s8 %v4404
        %v4406 = vlaneseq
        %v4407 = vshrl.u32 %v4406, 7
        %v4408 = vsub.s32 %v4405, %v4407
        %v4409 = vrot.slane %v4402, %v4408
        %v4410 = vcombine.low %v1938, %v1954
        %v4412 = vunpack.c.l.s4 1935823168
        %v4413 = vunpack.c.0.s8 %v4412
        %v4414 = vlaneseq
        %v4415 = vshrl.u32 %v4414, 7
        %v4416 = vsub.s32 %v4413, %v4415
        %v4417 = vrot.slane %v4410, %v4416
        %v4418 = vcombine.low %v4417, %v2650
        %v4420 = vunpack.c.l.s4 1935823168
        %v4421 = vunpack.c.0.s8 %v4420
        %v4422 = vlaneseq
        %v4423 = vshrl.u32 %v4422, 7
        %v4424 = vsub.s32 %v4421, %v4423
        %v4425 = vrot.slane %v4418, %v4424
        %v4426 = vcombine.low %v1970, %v1987
        %v4428 = vunpack.c.l.s4 1935823168
        %v4429 = vunpack.c.0.s8 %v4428
        %v4430 = vlaneseq
        %v4431 = vshrl.u32 %v4430, 7
        %v4432 = vsub.s32 %v4429, %v4431
        %v4433 = vrot.slane %v4426, %v4432
        %v4434 = vcombine.low %v4433, %v2674
        %v4436 = vunpack.c.l.s4 1935823168
        %v4437 = vunpack.c.0.s8 %v4436
        %v4438 = vlaneseq
        %v4439 = vshrl.u32 %v4438, 7
        %v4440 = vsub.s32 %v4437, %v4439
        %v4441 = vrot.slane %v4434, %v4440
        %v4442 = vcombine.low %v2003, %v2019
        %v4444 = vunpack.c.l.s4 1935823168
        %v4445 = vunpack.c.0.s8 %v4444
        %v4446 = vlaneseq
        %v4447 = vshrl.u32 %v4446, 7
        %v4448 = vsub.s32 %v4445, %v4447
        %v4449 = vrot.slane %v4442, %v4448
        %v4450 = vcombine.low %v4449, %v2698
        %v4452 = vunpack.c.l.s4 1935823168
        %v4453 = vunpack.c.0.s8 %v4452
        %v4454 = vlaneseq
        %v4455 = vshrl.u32 %v4454, 7
        %v4456 = vsub.s32 %v4453, %v4455
        %v4457 = vrot.slane %v4450, %v4456
        %v4458 = vcombine.low %v2035, %v2052
        %v4460 = vunpack.c.l.s4 1935823168
        %v4461 = vunpack.c.0.s8 %v4460
        %v4462 = vlaneseq
        %v4463 = vshrl.u32 %v4462, 7
        %v4464 = vsub.s32 %v4461, %v4463
        %v4465 = vrot.slane %v4458, %v4464
        %v4466 = vcombine.low %v4465, %v2722
        %v4468 = vunpack.c.l.s4 1935823168
        %v4469 = vunpack.c.0.s8 %v4468
        %v4470 = vlaneseq
        %v4471 = vshrl.u32 %v4470, 7
        %v4472 = vsub.s32 %v4469, %v4471
        %v4473 = vrot.slane %v4466, %v4472
        %v4474 = vcombine.low %v2068, %v2084
        %v4476 = vunpack.c.l.s4 1935823168
        %v4477 = vunpack.c.0.s8 %v4476
        %v4478 = vlaneseq
        %v4479 = vshrl.u32 %v4478, 7
        %v4480 = vsub.s32 %v4477, %v4479
        %v4481 = vrot.slane %v4474, %v4480
        %v4482 = vcombine.low %v4481, %v2746
        %v4484 = vunpack.c.l.s4 1935823168
        %v4485 = vunpack.c.0.s8 %v4484
        %v4486 = vlaneseq
        %v4487 = vshrl.u32 %v4486, 7
        %v4488 = vsub.s32 %v4485, %v4487
        %v4489 = vrot.slane %v4482, %v4488
        %v4490 = vcombine.low %v2101, %v2117
        %v4492 = vunpack.c.l.s4 1935823168
        %v4493 = vunpack.c.0.s8 %v4492
        %v4494 = vlaneseq
        %v4495 = vshrl.u32 %v4494, 7
        %v4496 = vsub.s32 %v4493, %v4495
        %v4497 = vrot.slane %v4490, %v4496
        %v4498 = vcombine.low %v4497, %v2770
        %v4500 = vunpack.c.l.s4 1935823168
        %v4501 = vunpack.c.0.s8 %v4500
        %v4502 = vlaneseq
        %v4503 = vshrl.u32 %v4502, 7
        %v4504 = vsub.s32 %v4501, %v4503
        %v4505 = vrot.slane %v4498, %v4504
        %v4506 = vcombine.low %v2133, %v2149
        %v4508 = vunpack.c.l.s4 1935823168
        %v4509 = vunpack.c.0.s8 %v4508
        %v4510 = vlaneseq
        %v4511 = vshrl.u32 %v4510, 7
        %v4512 = vsub.s32 %v4509, %v4511
        %v4513 = vrot.slane %v4506, %v4512
        %v4514 = vcombine.low %v4513, %v2794
        %v4516 = vunpack.c.l.s4 1935823168
        %v4517 = vunpack.c.0.s8 %v4516
        %v4518 = vlaneseq
        %v4519 = vshrl.u32 %v4518, 7
        %v4520 = vsub.s32 %v4517, %v4519
        %v4521 = vrot.slane %v4514, %v4520
        %v4522 = vcombine.low %v2166, %v2182
        %v4524 = vunpack.c.l.s4 1935823168
        %v4525 = vunpack.c.0.s8 %v4524
        %v4526 = vlaneseq
        %v4527 = vshrl.u32 %v4526, 7
        %v4528 = vsub.s32 %v4525, %v4527
        %v4529 = vrot.slane %v4522, %v4528
        %v4530 = vcombine.low %v4529, %v2818
        %v4532 = vunpack.c.l.s4 1935823168
        %v4533 = vunpack.c.0.s8 %v4532
        %v4534 = vlaneseq
        %v4535 = vshrl.u32 %v4534, 7
        %v4536 = vsub.s32 %v4533, %v4535
        %v4537 = vrot.slane %v4530, %v4536
        %v4538 = vcombine.low %v2198, %v2215
        %v4540 = vunpack.c.l.s4 1935823168
        %v4541 = vunpack.c.0.s8 %v4540
        %v4542 = vlaneseq
        %v4543 = vshrl.u32 %v4542, 7
        %v4544 = vsub.s32 %v4541, %v4543
        %v4545 = vrot.slane %v4538, %v4544
        %v4546 = vcombine.low %v4545, %v2842
        %v4548 = vunpack.c.l.s4 1935823168
        %v4549 = vunpack.c.0.s8 %v4548
        %v4550 = vlaneseq
        %v4551 = vshrl.u32 %v4550, 7
        %v4552 = vsub.s32 %v4549, %v4551
        %v4553 = vrot.slane %v4546, %v4552
        %v4554 = vcombine.low %v2231, %v2247
        %v4556 = vunpack.c.l.s4 1935823168
        %v4557 = vunpack.c.0.s8 %v4556
        %v4558 = vlaneseq
        %v4559 = vshrl.u32 %v4558, 7
        %v4560 = vsub.s32 %v4557, %v4559
        %v4561 = vrot.slane %v4554, %v4560
        %v4562 = vcombine.low %v4561, %v2866
        %v4564 = vunpack.c.l.s4 1935823168
        %v4565 = vunpack.c.0.s8 %v4564
        %v4566 = vlaneseq
        %v4567 = vshrl.u32 %v4566, 7
        %v4568 = vsub.s32 %v4565, %v4567
        %v4569 = vrot.slane %v4562, %v4568
        %v4570 = vcombine.low %v2263, %v2280
        %v4572 = vunpack.c.l.s4 1935823168
        %v4573 = vunpack.c.0.s8 %v4572
        %v4574 = vlaneseq
        %v4575 = vshrl.u32 %v4574, 7
        %v4576 = vsub.s32 %v4573, %v4575
        %v4577 = vrot.slane %v4570, %v4576
        %v4578 = vcombine.low %v4577, %v2890
        %v4580 = vunpack.c.l.s4 1935823168
        %v4581 = vunpack.c.0.s8 %v4580
        %v4582 = vlaneseq
        %v4583 = vshrl.u32 %v4582, 7
        %v4584 = vsub.s32 %v4581, %v4583
        %v4585 = vrot.slane %v4578, %v4584
        %v4586 = vcombine.low %v2296, %v2312
        %v4588 = vunpack.c.l.s4 1935823168
        %v4589 = vunpack.c.0.s8 %v4588
        %v4590 = vlaneseq
        %v4591 = vshrl.u32 %v4590, 7
        %v4592 = vsub.s32 %v4589, %v4591
        %v4593 = vrot.slane %v4586, %v4592
        %v4594 = vcombine.low %v4593, %v2914
        %v4596 = vunpack.c.l.s4 1935823168
        %v4597 = vunpack.c.0.s8 %v4596
        %v4598 = vlaneseq
        %v4599 = vshrl.u32 %v4598, 7
        %v4600 = vsub.s32 %v4597, %v4599
        %v4601 = vrot.slane %v4594, %v4600
        %v4602 = vcombine.low %v2329, %v2345
        %v4604 = vunpack.c.l.s4 1935823168
        %v4605 = vunpack.c.0.s8 %v4604
        %v4606 = vlaneseq
        %v4607 = vshrl.u32 %v4606, 7
        %v4608 = vsub.s32 %v4605, %v4607
        %v4609 = vrot.slane %v4602, %v4608
        %v4610 = vcombine.low %v4609, %v2938
        %v4612 = vunpack.c.l.s4 1935823168
        %v4613 = vunpack.c.0.s8 %v4612
        %v4614 = vlaneseq
        %v4615 = vshrl.u32 %v4614, 7
        %v4616 = vsub.s32 %v4613, %v4615
        %v4617 = vrot.slane %v4610, %v4616
        %v4618 = vcombine.low %v2361, %v2377
        %v4619 = vcombine.low %v2369, %v4217
        %v4621 = vunpack.c.l.s4 1935823168
        %v4622 = vunpack.c.0.s8 %v4621
        %v4623 = vlaneseq
        %v4624 = vshrl.u32 %v4623, 7
        %v4625 = vsub.s32 %v4622, %v4624
        %v4626 = vrot.slane %v4618, %v4625
        %v4628 = vunpack.c.l.s4 1935823168
        %v4629 = vunpack.c.0.s8 %v4628
        %v4630 = vlaneseq
        %v4631 = vshrl.u32 %v4630, 7
        %v4632 = vsub.s32 %v4629, %v4631
        %v4633 = vrot.slane %v4619, %v4632
        %v4634 = vcombine.low %v4626, %v4633
        %v4636 = vunpack.c.l.s4 1935823168
        %v4637 = vunpack.c.0.s8 %v4636
        %v4638 = vlaneseq
        %v4639 = vshrl.u32 %v4638, 7
        %v4640 = vsub.s32 %v4637, %v4639
        %v4641 = vrot.slane %v4634, %v4640
        %v4642 = vcombine.low %v4225, %v4241
        %v4643 = vcombine.low %v4233, %v4249
        %v4645 = vunpack.c.l.s4 1935823168
        %v4646 = vunpack.c.0.s8 %v4645
        %v4647 = vlaneseq
        %v4648 = vshrl.u32 %v4647, 7
        %v4649 = vsub.s32 %v4646, %v4648
        %v4650 = vrot.slane %v4642, %v4649
        %v4652 = vunpack.c.l.s4 1935823168
        %v4653 = vunpack.c.0.s8 %v4652
        %v4654 = vlaneseq
        %v4655 = vshrl.u32 %v4654, 7
        %v4656 = vsub.s32 %v4653, %v4655
        %v4657 = vrot.slane %v4643, %v4656
        %v4658 = vcombine.low %v4650, %v4657
        %v4660 = vunpack.c.l.s4 1935823168
        %v4661 = vunpack.c.0.s8 %v4660
        %v4662 = vlaneseq
        %v4663 = vshrl.u32 %v4662, 7
        %v4664 = vsub.s32 %v4661, %v4663
        %v4665 = vrot.slane %v4658, %v4664
        %v4667 = vunpack.c.l.s4 1935823168
        %v4668 = vunpack.c.0.s8 %v4667
        %v4669 = vlaneseq
        %v4670 = vshrl.u32 %v4669, 7
        %v4671 = vsub.s32 %v4668, %v4670
        %v4672 = vrot.slane %v4257, %v4671
        %v4674 = vunpack.c.l.s4 1935823168
        %v4675 = vunpack.c.0.s8 %v4674
        %v4676 = vlaneseq
        %v4677 = vshrl.u32 %v4676, 7
        %v4678 = vsub.s32 %v4675, %v4677
        %v4679 = vrot.slane %v4265, %v4678
        %v4680 = vcombine.low %v4672, %v4679
        %v4682 = vunpack.c.l.s4 1935823168
        %v4683 = vunpack.c.0.s8 %v4682
        %v4684 = vlaneseq
        %v4685 = vshrl.u32 %v4684, 7
        %v4686 = vsub.s32 %v4683, %v4685
        %v4687 = vrot.slane %v4680, %v4686
        %4688 = vrot.lane.b32.xlu0 %v4281, 16
        %v4689 = vpop.permute.xlu0 %4688
        %4690 = vrot.lane.b32.xlu0 %v4297, 16
        %v4691 = vpop.permute.xlu0 %4690
        %4692 = vrot.lane.b32.xlu0 %v4313, 16
        %v4693 = vpop.permute.xlu0 %4692
        %4694 = vrot.lane.b32.xlu0 %v4329, 16
        %v4695 = vpop.permute.xlu0 %4694
        %4696 = vrot.lane.b32.xlu0 %v4345, 16
        %v4697 = vpop.permute.xlu0 %4696
        %4698 = vrot.lane.b32.xlu0 %v4361, 16
        %v4699 = vpop.permute.xlu0 %4698
        %4700 = vrot.lane.b32.xlu0 %v4377, 16
        %v4701 = vpop.permute.xlu0 %4700
        %4702 = vrot.lane.b32.xlu0 %v4393, 16
        %v4703 = vpop.permute.xlu0 %4702
        %4704 = vrot.lane.b32.xlu0 %v4409, 16
        %v4705 = vpop.permute.xlu0 %4704
        %4706 = vrot.lane.b32.xlu0 %v4425, 16
        %v4707 = vpop.permute.xlu0 %4706
        %4708 = vrot.lane.b32.xlu0 %v4441, 16
        %v4709 = vpop.permute.xlu0 %4708
        %4710 = vrot.lane.b32.xlu0 %v4457, 16
        %v4711 = vpop.permute.xlu0 %4710
        %4712 = vrot.lane.b32.xlu0 %v4473, 16
        %v4713 = vpop.permute.xlu0 %4712
        %4714 = vrot.lane.b32.xlu0 %v4489, 16
        %v4715 = vpop.permute.xlu0 %4714
        %4716 = vrot.lane.b32.xlu0 %v4505, 16
        %v4717 = vpop.permute.xlu0 %4716
        %4718 = vrot.lane.b32.xlu0 %v4521, 16
        %v4719 = vpop.permute.xlu0 %4718
        %4720 = vrot.lane.b32.xlu0 %v4537, 16
        %v4721 = vpop.permute.xlu0 %4720
        %4722 = vrot.lane.b32.xlu0 %v4553, 16
        %v4723 = vpop.permute.xlu0 %4722
        %4724 = vrot.lane.b32.xlu0 %v4569, 16
        %v4725 = vpop.permute.xlu0 %4724
        %4726 = vrot.lane.b32.xlu0 %v4585, 16
        %v4727 = vpop.permute.xlu0 %4726
        %4728 = vrot.lane.b32.xlu0 %v4601, 16
        %v4729 = vpop.permute.xlu0 %4728
        %4730 = vrot.lane.b32.xlu0 %v4617, 16
        %v4731 = vpop.permute.xlu0 %4730
        %4732 = vrot.lane.b32.xlu0 %v4641, 16
        %v4733 = vpop.permute.xlu0 %4732
        %4734 = vrot.lane.b32.xlu0 %v4665, 16
        %v4735 = vpop.permute.xlu0 %4734
        %4736 = vrot.lane.b32.xlu0 %v4687, 16
        %v4737 = vpop.permute.xlu0 %4736
        %vm4763 = vcmask 158848
        %4764 = vst.msk [vmem:[#allocation2] sm:$0xf] %vm4763, %v4689
        %4765 = vst.msk [vmem:[#allocation2 + $0x4] sm:$0xf] %vm4763, %v4691
        %4766 = vst.msk [vmem:[#allocation2 + $0x8] sm:$0xf] %vm4763, %v4693
        %4767 = vst.msk [vmem:[#allocation2 + $0xc] sm:$0xf] %vm4763, %v4695
        %4768 = vst.msk [vmem:[#allocation2 + $0x10] sm:$0xf] %vm4763, %v4697
        %4769 = vst.msk [vmem:[#allocation2 + $0x14] sm:$0xf] %vm4763, %v4699
        %4770 = vst.msk [vmem:[#allocation2 + $0x18] sm:$0xf] %vm4763, %v4701
        %4771 = vst.msk [vmem:[#allocation2 + $0x1c] sm:$0xf] %vm4763, %v4703
        %4772 = vst.msk [vmem:[#allocation2 + $0x20] sm:$0xf] %vm4763, %v4705
        %4773 = vst.msk [vmem:[#allocation2 + $0x24] sm:$0xf] %vm4763, %v4707
        %4774 = vst.msk [vmem:[#allocation2 + $0x28] sm:$0xf] %vm4763, %v4709
        %4775 = vst.msk [vmem:[#allocation2 + $0x2c] sm:$0xf] %vm4763, %v4711
        %4776 = vst.msk [vmem:[#allocation2 + $0x30] sm:$0xf] %vm4763, %v4713
        %4777 = vst.msk [vmem:[#allocation2 + $0x34] sm:$0xf] %vm4763, %v4715
        %4778 = vst.msk [vmem:[#allocation2 + $0x38] sm:$0xf] %vm4763, %v4717
        %4779 = vst.msk [vmem:[#allocation2 + $0x3c] sm:$0xf] %vm4763, %v4719
        %4780 = vst.msk [vmem:[#allocation2 + $0x40] sm:$0xf] %vm4763, %v4721
        %4781 = vst.msk [vmem:[#allocation2 + $0x44] sm:$0xf] %vm4763, %v4723
        %4782 = vst.msk [vmem:[#allocation2 + $0x48] sm:$0xf] %vm4763, %v4725
        %4783 = vst.msk [vmem:[#allocation2 + $0x4c] sm:$0xf] %vm4763, %v4727
        %4784 = vst.msk [vmem:[#allocation2 + $0x50] sm:$0xf] %vm4763, %v4729
        %4785 = vst.msk [vmem:[#allocation2 + $0x54] sm:$0xf] %vm4763, %v4731
        %4786 = vst.msk [vmem:[#allocation2 + $0x58] sm:$0xf] %vm4763, %v4733
        %4787 = vst.msk [vmem:[#allocation2 + $0x5c] sm:$0xf] %vm4763, %v4735
        %vm4788 = vcmask 156800
        %4789 = vst.msk [vmem:[#allocation2 + $0x60] sm:$0x3] %vm4788, %v4737
        %v4790 = vcombine.low %v335, %v1552
        %v4792 = vunpack.c.l.s4 1935823168
        %v4793 = vunpack.c.0.s8 %v4792
        %v4794 = vlaneseq
        %v4795 = vshrl.u32 %v4794, 7
        %v4796 = vsub.s32 %v4793, %v4795
        %v4797 = vrot.slane %v4790, %v4796
        %v4798 = vcombine.low %v4797, %v988
        %v4800 = vunpack.c.l.s4 1935823168
        %v4801 = vunpack.c.0.s8 %v4800
        %v4802 = vlaneseq
        %v4803 = vshrl.u32 %v4802, 7
        %v4804 = vsub.s32 %v4801, %v4803
        %v4805 = vrot.slane %v4798, %v4804
        %v4806 = vcombine.low %v1029, %v3174
        %v4808 = vunpack.c.l.s4 1935823168
        %v4809 = vunpack.c.0.s8 %v4808
        %v4810 = vlaneseq
        %v4811 = vshrl.u32 %v4810, 7
        %v4812 = vsub.s32 %v4809, %v4811
        %v4813 = vrot.slane %v4806, %v4812
        %v4814 = vcombine.low %v1554, %v453
        %v4816 = vunpack.c.l.s4 1935823168
        %v4817 = vunpack.c.0.s8 %v4816
        %v4818 = vlaneseq
        %v4819 = vshrl.u32 %v4818, 7
        %v4820 = vsub.s32 %v4817, %v4819
        %v4821 = vrot.slane %v4814, %v4820
        %v4822 = vcombine.low %v4821, %v1084
        %v4824 = vunpack.c.l.s4 1935823168
        %v4825 = vunpack.c.0.s8 %v4824
        %v4826 = vlaneseq
        %v4827 = vshrl.u32 %v4826, 7
        %v4828 = vsub.s32 %v4825, %v4827
        %v4829 = vrot.slane %v4822, %v4828
        %v4830 = vcombine.low %v1101, %v3230
        %v4832 = vunpack.c.l.s4 1935823168
        %v4833 = vunpack.c.0.s8 %v4832
        %v4834 = vlaneseq
        %v4835 = vshrl.u32 %v4834, 7
        %v4836 = vsub.s32 %v4833, %v4835
        %v4837 = vrot.slane %v4830, %v4836
        %v4838 = vcombine.low %v523, %v1556
        %v4840 = vunpack.c.l.s4 1935823168
        %v4841 = vunpack.c.0.s8 %v4840
        %v4842 = vlaneseq
        %v4843 = vshrl.u32 %v4842, 7
        %v4844 = vsub.s32 %v4841, %v4843
        %v4845 = vrot.slane %v4838, %v4844
        %v4846 = vcombine.low %v4845, %v1156
        %v4848 = vunpack.c.l.s4 1935823168
        %v4849 = vunpack.c.0.s8 %v4848
        %v4850 = vlaneseq
        %v4851 = vshrl.u32 %v4850, 7
        %v4852 = vsub.s32 %v4849, %v4851
        %v4853 = vrot.slane %v4846, %v4852
        %v4854 = vcombine.low %v1197, %v3302
        %v4856 = vunpack.c.l.s4 1935823168
        %v4857 = vunpack.c.0.s8 %v4856
        %v4858 = vlaneseq
        %v4859 = vshrl.u32 %v4858, 7
        %v4860 = vsub.s32 %v4857, %v4859
        %v4861 = vrot.slane %v4854, %v4860
        %v4862 = vcombine.low %v1558, %v641
        %v4864 = vunpack.c.l.s4 1935823168
        %v4865 = vunpack.c.0.s8 %v4864
        %v4866 = vlaneseq
        %v4867 = vshrl.u32 %v4866, 7
        %v4868 = vsub.s32 %v4865, %v4867
        %v4869 = vrot.slane %v4862, %v4868
        %v4870 = vcombine.low %v4869, %v1252
        %v4872 = vunpack.c.l.s4 1935823168
        %v4873 = vunpack.c.0.s8 %v4872
        %v4874 = vlaneseq
        %v4875 = vshrl.u32 %v4874, 7
        %v4876 = vsub.s32 %v4873, %v4875
        %v4877 = vrot.slane %v4870, %v4876
        %v4878 = vcombine.low %v1269, %v3358
        %v4880 = vunpack.c.l.s4 1935823168
        %v4881 = vunpack.c.0.s8 %v4880
        %v4882 = vlaneseq
        %v4883 = vshrl.u32 %v4882, 7
        %v4884 = vsub.s32 %v4881, %v4883
        %v4885 = vrot.slane %v4878, %v4884
        %v4886 = vcombine.low %v711, %v1560
        %v4888 = vunpack.c.l.s4 1935823168
        %v4889 = vunpack.c.0.s8 %v4888
        %v4890 = vlaneseq
        %v4891 = vshrl.u32 %v4890, 7
        %v4892 = vsub.s32 %v4889, %v4891
        %v4893 = vrot.slane %v4886, %v4892
        %v4894 = vcombine.low %v4893, %v1324
        %v4896 = vunpack.c.l.s4 1935823168
        %v4897 = vunpack.c.0.s8 %v4896
        %v4898 = vlaneseq
        %v4899 = vshrl.u32 %v4898, 7
        %v4900 = vsub.s32 %v4897, %v4899
        %v4901 = vrot.slane %v4894, %v4900
        %v4902 = vcombine.low %v1365, %v3430
        %v4904 = vunpack.c.l.s4 1935823168
        %v4905 = vunpack.c.0.s8 %v4904
        %v4906 = vlaneseq
        %v4907 = vshrl.u32 %v4906, 7
        %v4908 = vsub.s32 %v4905, %v4907
        %v4909 = vrot.slane %v4902, %v4908
        %v4910 = vcombine.low %v1562, %v829
        %v4912 = vunpack.c.l.s4 1935823168
        %v4913 = vunpack.c.0.s8 %v4912
        %v4914 = vlaneseq
        %v4915 = vshrl.u32 %v4914, 7
        %v4916 = vsub.s32 %v4913, %v4915
        %v4917 = vrot.slane %v4910, %v4916
        %v4918 = vcombine.low %v4917, %v1420
        %v4920 = vunpack.c.l.s4 1935823168
        %v4921 = vunpack.c.0.s8 %v4920
        %v4922 = vlaneseq
        %v4923 = vshrl.u32 %v4922, 7
        %v4924 = vsub.s32 %v4921, %v4923
        %v4925 = vrot.slane %v4918, %v4924
        %v4926 = vcombine.low %v1437, %v3486
        %v4928 = vunpack.c.l.s4 1935823168
        %v4929 = vunpack.c.0.s8 %v4928
        %v4930 = vlaneseq
        %v4931 = vshrl.u32 %v4930, 7
        %v4932 = vsub.s32 %v4929, %v4931
        %v4933 = vrot.slane %v4926, %v4932
        %v4934 = vcombine.low %v899, %v1564
        %v4935 = vcombine.low %v900, %v3658
        %v4937 = vunpack.c.l.s4 1935823168
        %v4938 = vunpack.c.0.s8 %v4937
        %v4939 = vlaneseq
        %v4940 = vshrl.u32 %v4939, 7
        %v4941 = vsub.s32 %v4938, %v4940
        %v4942 = vrot.slane %v4934, %v4941
        %v4944 = vunpack.c.l.s4 1935823168
        %v4945 = vunpack.c.0.s8 %v4944
        %v4946 = vlaneseq
        %v4947 = vshrl.u32 %v4946, 7
        %v4948 = vsub.s32 %v4945, %v4947
        %v4949 = vrot.slane %v4935, %v4948
        %v4950 = vcombine.low %v4942, %v4949
        %v4952 = vunpack.c.l.s4 1935823168
        %v4953 = vunpack.c.0.s8 %v4952
        %v4954 = vlaneseq
        %v4955 = vshrl.u32 %v4954, 7
        %v4956 = vsub.s32 %v4953, %v4955
        %v4957 = vrot.slane %v4950, %v4956
        %v4958 = vcombine.low %v3660, %v3682
        %v4960 = vunpack.c.l.s4 1935823168
        %v4961 = vunpack.c.0.s8 %v4960
        %v4962 = vlaneseq
        %v4963 = vshrl.u32 %v4962, 7
        %v4964 = vsub.s32 %v4961, %v4963
        %v4965 = vrot.slane %v4958, %v4964
        %v4966 = vcombine.low %v4075, %v4965
        %v4968 = vunpack.c.l.s4 1935823168
        %v4969 = vunpack.c.0.s8 %v4968
        %v4970 = vlaneseq
        %v4971 = vshrl.u32 %v4970, 7
        %v4972 = vsub.s32 %v4969, %v4971
        %v4973 = vrot.slane %v4966, %v4972
        %v4975 = vunpack.c.l.s4 1935823168
        %v4976 = vunpack.c.0.s8 %v4975
        %v4977 = vlaneseq
        %v4978 = vshrl.u32 %v4977, 7
        %v4979 = vsub.s32 %v4976, %v4978
        %v4980 = vrot.slane %v4208, %v4979
        %v4981 = vcombine.low %v4097, %v4980
        %v4983 = vunpack.c.l.s4 1935823168
        %v4984 = vunpack.c.0.s8 %v4983
        %v4985 = vlaneseq
        %v4986 = vshrl.u32 %v4985, 7
        %v4987 = vsub.s32 %v4984, %v4986
        %v4988 = vrot.slane %v4981, %v4987
        %4989 = vrot.lane.b32.xlu0 %v972, 20
        %v4990 = vpop.permute.xlu0 %4989
        %4991 = vrot.lane.b32.xlu0 %v4805, 20
        %v4992 = vpop.permute.xlu0 %4991
        %4993 = vrot.lane.b32.xlu0 %v1020, 20
        %v4994 = vpop.permute.xlu0 %4993
        %4995 = vrot.lane.b32.xlu0 %v4813, 20
        %v4996 = vpop.permute.xlu0 %4995
        %4997 = vrot.lane.b32.xlu0 %v1068, 20
        %v4998 = vpop.permute.xlu0 %4997
        %4999 = vrot.lane.b32.xlu0 %v4829, 20
        %v5000 = vpop.permute.xlu0 %4999
        %5001 = vrot.lane.b32.xlu0 %v4837, 20
        %v5002 = vpop.permute.xlu0 %5001
        %5003 = vrot.lane.b32.xlu0 %v1140, 20
        %v5004 = vpop.permute.xlu0 %5003
        %5005 = vrot.lane.b32.xlu0 %v4853, 20
        %v5006 = vpop.permute.xlu0 %5005
        %5007 = vrot.lane.b32.xlu0 %v1188, 20
        %v5008 = vpop.permute.xlu0 %5007
        %5009 = vrot.lane.b32.xlu0 %v4861, 20
        %v5010 = vpop.permute.xlu0 %5009
        %5011 = vrot.lane.b32.xlu0 %v1236, 20
        %v5012 = vpop.permute.xlu0 %5011
        %5013 = vrot.lane.b32.xlu0 %v4877, 20
        %v5014 = vpop.permute.xlu0 %5013
        %5015 = vrot.lane.b32.xlu0 %v4885, 20
        %v5016 = vpop.permute.xlu0 %5015
        %5017 = vrot.lane.b32.xlu0 %v1308, 20
        %v5018 = vpop.permute.xlu0 %5017
        %5019 = vrot.lane.b32.xlu0 %v4901, 20
        %v5020 = vpop.permute.xlu0 %5019
        %5021 = vrot.lane.b32.xlu0 %v1356, 20
        %v5022 = vpop.permute.xlu0 %5021
        %5023 = vrot.lane.b32.xlu0 %v4909, 20
        %v5024 = vpop.permute.xlu0 %5023
        %5025 = vrot.lane.b32.xlu0 %v1404, 20
        %v5026 = vpop.permute.xlu0 %5025
        %5027 = vrot.lane.b32.xlu0 %v4925, 20
        %v5028 = vpop.permute.xlu0 %5027
        %5029 = vrot.lane.b32.xlu0 %v4933, 20
        %v5030 = vpop.permute.xlu0 %5029
        %5031 = vrot.lane.b32.xlu0 %v1476, 20
        %v5032 = vpop.permute.xlu0 %5031
        %5033 = vrot.lane.b32.xlu0 %v4957, 20
        %v5034 = vpop.permute.xlu0 %5033
        %5035 = vrot.lane.b32.xlu0 %v4973, 20
        %v5036 = vpop.permute.xlu0 %5035
        %5037 = vrot.lane.b32.xlu0 %v4988, 20
        %v5038 = vpop.permute.xlu0 %5037
        %vm5064 = vcmask 191648
        %5065 = vst.msk [vmem:[#allocation2] sm:$0xf] %vm5064, %v4990
        %5066 = vst.msk [vmem:[#allocation2 + $0x4] sm:$0xf] %vm5064, %v4992
        %5067 = vst.msk [vmem:[#allocation2 + $0x8] sm:$0xf] %vm5064, %v4994
        %5068 = vst.msk [vmem:[#allocation2 + $0xc] sm:$0xf] %vm5064, %v4996
        %5069 = vst.msk [vmem:[#allocation2 + $0x10] sm:$0xf] %vm5064, %v4998
        %5070 = vst.msk [vmem:[#allocation2 + $0x14] sm:$0xf] %vm5064, %v5000
        %5071 = vst.msk [vmem:[#allocation2 + $0x18] sm:$0xf] %vm5064, %v5002
        %5072 = vst.msk [vmem:[#allocation2 + $0x1c] sm:$0xf] %vm5064, %v5004
        %5073 = vst.msk [vmem:[#allocation2 + $0x20] sm:$0xf] %vm5064, %v5006
        %5074 = vst.msk [vmem:[#allocation2 + $0x24] sm:$0xf] %vm5064, %v5008
        %5075 = vst.msk [vmem:[#allocation2 + $0x28] sm:$0xf] %vm5064, %v5010
        %5076 = vst.msk [vmem:[#allocation2 + $0x2c] sm:$0xf] %vm5064, %v5012
        %5077 = vst.msk [vmem:[#allocation2 + $0x30] sm:$0xf] %vm5064, %v5014
        %5078 = vst.msk [vmem:[#allocation2 + $0x34] sm:$0xf] %vm5064, %v5016
        %5079 = vst.msk [vmem:[#allocation2 + $0x38] sm:$0xf] %vm5064, %v5018
        %5080 = vst.msk [vmem:[#allocation2 + $0x3c] sm:$0xf] %vm5064, %v5020
        %5081 = vst.msk [vmem:[#allocation2 + $0x40] sm:$0xf] %vm5064, %v5022
        %5082 = vst.msk [vmem:[#allocation2 + $0x44] sm:$0xf] %vm5064, %v5024
        %5083 = vst.msk [vmem:[#allocation2 + $0x48] sm:$0xf] %vm5064, %v5026
        %5084 = vst.msk [vmem:[#allocation2 + $0x4c] sm:$0xf] %vm5064, %v5028
        %5085 = vst.msk [vmem:[#allocation2 + $0x50] sm:$0xf] %vm5064, %v5030
        %5086 = vst.msk [vmem:[#allocation2 + $0x54] sm:$0xf] %vm5064, %v5032
        %5087 = vst.msk [vmem:[#allocation2 + $0x58] sm:$0xf] %vm5064, %v5034
        %5088 = vst.msk [vmem:[#allocation2 + $0x5c] sm:$0xf] %vm5064, %v5036
        %vm5089 = vcmask 189600
        %5090 = vst.msk [vmem:[#allocation2 + $0x60] sm:$0x3] %vm5089, %v5038
        %v5094 = vunpack.c.l.s4 1966171168
        %v5095 = vunpack.c.0.s8 %v5094
        %v5096 = vlaneseq
        %v5097 = vshrl.u32 %v5096, 7
        %v5098 = vsub.s32 %v5095, %v5097
        %v5099 = vrot.slane %v213, %v5098
        %v5100 = vcombine.high %v5099, %v5099
        %v5102 = vunpack.c.l.s4 1966171168
        %v5103 = vunpack.c.0.s8 %v5102
        %v5104 = vlaneseq
        %v5105 = vshrl.u32 %v5104, 7
        %v5106 = vsub.s32 %v5103, %v5105
        %v5107 = vrot.slane %v5099, %v5106
        %v5109 = vunpack.c.l.s4 1966171168
        %v5110 = vunpack.c.0.s8 %v5109
        %v5111 = vlaneseq
        %v5112 = vshrl.u32 %v5111, 7
        %v5113 = vsub.s32 %v5110, %v5112
        %v5114 = vrot.slane %v5100, %v5113
        %v5115 = vcombine.high %v5107, %v5107
        %v5116 = vcombine.high %v5114, %v5114
        %v5118 = vunpack.c.l.s4 1966171168
        %v5119 = vunpack.c.0.s8 %v5118
        %v5120 = vlaneseq
        %v5121 = vshrl.u32 %v5120, 7
        %v5122 = vsub.s32 %v5119, %v5121
        %v5123 = vrot.slane %v214, %v5122
        %v5124 = vcombine.high %v5123, %v5123
        %v5126 = vunpack.c.l.s4 1966171168
        %v5127 = vunpack.c.0.s8 %v5126
        %v5128 = vlaneseq
        %v5129 = vshrl.u32 %v5128, 7
        %v5130 = vsub.s32 %v5127, %v5129
        %v5131 = vrot.slane %v5123, %v5130
        %v5133 = vunpack.c.l.s4 1966171168
        %v5134 = vunpack.c.0.s8 %v5133
        %v5135 = vlaneseq
        %v5136 = vshrl.u32 %v5135, 7
        %v5137 = vsub.s32 %v5134, %v5136
        %v5138 = vrot.slane %v5124, %v5137
        %v5139 = vcombine.high %v5131, %v5131
        %v5140 = vcombine.low %v351, %v359
        %v5142 = vunpack.c.l.s4 1935823168
        %v5143 = vunpack.c.0.s8 %v5142
        %v5144 = vlaneseq
        %v5145 = vshrl.u32 %v5144, 7
        %v5146 = vsub.s32 %v5143, %v5145
        %v5147 = vrot.slane %v5140, %v5146
        %v5148 = vcombine.low %v5147, %v3723
        %v5150 = vunpack.c.l.s4 1935823168
        %v5151 = vunpack.c.0.s8 %v5150
        %v5152 = vlaneseq
        %v5153 = vshrl.u32 %v5152, 7
        %v5154 = vsub.s32 %v5151, %v5153
        %v5155 = vrot.slane %v5148, %v5154
        %v5156 = vcombine.low %v3157, %v3739
        %v5158 = vunpack.c.l.s4 1935823168
        %v5159 = vunpack.c.0.s8 %v5158
        %v5160 = vlaneseq
        %v5161 = vshrl.u32 %v5160, 7
        %v5162 = vsub.s32 %v5159, %v5161
        %v5163 = vrot.slane %v5156, %v5162
        %v5164 = vcombine.low %v3181, %v3755
        %v5166 = vunpack.c.l.s4 1935823168
        %v5167 = vunpack.c.0.s8 %v5166
        %v5168 = vlaneseq
        %v5169 = vshrl.u32 %v5168, 7
        %v5170 = vsub.s32 %v5167, %v5169
        %v5171 = vrot.slane %v5164, %v5170
        %v5172 = vcombine.low %v429, %v445
        %v5174 = vunpack.c.l.s4 1935823168
        %v5175 = vunpack.c.0.s8 %v5174
        %v5176 = vlaneseq
        %v5177 = vshrl.u32 %v5176, 7
        %v5178 = vsub.s32 %v5175, %v5177
        %v5179 = vrot.slane %v5172, %v5178
        %v5180 = vcombine.low %v5179, %v3771
        %v5182 = vunpack.c.l.s4 1935823168
        %v5183 = vunpack.c.0.s8 %v5182
        %v5184 = vlaneseq
        %v5185 = vshrl.u32 %v5184, 7
        %v5186 = vsub.s32 %v5183, %v5185
        %v5187 = vrot.slane %v5180, %v5186
        %v5188 = vcombine.low %v3213, %v3787
        %v5190 = vunpack.c.l.s4 1935823168
        %v5191 = vunpack.c.0.s8 %v5190
        %v5192 = vlaneseq
        %v5193 = vshrl.u32 %v5192, 7
        %v5194 = vsub.s32 %v5191, %v5193
        %v5195 = vrot.slane %v5188, %v5194
        %v5196 = vcombine.low %v3237, %v3803
        %v5198 = vunpack.c.l.s4 1935823168
        %v5199 = vunpack.c.0.s8 %v5198
        %v5200 = vlaneseq
        %v5201 = vshrl.u32 %v5200, 7
        %v5202 = vsub.s32 %v5199, %v5201
        %v5203 = vrot.slane %v5196, %v5202
        %v5204 = vcombine.low %v3253, %v3819
        %v5206 = vunpack.c.l.s4 1935823168
        %v5207 = vunpack.c.0.s8 %v5206
        %v5208 = vlaneseq
        %v5209 = vshrl.u32 %v5208, 7
        %v5210 = vsub.s32 %v5207, %v5209
        %v5211 = vrot.slane %v5204, %v5210
        %v5212 = vcombine.low %v539, %v547
        %v5214 = vunpack.c.l.s4 1935823168
        %v5215 = vunpack.c.0.s8 %v5214
        %v5216 = vlaneseq
        %v5217 = vshrl.u32 %v5216, 7
        %v5218 = vsub.s32 %v5215, %v5217
        %v5219 = vrot.slane %v5212, %v5218
        %v5220 = vcombine.low %v5219, %v3835
        %v5222 = vunpack.c.l.s4 1935823168
        %v5223 = vunpack.c.0.s8 %v5222
        %v5224 = vlaneseq
        %v5225 = vshrl.u32 %v5224, 7
        %v5226 = vsub.s32 %v5223, %v5225
        %v5227 = vrot.slane %v5220, %v5226
        %v5228 = vcombine.low %v3285, %v3851
        %v5230 = vunpack.c.l.s4 1935823168
        %v5231 = vunpack.c.0.s8 %v5230
        %v5232 = vlaneseq
        %v5233 = vshrl.u32 %v5232, 7
        %v5234 = vsub.s32 %v5231, %v5233
        %v5235 = vrot.slane %v5228, %v5234
        %v5236 = vcombine.low %v3309, %v3867
        %v5238 = vunpack.c.l.s4 1935823168
        %v5239 = vunpack.c.0.s8 %v5238
        %v5240 = vlaneseq
        %v5241 = vshrl.u32 %v5240, 7
        %v5242 = vsub.s32 %v5239, %v5241
        %v5243 = vrot.slane %v5236, %v5242
        %v5244 = vcombine.low %v617, %v633
        %v5246 = vunpack.c.l.s4 1935823168
        %v5247 = vunpack.c.0.s8 %v5246
        %v5248 = vlaneseq
        %v5249 = vshrl.u32 %v5248, 7
        %v5250 = vsub.s32 %v5247, %v5249
        %v5251 = vrot.slane %v5244, %v5250
        %v5252 = vcombine.low %v5251, %v3883
        %v5254 = vunpack.c.l.s4 1935823168
        %v5255 = vunpack.c.0.s8 %v5254
        %v5256 = vlaneseq
        %v5257 = vshrl.u32 %v5256, 7
        %v5258 = vsub.s32 %v5255, %v5257
        %v5259 = vrot.slane %v5252, %v5258
        %v5260 = vcombine.low %v3341, %v3899
        %v5262 = vunpack.c.l.s4 1935823168
        %v5263 = vunpack.c.0.s8 %v5262
        %v5264 = vlaneseq
        %v5265 = vshrl.u32 %v5264, 7
        %v5266 = vsub.s32 %v5263, %v5265
        %v5267 = vrot.slane %v5260, %v5266
        %v5268 = vcombine.low %v3365, %v3915
        %v5270 = vunpack.c.l.s4 1935823168
        %v5271 = vunpack.c.0.s8 %v5270
        %v5272 = vlaneseq
        %v5273 = vshrl.u32 %v5272, 7
        %v5274 = vsub.s32 %v5271, %v5273
        %v5275 = vrot.slane %v5268, %v5274
        %v5276 = vcombine.low %v3381, %v3931
        %v5278 = vunpack.c.l.s4 1935823168
        %v5279 = vunpack.c.0.s8 %v5278
        %v5280 = vlaneseq
        %v5281 = vshrl.u32 %v5280, 7
        %v5282 = vsub.s32 %v5279, %v5281
        %v5283 = vrot.slane %v5276, %v5282
        %v5284 = vcombine.low %v727, %v735
        %v5286 = vunpack.c.l.s4 1935823168
        %v5287 = vunpack.c.0.s8 %v5286
        %v5288 = vlaneseq
        %v5289 = vshrl.u32 %v5288, 7
        %v5290 = vsub.s32 %v5287, %v5289
        %v5291 = vrot.slane %v5284, %v5290
        %v5292 = vcombine.low %v5291, %v3947
        %v5294 = vunpack.c.l.s4 1935823168
        %v5295 = vunpack.c.0.s8 %v5294
        %v5296 = vlaneseq
        %v5297 = vshrl.u32 %v5296, 7
        %v5298 = vsub.s32 %v5295, %v5297
        %v5299 = vrot.slane %v5292, %v5298
        %v5300 = vcombine.low %v3413, %v3963
        %v5302 = vunpack.c.l.s4 1935823168
        %v5303 = vunpack.c.0.s8 %v5302
        %v5304 = vlaneseq
        %v5305 = vshrl.u32 %v5304, 7
        %v5306 = vsub.s32 %v5303, %v5305
        %v5307 = vrot.slane %v5300, %v5306
        %v5308 = vcombine.low %v3437, %v3979
        %v5310 = vunpack.c.l.s4 1935823168
        %v5311 = vunpack.c.0.s8 %v5310
        %v5312 = vlaneseq
        %v5313 = vshrl.u32 %v5312, 7
        %v5314 = vsub.s32 %v5311, %v5313
        %v5315 = vrot.slane %v5308, %v5314
        %v5316 = vcombine.low %v805, %v821
        %v5318 = vunpack.c.l.s4 1935823168
        %v5319 = vunpack.c.0.s8 %v5318
        %v5320 = vlaneseq
        %v5321 = vshrl.u32 %v5320, 7
        %v5322 = vsub.s32 %v5319, %v5321
        %v5323 = vrot.slane %v5316, %v5322
        %v5324 = vcombine.low %v5323, %v3995
        %v5326 = vunpack.c.l.s4 1935823168
        %v5327 = vunpack.c.0.s8 %v5326
        %v5328 = vlaneseq
        %v5329 = vshrl.u32 %v5328, 7
        %v5330 = vsub.s32 %v5327, %v5329
        %v5331 = vrot.slane %v5324, %v5330
        %v5332 = vcombine.low %v3469, %v4011
        %v5334 = vunpack.c.l.s4 1935823168
        %v5335 = vunpack.c.0.s8 %v5334
        %v5336 = vlaneseq
        %v5337 = vshrl.u32 %v5336, 7
        %v5338 = vsub.s32 %v5335, %v5337
        %v5339 = vrot.slane %v5332, %v5338
        %v5340 = vcombine.low %v3493, %v4027
        %v5342 = vunpack.c.l.s4 1935823168
        %v5343 = vunpack.c.0.s8 %v5342
        %v5344 = vlaneseq
        %v5345 = vshrl.u32 %v5344, 7
        %v5346 = vsub.s32 %v5343, %v5345
        %v5347 = vrot.slane %v5340, %v5346
        %v5348 = vcombine.low %v3509, %v4044
        %v5350 = vunpack.c.l.s4 1935823168
        %v5351 = vunpack.c.0.s8 %v5350
        %v5352 = vlaneseq
        %v5353 = vshrl.u32 %v5352, 7
        %v5354 = vsub.s32 %v5351, %v5353
        %v5355 = vrot.slane %v5348, %v5354
        %v5356 = vcombine.low %v3651, %v3659
        %v5358 = vunpack.c.l.s4 1935823168
        %v5359 = vunpack.c.0.s8 %v5358
        %v5360 = vlaneseq
        %v5361 = vshrl.u32 %v5360, 7
        %v5362 = vsub.s32 %v5359, %v5361
        %v5363 = vrot.slane %v5356, %v5362
        %v5364 = vcombine.low %v5363, %v4068
        %v5366 = vunpack.c.l.s4 1935823168
        %v5367 = vunpack.c.0.s8 %v5366
        %v5368 = vlaneseq
        %v5369 = vshrl.u32 %v5368, 7
        %v5370 = vsub.s32 %v5367, %v5369
        %v5371 = vrot.slane %v5364, %v5370
        %v5372 = vcombine.low %v3675, %v3683
        %v5373 = vcombine.low %v3682, %v5107
        %v5375 = vunpack.c.l.s4 1935823168
        %v5376 = vunpack.c.0.s8 %v5375
        %v5377 = vlaneseq
        %v5378 = vshrl.u32 %v5377, 7
        %v5379 = vsub.s32 %v5376, %v5378
        %v5380 = vrot.slane %v5372, %v5379
        %v5382 = vunpack.c.l.s4 1935823168
        %v5383 = vunpack.c.0.s8 %v5382
        %v5384 = vlaneseq
        %v5385 = vshrl.u32 %v5384, 7
        %v5386 = vsub.s32 %v5383, %v5385
        %v5387 = vrot.slane %v5373, %v5386
        %v5388 = vcombine.low %v5380, %v5387
        %v5390 = vunpack.c.l.s4 1935823168
        %v5391 = vunpack.c.0.s8 %v5390
        %v5392 = vlaneseq
        %v5393 = vshrl.u32 %v5392, 7
        %v5394 = vsub.s32 %v5391, %v5393
        %v5395 = vrot.slane %v5388, %v5394
        %v5396 = vcombine.low %v5114, %v5116
        %v5397 = vcombine.low %v5115, %v5131
        %v5399 = vunpack.c.l.s4 1935823168
        %v5400 = vunpack.c.0.s8 %v5399
        %v5401 = vlaneseq
        %v5402 = vshrl.u32 %v5401, 7
        %v5403 = vsub.s32 %v5400, %v5402
        %v5404 = vrot.slane %v5396, %v5403
        %v5406 = vunpack.c.l.s4 1935823168
        %v5407 = vunpack.c.0.s8 %v5406
        %v5408 = vlaneseq
        %v5409 = vshrl.u32 %v5408, 7
        %v5410 = vsub.s32 %v5407, %v5409
        %v5411 = vrot.slane %v5397, %v5410
        %v5412 = vcombine.low %v5404, %v5411
        %v5414 = vunpack.c.l.s4 1935823168
        %v5415 = vunpack.c.0.s8 %v5414
        %v5416 = vlaneseq
        %v5417 = vshrl.u32 %v5416, 7
        %v5418 = vsub.s32 %v5415, %v5417
        %v5419 = vrot.slane %v5412, %v5418
        %v5421 = vunpack.c.l.s4 1935823168
        %v5422 = vunpack.c.0.s8 %v5421
        %v5423 = vlaneseq
        %v5424 = vshrl.u32 %v5423, 7
        %v5425 = vsub.s32 %v5422, %v5424
        %v5426 = vrot.slane %v5138, %v5425
        %v5428 = vunpack.c.l.s4 1935823168
        %v5429 = vunpack.c.0.s8 %v5428
        %v5430 = vlaneseq
        %v5431 = vshrl.u32 %v5430, 7
        %v5432 = vsub.s32 %v5429, %v5431
        %v5433 = vrot.slane %v5139, %v5432
        %v5434 = vcombine.low %v5426, %v5433
        %v5436 = vunpack.c.l.s4 1935823168
        %v5437 = vunpack.c.0.s8 %v5436
        %v5438 = vlaneseq
        %v5439 = vshrl.u32 %v5438, 7
        %v5440 = vsub.s32 %v5437, %v5439
        %v5441 = vrot.slane %v5434, %v5440
        %5442 = vrot.lane.b32.xlu0 %v5155, 24
        %v5443 = vpop.permute.xlu0 %5442
        %5444 = vrot.lane.b32.xlu0 %v5163, 24
        %v5445 = vpop.permute.xlu0 %5444
        %5446 = vrot.lane.b32.xlu0 %v5171, 24
        %v5447 = vpop.permute.xlu0 %5446
        %5448 = vrot.lane.b32.xlu0 %v5187, 24
        %v5449 = vpop.permute.xlu0 %5448
        %5450 = vrot.lane.b32.xlu0 %v5195, 24
        %v5451 = vpop.permute.xlu0 %5450
        %5452 = vrot.lane.b32.xlu0 %v5203, 24
        %v5453 = vpop.permute.xlu0 %5452
        %5454 = vrot.lane.b32.xlu0 %v5211, 24
        %v5455 = vpop.permute.xlu0 %5454
        %5456 = vrot.lane.b32.xlu0 %v5227, 24
        %v5457 = vpop.permute.xlu0 %5456
        %5458 = vrot.lane.b32.xlu0 %v5235, 24
        %v5459 = vpop.permute.xlu0 %5458
        %5460 = vrot.lane.b32.xlu0 %v5243, 24
        %v5461 = vpop.permute.xlu0 %5460
        %5462 = vrot.lane.b32.xlu0 %v5259, 24
        %v5463 = vpop.permute.xlu0 %5462
        %5464 = vrot.lane.b32.xlu0 %v5267, 24
        %v5465 = vpop.permute.xlu0 %5464
        %5466 = vrot.lane.b32.xlu0 %v5275, 24
        %v5467 = vpop.permute.xlu0 %5466
        %5468 = vrot.lane.b32.xlu0 %v5283, 24
        %v5469 = vpop.permute.xlu0 %5468
        %5470 = vrot.lane.b32.xlu0 %v5299, 24
        %v5471 = vpop.permute.xlu0 %5470
        %5472 = vrot.lane.b32.xlu0 %v5307, 24
        %v5473 = vpop.permute.xlu0 %5472
        %5474 = vrot.lane.b32.xlu0 %v5315, 24
        %v5475 = vpop.permute.xlu0 %5474
        %5476 = vrot.lane.b32.xlu0 %v5331, 24
        %v5477 = vpop.permute.xlu0 %5476
        %5478 = vrot.lane.b32.xlu0 %v5339, 24
        %v5479 = vpop.permute.xlu0 %5478
        %5480 = vrot.lane.b32.xlu0 %v5347, 24
        %v5481 = vpop.permute.xlu0 %5480
        %5482 = vrot.lane.b32.xlu0 %v5355, 24
        %v5483 = vpop.permute.xlu0 %5482
        %5484 = vrot.lane.b32.xlu0 %v5371, 24
        %v5485 = vpop.permute.xlu0 %5484
        %5486 = vrot.lane.b32.xlu0 %v5395, 24
        %v5487 = vpop.permute.xlu0 %5486
        %5488 = vrot.lane.b32.xlu0 %v5419, 24
        %v5489 = vpop.permute.xlu0 %5488
        %5490 = vrot.lane.b32.xlu0 %v5441, 24
        %v5491 = vpop.permute.xlu0 %5490
        %vm5517 = vcmask 224448
        %5518 = vst.msk [vmem:[#allocation2] sm:$0xf] %vm5517, %v5443
        %5519 = vst.msk [vmem:[#allocation2 + $0x4] sm:$0xf] %vm5517, %v5445
        %5520 = vst.msk [vmem:[#allocation2 + $0x8] sm:$0xf] %vm5517, %v5447
        %5521 = vst.msk [vmem:[#allocation2 + $0xc] sm:$0xf] %vm5517, %v5449
        %5522 = vst.msk [vmem:[#allocation2 + $0x10] sm:$0xf] %vm5517, %v5451
        %5523 = vst.msk [vmem:[#allocation2 + $0x14] sm:$0xf] %vm5517, %v5453
        %5524 = vst.msk [vmem:[#allocation2 + $0x18] sm:$0xf] %vm5517, %v5455
        %5525 = vst.msk [vmem:[#allocation2 + $0x1c] sm:$0xf] %vm5517, %v5457
        %5526 = vst.msk [vmem:[#allocation2 + $0x20] sm:$0xf] %vm5517, %v5459
        %5527 = vst.msk [vmem:[#allocation2 + $0x24] sm:$0xf] %vm5517, %v5461
        %5528 = vst.msk [vmem:[#allocation2 + $0x28] sm:$0xf] %vm5517, %v5463
        %5529 = vst.msk [vmem:[#allocation2 + $0x2c] sm:$0xf] %vm5517, %v5465
        %5530 = vst.msk [vmem:[#allocation2 + $0x30] sm:$0xf] %vm5517, %v5467
        %5531 = vst.msk [vmem:[#allocation2 + $0x34] sm:$0xf] %vm5517, %v5469
        %5532 = vst.msk [vmem:[#allocation2 + $0x38] sm:$0xf] %vm5517, %v5471
        %5533 = vst.msk [vmem:[#allocation2 + $0x3c] sm:$0xf] %vm5517, %v5473
        %5534 = vst.msk [vmem:[#allocation2 + $0x40] sm:$0xf] %vm5517, %v5475
        %5535 = vst.msk [vmem:[#allocation2 + $0x44] sm:$0xf] %vm5517, %v5477
        %5536 = vst.msk [vmem:[#allocation2 + $0x48] sm:$0xf] %vm5517, %v5479
        %5537 = vst.msk [vmem:[#allocation2 + $0x4c] sm:$0xf] %vm5517, %v5481
        %5538 = vst.msk [vmem:[#allocation2 + $0x50] sm:$0xf] %vm5517, %v5483
        %5539 = vst.msk [vmem:[#allocation2 + $0x54] sm:$0xf] %vm5517, %v5485
        %5540 = vst.msk [vmem:[#allocation2 + $0x58] sm:$0xf] %vm5517, %v5487
        %5541 = vst.msk [vmem:[#allocation2 + $0x5c] sm:$0xf] %vm5517, %v5489
        %vm5542 = vcmask 222400
        %5543 = vst.msk [vmem:[#allocation2 + $0x60] sm:$0x3] %vm5542, %v5491
        %v5544 = vcombine.high %v5138, %v5138
        %v5546 = vshrl.u32 %v5107, 16
        %v5548 = vrot.slane %v5546, 7
        %v5549 = vrot.slane %v5548, 1
        %v5551 = vshll.u32 %v5114, 16
        %v5553 = vsel %vm1579, %v5549, %v5551
        %v5554 = vshrl.u32 %v5114, 16
        %v5556 = vrot.slane %v5554, 7
        %v5557 = vrot.slane %v5556, 1
        %v5559 = vshll.u32 %v5115, 16
        %v5561 = vsel %vm1579, %v5557, %v5559
        %v5562 = vshrl.u32 %v5115, 16
        %v5564 = vrot.slane %v5562, 7
        %v5565 = vrot.slane %v5564, 1
        %v5567 = vshll.u32 %v5116, 16
        %v5569 = vsel %vm1579, %v5565, %v5567
        %v5570 = vshrl.u32 %v5116, 16
        %v5572 = vrot.slane %v5570, 7
        %v5573 = vrot.slane %v5572, 1
        %v5575 = vshll.u32 %v5131, 16
        %v5577 = vsel %vm1579, %v5573, %v5575
        %v5578 = vshrl.u32 %v5131, 16
        %v5580 = vrot.slane %v5578, 7
        %v5581 = vrot.slane %v5580, 1
        %v5583 = vshll.u32 %v5138, 16
        %v5585 = vsel %vm1579, %v5581, %v5583
        %v5586 = vshrl.u32 %v5138, 16
        %v5588 = vrot.slane %v5586, 7
        %v5589 = vrot.slane %v5588, 1
        %v5591 = vshll.u32 %v5139, 16
        %v5593 = vsel %vm1579, %v5589, %v5591
        %v5594 = vshrl.u32 %v5139, 16
        %v5596 = vrot.slane %v5594, 7
        %v5597 = vrot.slane %v5596, 1
        %v5599 = vshll.u32 %v5544, 16
        %v5601 = vsel %vm1579, %v5597, %v5599
        %v5602 = vcombine.low %v1702, %v1718
        %v5604 = vunpack.c.l.s4 1935823168
        %v5605 = vunpack.c.0.s8 %v5604
        %v5606 = vlaneseq
        %v5607 = vshrl.u32 %v5606, 7
        %v5608 = vsub.s32 %v5605, %v5607
        %v5609 = vrot.slane %v5602, %v5608
        %v5610 = vcombine.low %v5609, %v4305
        %v5612 = vunpack.c.l.s4 1935823168
        %v5613 = vunpack.c.0.s8 %v5612
        %v5614 = vlaneseq
        %v5615 = vshrl.u32 %v5614, 7
        %v5616 = vsub.s32 %v5613, %v5615
        %v5617 = vrot.slane %v5610, %v5616
        %v5618 = vcombine.low %v1734, %v1750
        %v5620 = vunpack.c.l.s4 1935823168
        %v5621 = vunpack.c.0.s8 %v5620
        %v5622 = vlaneseq
        %v5623 = vshrl.u32 %v5622, 7
        %v5624 = vsub.s32 %v5621, %v5623
        %v5625 = vrot.slane %v5618, %v5624
        %v5626 = vcombine.low %v5625, %v4321
        %v5628 = vunpack.c.l.s4 1935823168
        %v5629 = vunpack.c.0.s8 %v5628
        %v5630 = vlaneseq
        %v5631 = vshrl.u32 %v5630, 7
        %v5632 = vsub.s32 %v5629, %v5631
        %v5633 = vrot.slane %v5626, %v5632
        %v5634 = vcombine.low %v1767, %v1783
        %v5636 = vunpack.c.l.s4 1935823168
        %v5637 = vunpack.c.0.s8 %v5636
        %v5638 = vlaneseq
        %v5639 = vshrl.u32 %v5638, 7
        %v5640 = vsub.s32 %v5637, %v5639
        %v5641 = vrot.slane %v5634, %v5640
        %v5642 = vcombine.low %v5641, %v4337
        %v5644 = vunpack.c.l.s4 1935823168
        %v5645 = vunpack.c.0.s8 %v5644
        %v5646 = vlaneseq
        %v5647 = vshrl.u32 %v5646, 7
        %v5648 = vsub.s32 %v5645, %v5647
        %v5649 = vrot.slane %v5642, %v5648
        %v5650 = vcombine.low %v1799, %v1816
        %v5652 = vunpack.c.l.s4 1935823168
        %v5653 = vunpack.c.0.s8 %v5652
        %v5654 = vlaneseq
        %v5655 = vshrl.u32 %v5654, 7
        %v5656 = vsub.s32 %v5653, %v5655
        %v5657 = vrot.slane %v5650, %v5656
        %v5658 = vcombine.low %v5657, %v4353
        %v5660 = vunpack.c.l.s4 1935823168
        %v5661 = vunpack.c.0.s8 %v5660
        %v5662 = vlaneseq
        %v5663 = vshrl.u32 %v5662, 7
        %v5664 = vsub.s32 %v5661, %v5663
        %v5665 = vrot.slane %v5658, %v5664
        %v5666 = vcombine.low %v1832, %v1848
        %v5668 = vunpack.c.l.s4 1935823168
        %v5669 = vunpack.c.0.s8 %v5668
        %v5670 = vlaneseq
        %v5671 = vshrl.u32 %v5670, 7
        %v5672 = vsub.s32 %v5669, %v5671
        %v5673 = vrot.slane %v5666, %v5672
        %v5674 = vcombine.low %v5673, %v4369
        %v5676 = vunpack.c.l.s4 1935823168
        %v5677 = vunpack.c.0.s8 %v5676
        %v5678 = vlaneseq
        %v5679 = vshrl.u32 %v5678, 7
        %v5680 = vsub.s32 %v5677, %v5679
        %v5681 = vrot.slane %v5674, %v5680
        %v5682 = vcombine.low %v1864, %v1881
        %v5684 = vunpack.c.l.s4 1935823168
        %v5685 = vunpack.c.0.s8 %v5684
        %v5686 = vlaneseq
        %v5687 = vshrl.u32 %v5686, 7
        %v5688 = vsub.s32 %v5685, %v5687
        %v5689 = vrot.slane %v5682, %v5688
        %v5690 = vcombine.low %v5689, %v4385
        %v5692 = vunpack.c.l.s4 1935823168
        %v5693 = vunpack.c.0.s8 %v5692
        %v5694 = vlaneseq
        %v5695 = vshrl.u32 %v5694, 7
        %v5696 = vsub.s32 %v5693, %v5695
        %v5697 = vrot.slane %v5690, %v5696
        %v5698 = vcombine.low %v1897, %v1913
        %v5700 = vunpack.c.l.s4 1935823168
        %v5701 = vunpack.c.0.s8 %v5700
        %v5702 = vlaneseq
        %v5703 = vshrl.u32 %v5702, 7
        %v5704 = vsub.s32 %v5701, %v5703
        %v5705 = vrot.slane %v5698, %v5704
        %v5706 = vcombine.low %v5705, %v4401
        %v5708 = vunpack.c.l.s4 1935823168
        %v5709 = vunpack.c.0.s8 %v5708
        %v5710 = vlaneseq
        %v5711 = vshrl.u32 %v5710, 7
        %v5712 = vsub.s32 %v5709, %v5711
        %v5713 = vrot.slane %v5706, %v5712
        %v5714 = vcombine.low %v1930, %v1946
        %v5716 = vunpack.c.l.s4 1935823168
        %v5717 = vunpack.c.0.s8 %v5716
        %v5718 = vlaneseq
        %v5719 = vshrl.u32 %v5718, 7
        %v5720 = vsub.s32 %v5717, %v5719
        %v5721 = vrot.slane %v5714, %v5720
        %v5722 = vcombine.low %v5721, %v4417
        %v5724 = vunpack.c.l.s4 1935823168
        %v5725 = vunpack.c.0.s8 %v5724
        %v5726 = vlaneseq
        %v5727 = vshrl.u32 %v5726, 7
        %v5728 = vsub.s32 %v5725, %v5727
        %v5729 = vrot.slane %v5722, %v5728
        %v5730 = vcombine.low %v1962, %v1978
        %v5732 = vunpack.c.l.s4 1935823168
        %v5733 = vunpack.c.0.s8 %v5732
        %v5734 = vlaneseq
        %v5735 = vshrl.u32 %v5734, 7
        %v5736 = vsub.s32 %v5733, %v5735
        %v5737 = vrot.slane %v5730, %v5736
        %v5738 = vcombine.low %v5737, %v4433
        %v5740 = vunpack.c.l.s4 1935823168
        %v5741 = vunpack.c.0.s8 %v5740
        %v5742 = vlaneseq
        %v5743 = vshrl.u32 %v5742, 7
        %v5744 = vsub.s32 %v5741, %v5743
        %v5745 = vrot.slane %v5738, %v5744
        %v5746 = vcombine.low %v1995, %v2011
        %v5748 = vunpack.c.l.s4 1935823168
        %v5749 = vunpack.c.0.s8 %v5748
        %v5750 = vlaneseq
        %v5751 = vshrl.u32 %v5750, 7
        %v5752 = vsub.s32 %v5749, %v5751
        %v5753 = vrot.slane %v5746, %v5752
        %v5754 = vcombine.low %v5753, %v4449
        %v5756 = vunpack.c.l.s4 1935823168
        %v5757 = vunpack.c.0.s8 %v5756
        %v5758 = vlaneseq
        %v5759 = vshrl.u32 %v5758, 7
        %v5760 = vsub.s32 %v5757, %v5759
        %v5761 = vrot.slane %v5754, %v5760
        %v5762 = vcombine.low %v2027, %v2044
        %v5764 = vunpack.c.l.s4 1935823168
        %v5765 = vunpack.c.0.s8 %v5764
        %v5766 = vlaneseq
        %v5767 = vshrl.u32 %v5766, 7
        %v5768 = vsub.s32 %v5765, %v5767
        %v5769 = vrot.slane %v5762, %v5768
        %v5770 = vcombine.low %v5769, %v4465
        %v5772 = vunpack.c.l.s4 1935823168
        %v5773 = vunpack.c.0.s8 %v5772
        %v5774 = vlaneseq
        %v5775 = vshrl.u32 %v5774, 7
        %v5776 = vsub.s32 %v5773, %v5775
        %v5777 = vrot.slane %v5770, %v5776
        %v5778 = vcombine.low %v2060, %v2076
        %v5780 = vunpack.c.l.s4 1935823168
        %v5781 = vunpack.c.0.s8 %v5780
        %v5782 = vlaneseq
        %v5783 = vshrl.u32 %v5782, 7
        %v5784 = vsub.s32 %v5781, %v5783
        %v5785 = vrot.slane %v5778, %v5784
        %v5786 = vcombine.low %v5785, %v4481
        %v5788 = vunpack.c.l.s4 1935823168
        %v5789 = vunpack.c.0.s8 %v5788
        %v5790 = vlaneseq
        %v5791 = vshrl.u32 %v5790, 7
        %v5792 = vsub.s32 %v5789, %v5791
        %v5793 = vrot.slane %v5786, %v5792
        %v5794 = vcombine.low %v2092, %v2109
        %v5796 = vunpack.c.l.s4 1935823168
        %v5797 = vunpack.c.0.s8 %v5796
        %v5798 = vlaneseq
        %v5799 = vshrl.u32 %v5798, 7
        %v5800 = vsub.s32 %v5797, %v5799
        %v5801 = vrot.slane %v5794, %v5800
        %v5802 = vcombine.low %v5801, %v4497
        %v5804 = vunpack.c.l.s4 1935823168
        %v5805 = vunpack.c.0.s8 %v5804
        %v5806 = vlaneseq
        %v5807 = vshrl.u32 %v5806, 7
        %v5808 = vsub.s32 %v5805, %v5807
        %v5809 = vrot.slane %v5802, %v5808
        %v5810 = vcombine.low %v2125, %v2141
        %v5812 = vunpack.c.l.s4 1935823168
        %v5813 = vunpack.c.0.s8 %v5812
        %v5814 = vlaneseq
        %v5815 = vshrl.u32 %v5814, 7
        %v5816 = vsub.s32 %v5813, %v5815
        %v5817 = vrot.slane %v5810, %v5816
        %v5818 = vcombine.low %v5817, %v4513
        %v5820 = vunpack.c.l.s4 1935823168
        %v5821 = vunpack.c.0.s8 %v5820
        %v5822 = vlaneseq
        %v5823 = vshrl.u32 %v5822, 7
        %v5824 = vsub.s32 %v5821, %v5823
        %v5825 = vrot.slane %v5818, %v5824
        %v5826 = vcombine.low %v2158, %v2174
        %v5828 = vunpack.c.l.s4 1935823168
        %v5829 = vunpack.c.0.s8 %v5828
        %v5830 = vlaneseq
        %v5831 = vshrl.u32 %v5830, 7
        %v5832 = vsub.s32 %v5829, %v5831
        %v5833 = vrot.slane %v5826, %v5832
        %v5834 = vcombine.low %v5833, %v4529
        %v5836 = vunpack.c.l.s4 1935823168
        %v5837 = vunpack.c.0.s8 %v5836
        %v5838 = vlaneseq
        %v5839 = vshrl.u32 %v5838, 7
        %v5840 = vsub.s32 %v5837, %v5839
        %v5841 = vrot.slane %v5834, %v5840
        %v5842 = vcombine.low %v2190, %v2206
        %v5844 = vunpack.c.l.s4 1935823168
        %v5845 = vunpack.c.0.s8 %v5844
        %v5846 = vlaneseq
        %v5847 = vshrl.u32 %v5846, 7
        %v5848 = vsub.s32 %v5845, %v5847
        %v5849 = vrot.slane %v5842, %v5848
        %v5850 = vcombine.low %v5849, %v4545
        %v5852 = vunpack.c.l.s4 1935823168
        %v5853 = vunpack.c.0.s8 %v5852
        %v5854 = vlaneseq
        %v5855 = vshrl.u32 %v5854, 7
        %v5856 = vsub.s32 %v5853, %v5855
        %v5857 = vrot.slane %v5850, %v5856
        %v5858 = vcombine.low %v2223, %v2239
        %v5860 = vunpack.c.l.s4 1935823168
        %v5861 = vunpack.c.0.s8 %v5860
        %v5862 = vlaneseq
        %v5863 = vshrl.u32 %v5862, 7
        %v5864 = vsub.s32 %v5861, %v5863
        %v5865 = vrot.slane %v5858, %v5864
        %v5866 = vcombine.low %v5865, %v4561
        %v5868 = vunpack.c.l.s4 1935823168
        %v5869 = vunpack.c.0.s8 %v5868
        %v5870 = vlaneseq
        %v5871 = vshrl.u32 %v5870, 7
        %v5872 = vsub.s32 %v5869, %v5871
        %v5873 = vrot.slane %v5866, %v5872
        %v5874 = vcombine.low %v2255, %v2272
        %v5876 = vunpack.c.l.s4 1935823168
        %v5877 = vunpack.c.0.s8 %v5876
        %v5878 = vlaneseq
        %v5879 = vshrl.u32 %v5878, 7
        %v5880 = vsub.s32 %v5877, %v5879
        %v5881 = vrot.slane %v5874, %v5880
        %v5882 = vcombine.low %v5881, %v4577
        %v5884 = vunpack.c.l.s4 1935823168
        %v5885 = vunpack.c.0.s8 %v5884
        %v5886 = vlaneseq
        %v5887 = vshrl.u32 %v5886, 7
        %v5888 = vsub.s32 %v5885, %v5887
        %v5889 = vrot.slane %v5882, %v5888
        %v5890 = vcombine.low %v2288, %v2304
        %v5892 = vunpack.c.l.s4 1935823168
        %v5893 = vunpack.c.0.s8 %v5892
        %v5894 = vlaneseq
        %v5895 = vshrl.u32 %v5894, 7
        %v5896 = vsub.s32 %v5893, %v5895
        %v5897 = vrot.slane %v5890, %v5896
        %v5898 = vcombine.low %v5897, %v4593
        %v5900 = vunpack.c.l.s4 1935823168
        %v5901 = vunpack.c.0.s8 %v5900
        %v5902 = vlaneseq
        %v5903 = vshrl.u32 %v5902, 7
        %v5904 = vsub.s32 %v5901, %v5903
        %v5905 = vrot.slane %v5898, %v5904
        %v5906 = vcombine.low %v2320, %v2337
        %v5908 = vunpack.c.l.s4 1935823168
        %v5909 = vunpack.c.0.s8 %v5908
        %v5910 = vlaneseq
        %v5911 = vshrl.u32 %v5910, 7
        %v5912 = vsub.s32 %v5909, %v5911
        %v5913 = vrot.slane %v5906, %v5912
        %v5914 = vcombine.low %v5913, %v4609
        %v5916 = vunpack.c.l.s4 1935823168
        %v5917 = vunpack.c.0.s8 %v5916
        %v5918 = vlaneseq
        %v5919 = vshrl.u32 %v5918, 7
        %v5920 = vsub.s32 %v5917, %v5919
        %v5921 = vrot.slane %v5914, %v5920
        %v5922 = vcombine.low %v2353, %v2369
        %v5924 = vunpack.c.l.s4 1935823168
        %v5925 = vunpack.c.0.s8 %v5924
        %v5926 = vlaneseq
        %v5927 = vshrl.u32 %v5926, 7
        %v5928 = vsub.s32 %v5925, %v5927
        %v5929 = vrot.slane %v5922, %v5928
        %v5930 = vcombine.low %v5929, %v4626
        %v5932 = vunpack.c.l.s4 1935823168
        %v5933 = vunpack.c.0.s8 %v5932
        %v5934 = vlaneseq
        %v5935 = vshrl.u32 %v5934, 7
        %v5936 = vsub.s32 %v5933, %v5935
        %v5937 = vrot.slane %v5930, %v5936
        %v5938 = vcombine.low %v4217, %v4233
        %v5940 = vunpack.c.l.s4 1935823168
        %v5941 = vunpack.c.0.s8 %v5940
        %v5942 = vlaneseq
        %v5943 = vshrl.u32 %v5942, 7
        %v5944 = vsub.s32 %v5941, %v5943
        %v5945 = vrot.slane %v5938, %v5944
        %v5946 = vcombine.low %v5945, %v4650
        %v5948 = vunpack.c.l.s4 1935823168
        %v5949 = vunpack.c.0.s8 %v5948
        %v5950 = vlaneseq
        %v5951 = vshrl.u32 %v5950, 7
        %v5952 = vsub.s32 %v5949, %v5951
        %v5953 = vrot.slane %v5946, %v5952
        %v5954 = vcombine.low %v4249, %v4265
        %v5955 = vcombine.low %v4257, %v5553
        %v5957 = vunpack.c.l.s4 1935823168
        %v5958 = vunpack.c.0.s8 %v5957
        %v5959 = vlaneseq
        %v5960 = vshrl.u32 %v5959, 7
        %v5961 = vsub.s32 %v5958, %v5960
        %v5962 = vrot.slane %v5954, %v5961
        %v5964 = vunpack.c.l.s4 1935823168
        %v5965 = vunpack.c.0.s8 %v5964
        %v5966 = vlaneseq
        %v5967 = vshrl.u32 %v5966, 7
        %v5968 = vsub.s32 %v5965, %v5967
        %v5969 = vrot.slane %v5955, %v5968
        %v5970 = vcombine.low %v5962, %v5969
        %v5972 = vunpack.c.l.s4 1935823168
        %v5973 = vunpack.c.0.s8 %v5972
        %v5974 = vlaneseq
        %v5975 = vshrl.u32 %v5974, 7
        %v5976 = vsub.s32 %v5973, %v5975
        %v5977 = vrot.slane %v5970, %v5976
        %v5978 = vcombine.low %v5561, %v5577
        %v5979 = vcombine.low %v5569, %v5585
        %v5981 = vunpack.c.l.s4 1935823168
        %v5982 = vunpack.c.0.s8 %v5981
        %v5983 = vlaneseq
        %v5984 = vshrl.u32 %v5983, 7
        %v5985 = vsub.s32 %v5982, %v5984
        %v5986 = vrot.slane %v5978, %v5985
        %v5988 = vunpack.c.l.s4 1935823168
        %v5989 = vunpack.c.0.s8 %v5988
        %v5990 = vlaneseq
        %v5991 = vshrl.u32 %v5990, 7
        %v5992 = vsub.s32 %v5989, %v5991
        %v5993 = vrot.slane %v5979, %v5992
        %v5994 = vcombine.low %v5986, %v5993
        %v5996 = vunpack.c.l.s4 1935823168
        %v5997 = vunpack.c.0.s8 %v5996
        %v5998 = vlaneseq
        %v5999 = vshrl.u32 %v5998, 7
        %v6000 = vsub.s32 %v5997, %v5999
        %v6001 = vrot.slane %v5994, %v6000
        %v6003 = vunpack.c.l.s4 1935823168
        %v6004 = vunpack.c.0.s8 %v6003
        %v6005 = vlaneseq
        %v6006 = vshrl.u32 %v6005, 7
        %v6007 = vsub.s32 %v6004, %v6006
        %v6008 = vrot.slane %v5593, %v6007
        %v6010 = vunpack.c.l.s4 1935823168
        %v6011 = vunpack.c.0.s8 %v6010
        %v6012 = vlaneseq
        %v6013 = vshrl.u32 %v6012, 7
        %v6014 = vsub.s32 %v6011, %v6013
        %v6015 = vrot.slane %v5601, %v6014
        %v6016 = vcombine.low %v6008, %v6015
        %v6018 = vunpack.c.l.s4 1935823168
        %v6019 = vunpack.c.0.s8 %v6018
        %v6020 = vlaneseq
        %v6021 = vshrl.u32 %v6020, 7
        %v6022 = vsub.s32 %v6019, %v6021
        %v6023 = vrot.slane %v6016, %v6022
        %6024 = vrot.lane.b32.xlu0 %v5617, 28
        %v6025 = vpop.permute.xlu0 %6024
        %6026 = vrot.lane.b32.xlu0 %v5633, 28
        %v6027 = vpop.permute.xlu0 %6026
        %6028 = vrot.lane.b32.xlu0 %v5649, 28
        %v6029 = vpop.permute.xlu0 %6028
        %6030 = vrot.lane.b32.xlu0 %v5665, 28
        %v6031 = vpop.permute.xlu0 %6030
        %6032 = vrot.lane.b32.xlu0 %v5681, 28
        %v6033 = vpop.permute.xlu0 %6032
        %6034 = vrot.lane.b32.xlu0 %v5697, 28
        %v6035 = vpop.permute.xlu0 %6034
        %6036 = vrot.lane.b32.xlu0 %v5713, 28
        %v6037 = vpop.permute.xlu0 %6036
        %6038 = vrot.lane.b32.xlu0 %v5729, 28
        %v6039 = vpop.permute.xlu0 %6038
        %6040 = vrot.lane.b32.xlu0 %v5745, 28
        %v6041 = vpop.permute.xlu0 %6040
        %6042 = vrot.lane.b32.xlu0 %v5761, 28
        %v6043 = vpop.permute.xlu0 %6042
        %6044 = vrot.lane.b32.xlu0 %v5777, 28
        %v6045 = vpop.permute.xlu0 %6044
        %6046 = vrot.lane.b32.xlu0 %v5793, 28
        %v6047 = vpop.permute.xlu0 %6046
        %6048 = vrot.lane.b32.xlu0 %v5809, 28
        %v6049 = vpop.permute.xlu0 %6048
        %6050 = vrot.lane.b32.xlu0 %v5825, 28
        %v6051 = vpop.permute.xlu0 %6050
        %6052 = vrot.lane.b32.xlu0 %v5841, 28
        %v6053 = vpop.permute.xlu0 %6052
        %6054 = vrot.lane.b32.xlu0 %v5857, 28
        %v6055 = vpop.permute.xlu0 %6054
        %6056 = vrot.lane.b32.xlu0 %v5873, 28
        %v6057 = vpop.permute.xlu0 %6056
        %6058 = vrot.lane.b32.xlu0 %v5889, 28
        %v6059 = vpop.permute.xlu0 %6058
        %6060 = vrot.lane.b32.xlu0 %v5905, 28
        %v6061 = vpop.permute.xlu0 %6060
        %6062 = vrot.lane.b32.xlu0 %v5921, 28
        %v6063 = vpop.permute.xlu0 %6062
        %6064 = vrot.lane.b32.xlu0 %v5937, 28
        %v6065 = vpop.permute.xlu0 %6064
        %6066 = vrot.lane.b32.xlu0 %v5953, 28
        %v6067 = vpop.permute.xlu0 %6066
        %6068 = vrot.lane.b32.xlu0 %v5977, 28
        %v6069 = vpop.permute.xlu0 %6068
        %6070 = vrot.lane.b32.xlu0 %v6001, 28
        %v6071 = vpop.permute.xlu0 %6070
        %6072 = vrot.lane.b32.xlu0 %v6023, 28
        %v6073 = vpop.permute.xlu0 %6072
        %vm6099 = vcmask 257248
        %6100 = vst.msk [vmem:[#allocation2] sm:$0xf] %vm6099, %v6025
        %6101 = vst.msk [vmem:[#allocation2 + $0x4] sm:$0xf] %vm6099, %v6027
        %6102 = vst.msk [vmem:[#allocation2 + $0x8] sm:$0xf] %vm6099, %v6029
        %6103 = vst.msk [vmem:[#allocation2 + $0xc] sm:$0xf] %vm6099, %v6031
        %6104 = vst.msk [vmem:[#allocation2 + $0x10] sm:$0xf] %vm6099, %v6033
        %6105 = vst.msk [vmem:[#allocation2 + $0x14] sm:$0xf] %vm6099, %v6035
        %6106 = vst.msk [vmem:[#allocation2 + $0x18] sm:$0xf] %vm6099, %v6037
        %6107 = vst.msk [vmem:[#allocation2 + $0x1c] sm:$0xf] %vm6099, %v6039
        %6108 = vst.msk [vmem:[#allocation2 + $0x20] sm:$0xf] %vm6099, %v6041
        %6109 = vst.msk [vmem:[#allocation2 + $0x24] sm:$0xf] %vm6099, %v6043
        %6110 = vst.msk [vmem:[#allocation2 + $0x28] sm:$0xf] %vm6099, %v6045
        %6111 = vst.msk [vmem:[#allocation2 + $0x2c] sm:$0xf] %vm6099, %v6047
        %6112 = vst.msk [vmem:[#allocation2 + $0x30] sm:$0xf] %vm6099, %v6049
        %6113 = vst.msk [vmem:[#allocation2 + $0x34] sm:$0xf] %vm6099, %v6051
        %6114 = vst.msk [vmem:[#allocation2 + $0x38] sm:$0xf] %vm6099, %v6053
        %6115 = vst.msk [vmem:[#allocation2 + $0x3c] sm:$0xf] %vm6099, %v6055
        %6116 = vst.msk [vmem:[#allocation2 + $0x40] sm:$0xf] %vm6099, %v6057
        %6117 = vst.msk [vmem:[#allocation2 + $0x44] sm:$0xf] %vm6099, %v6059
        %6118 = vst.msk [vmem:[#allocation2 + $0x48] sm:$0xf] %vm6099, %v6061
        %6119 = vst.msk [vmem:[#allocation2 + $0x4c] sm:$0xf] %vm6099, %v6063
        %6120 = vst.msk [vmem:[#allocation2 + $0x50] sm:$0xf] %vm6099, %v6065
        %6121 = vst.msk [vmem:[#allocation2 + $0x54] sm:$0xf] %vm6099, %v6067
        %6122 = vst.msk [vmem:[#allocation2 + $0x58] sm:$0xf] %vm6099, %v6069
        %6123 = vst.msk [vmem:[#allocation2 + $0x5c] sm:$0xf] %vm6099, %v6071
        %vm6124 = vcmask 255200
        %6125 = vst.msk [vmem:[#allocation2 + $0x60] sm:$0x3] %vm6124, %v6073
        %v6126 = vcombine.low %v382, %v1553
        %v6128 = vunpack.c.l.s4 1935823168
        %v6129 = vunpack.c.0.s8 %v6128
        %v6130 = vlaneseq
        %v6131 = vshrl.u32 %v6130, 7
        %v6132 = vsub.s32 %v6129, %v6131
        %v6133 = vrot.slane %v6126, %v6132
        %v6134 = vcombine.low %v6133, %v1029
        %v6136 = vunpack.c.l.s4 1935823168
        %v6137 = vunpack.c.0.s8 %v6136
        %v6138 = vlaneseq
        %v6139 = vshrl.u32 %v6138, 7
        %v6140 = vsub.s32 %v6137, %v6139
        %v6141 = vrot.slane %v6134, %v6140
        %v6142 = vcombine.low %v3771, %v4821
        %v6144 = vunpack.c.l.s4 1935823168
        %v6145 = vunpack.c.0.s8 %v6144
        %v6146 = vlaneseq
        %v6147 = vshrl.u32 %v6146, 7
        %v6148 = vsub.s32 %v6145, %v6147
        %v6149 = vrot.slane %v6142, %v6148
        %v6150 = vcombine.low %v1555, %v500
        %v6152 = vunpack.c.l.s4 1935823168
        %v6153 = vunpack.c.0.s8 %v6152
        %v6154 = vlaneseq
        %v6155 = vshrl.u32 %v6154, 7
        %v6156 = vsub.s32 %v6153, %v6155
        %v6157 = vrot.slane %v6150, %v6156
        %v6158 = vcombine.low %v6157, %v1125
        %v6160 = vunpack.c.l.s4 1935823168
        %v6161 = vunpack.c.0.s8 %v6160
        %v6162 = vlaneseq
        %v6163 = vshrl.u32 %v6162, 7
        %v6164 = vsub.s32 %v6161, %v6163
        %v6165 = vrot.slane %v6158, %v6164
        %v6166 = vcombine.low %v3819, %v4845
        %v6168 = vunpack.c.l.s4 1935823168
        %v6169 = vunpack.c.0.s8 %v6168
        %v6170 = vlaneseq
        %v6171 = vshrl.u32 %v6170, 7
        %v6172 = vsub.s32 %v6169, %v6171
        %v6173 = vrot.slane %v6166, %v6172
        %v6174 = vcombine.low %v570, %v1557
        %v6176 = vunpack.c.l.s4 1935823168
        %v6177 = vunpack.c.0.s8 %v6176
        %v6178 = vlaneseq
        %v6179 = vshrl.u32 %v6178, 7
        %v6180 = vsub.s32 %v6177, %v6179
        %v6181 = vrot.slane %v6174, %v6180
        %v6182 = vcombine.low %v6181, %v1197
        %v6184 = vunpack.c.l.s4 1935823168
        %v6185 = vunpack.c.0.s8 %v6184
        %v6186 = vlaneseq
        %v6187 = vshrl.u32 %v6186, 7
        %v6188 = vsub.s32 %v6185, %v6187
        %v6189 = vrot.slane %v6182, %v6188
        %v6190 = vcombine.low %v3883, %v4869
        %v6192 = vunpack.c.l.s4 1935823168
        %v6193 = vunpack.c.0.s8 %v6192
        %v6194 = vlaneseq
        %v6195 = vshrl.u32 %v6194, 7
        %v6196 = vsub.s32 %v6193, %v6195
        %v6197 = vrot.slane %v6190, %v6196
        %v6198 = vcombine.low %v1559, %v688
        %v6200 = vunpack.c.l.s4 1935823168
        %v6201 = vunpack.c.0.s8 %v6200
        %v6202 = vlaneseq
        %v6203 = vshrl.u32 %v6202, 7
        %v6204 = vsub.s32 %v6201, %v6203
        %v6205 = vrot.slane %v6198, %v6204
        %v6206 = vcombine.low %v6205, %v1293
        %v6208 = vunpack.c.l.s4 1935823168
        %v6209 = vunpack.c.0.s8 %v6208
        %v6210 = vlaneseq
        %v6211 = vshrl.u32 %v6210, 7
        %v6212 = vsub.s32 %v6209, %v6211
        %v6213 = vrot.slane %v6206, %v6212
        %v6214 = vcombine.low %v3931, %v4893
        %v6216 = vunpack.c.l.s4 1935823168
        %v6217 = vunpack.c.0.s8 %v6216
        %v6218 = vlaneseq
        %v6219 = vshrl.u32 %v6218, 7
        %v6220 = vsub.s32 %v6217, %v6219
        %v6221 = vrot.slane %v6214, %v6220
        %v6222 = vcombine.low %v758, %v1561
        %v6224 = vunpack.c.l.s4 1935823168
        %v6225 = vunpack.c.0.s8 %v6224
        %v6226 = vlaneseq
        %v6227 = vshrl.u32 %v6226, 7
        %v6228 = vsub.s32 %v6225, %v6227
        %v6229 = vrot.slane %v6222, %v6228
        %v6230 = vcombine.low %v6229, %v1365
        %v6232 = vunpack.c.l.s4 1935823168
        %v6233 = vunpack.c.0.s8 %v6232
        %v6234 = vlaneseq
        %v6235 = vshrl.u32 %v6234, 7
        %v6236 = vsub.s32 %v6233, %v6235
        %v6237 = vrot.slane %v6230, %v6236
        %v6238 = vcombine.low %v3995, %v4917
        %v6240 = vunpack.c.l.s4 1935823168
        %v6241 = vunpack.c.0.s8 %v6240
        %v6242 = vlaneseq
        %v6243 = vshrl.u32 %v6242, 7
        %v6244 = vsub.s32 %v6241, %v6243
        %v6245 = vrot.slane %v6238, %v6244
        %v6246 = vcombine.low %v1563, %v876
        %v6248 = vunpack.c.l.s4 1935823168
        %v6249 = vunpack.c.0.s8 %v6248
        %v6250 = vlaneseq
        %v6251 = vshrl.u32 %v6250, 7
        %v6252 = vsub.s32 %v6249, %v6251
        %v6253 = vrot.slane %v6246, %v6252
        %v6254 = vcombine.low %v6253, %v1461
        %v6256 = vunpack.c.l.s4 1935823168
        %v6257 = vunpack.c.0.s8 %v6256
        %v6258 = vlaneseq
        %v6259 = vshrl.u32 %v6258, 7
        %v6260 = vsub.s32 %v6257, %v6259
        %v6261 = vrot.slane %v6254, %v6260
        %v6262 = vcombine.low %v4044, %v4942
        %v6264 = vunpack.c.l.s4 1935823168
        %v6265 = vunpack.c.0.s8 %v6264
        %v6266 = vlaneseq
        %v6267 = vshrl.u32 %v6266, 7
        %v6268 = vsub.s32 %v6265, %v6267
        %v6269 = vrot.slane %v6262, %v6268
        %v6270 = vcombine.low %v3682, %v4208
        %v6271 = vcombine.low %v3683, %v5114
        %v6273 = vunpack.c.l.s4 1935823168
        %v6274 = vunpack.c.0.s8 %v6273
        %v6275 = vlaneseq
        %v6276 = vshrl.u32 %v6275, 7
        %v6277 = vsub.s32 %v6274, %v6276
        %v6278 = vrot.slane %v6270, %v6277
        %v6280 = vunpack.c.l.s4 1935823168
        %v6281 = vunpack.c.0.s8 %v6280
        %v6282 = vlaneseq
        %v6283 = vshrl.u32 %v6282, 7
        %v6284 = vsub.s32 %v6281, %v6283
        %v6285 = vrot.slane %v6271, %v6284
        %v6286 = vcombine.low %v6278, %v6285
        %v6288 = vunpack.c.l.s4 1935823168
        %v6289 = vunpack.c.0.s8 %v6288
        %v6290 = vlaneseq
        %v6291 = vshrl.u32 %v6290, 7
        %v6292 = vsub.s32 %v6289, %v6291
        %v6293 = vrot.slane %v6286, %v6292
        %v6294 = vcombine.low %v5116, %v5138
        %v6296 = vunpack.c.l.s4 1935823168
        %v6297 = vunpack.c.0.s8 %v6296
        %v6298 = vlaneseq
        %v6299 = vshrl.u32 %v6298, 7
        %v6300 = vsub.s32 %v6297, %v6299
        %v6301 = vrot.slane %v6294, %v6300
        %v6302 = vcombine.low %v5411, %v6301
        %v6304 = vunpack.c.l.s4 1935823168
        %v6305 = vunpack.c.0.s8 %v6304
        %v6306 = vlaneseq
        %v6307 = vshrl.u32 %v6306, 7
        %v6308 = vsub.s32 %v6305, %v6307
        %v6309 = vrot.slane %v6302, %v6308
        %v6311 = vunpack.c.l.s4 1935823168
        %v6312 = vunpack.c.0.s8 %v6311
        %v6313 = vlaneseq
        %v6314 = vshrl.u32 %v6313, 7
        %v6315 = vsub.s32 %v6312, %v6314
        %v6316 = vrot.slane %v5544, %v6315
        %v6317 = vcombine.low %v5433, %v6316
        %v6319 = vunpack.c.l.s4 1935823168
        %v6320 = vunpack.c.0.s8 %v6319
        %v6321 = vlaneseq
        %v6322 = vshrl.u32 %v6321, 7
        %v6323 = vsub.s32 %v6320, %v6322
        %v6324 = vrot.slane %v6317, %v6323
        %6325 = vrot.lane.b32.xlu0 %v3731, 32
        %v6326 = vpop.permute.xlu0 %6325
        %6327 = vrot.lane.b32.xlu0 %v6141, 32
        %v6328 = vpop.permute.xlu0 %6327
        %6329 = vrot.lane.b32.xlu0 %v3763, 32
        %v6330 = vpop.permute.xlu0 %6329
        %6331 = vrot.lane.b32.xlu0 %v6149, 32
        %v6332 = vpop.permute.xlu0 %6331
        %6333 = vrot.lane.b32.xlu0 %v3795, 32
        %v6334 = vpop.permute.xlu0 %6333
        %6335 = vrot.lane.b32.xlu0 %v6165, 32
        %v6336 = vpop.permute.xlu0 %6335
        %6337 = vrot.lane.b32.xlu0 %v6173, 32
        %v6338 = vpop.permute.xlu0 %6337
        %6339 = vrot.lane.b32.xlu0 %v3843, 32
        %v6340 = vpop.permute.xlu0 %6339
        %6341 = vrot.lane.b32.xlu0 %v6189, 32
        %v6342 = vpop.permute.xlu0 %6341
        %6343 = vrot.lane.b32.xlu0 %v3875, 32
        %v6344 = vpop.permute.xlu0 %6343
        %6345 = vrot.lane.b32.xlu0 %v6197, 32
        %v6346 = vpop.permute.xlu0 %6345
        %6347 = vrot.lane.b32.xlu0 %v3907, 32
        %v6348 = vpop.permute.xlu0 %6347
        %6349 = vrot.lane.b32.xlu0 %v6213, 32
        %v6350 = vpop.permute.xlu0 %6349
        %6351 = vrot.lane.b32.xlu0 %v6221, 32
        %v6352 = vpop.permute.xlu0 %6351
        %6353 = vrot.lane.b32.xlu0 %v3955, 32
        %v6354 = vpop.permute.xlu0 %6353
        %6355 = vrot.lane.b32.xlu0 %v6237, 32
        %v6356 = vpop.permute.xlu0 %6355
        %6357 = vrot.lane.b32.xlu0 %v3987, 32
        %v6358 = vpop.permute.xlu0 %6357
        %6359 = vrot.lane.b32.xlu0 %v6245, 32
        %v6360 = vpop.permute.xlu0 %6359
        %6361 = vrot.lane.b32.xlu0 %v4019, 32
        %v6362 = vpop.permute.xlu0 %6361
        %6363 = vrot.lane.b32.xlu0 %v6261, 32
        %v6364 = vpop.permute.xlu0 %6363
        %6365 = vrot.lane.b32.xlu0 %v6269, 32
        %v6366 = vpop.permute.xlu0 %6365
        %6367 = vrot.lane.b32.xlu0 %v4083, 32
        %v6368 = vpop.permute.xlu0 %6367
        %6369 = vrot.lane.b32.xlu0 %v6293, 32
        %v6370 = vpop.permute.xlu0 %6369
        %6371 = vrot.lane.b32.xlu0 %v6309, 32
        %v6372 = vpop.permute.xlu0 %6371
        %6373 = vrot.lane.b32.xlu0 %v6324, 32
        %v6374 = vpop.permute.xlu0 %6373
        %vm6400 = vcmask 290048
        %6401 = vst.msk [vmem:[#allocation2] sm:$0xf] %vm6400, %v6326
        %6402 = vst.msk [vmem:[#allocation2 + $0x4] sm:$0xf] %vm6400, %v6328
        %6403 = vst.msk [vmem:[#allocation2 + $0x8] sm:$0xf] %vm6400, %v6330
        %6404 = vst.msk [vmem:[#allocation2 + $0xc] sm:$0xf] %vm6400, %v6332
        %6405 = vst.msk [vmem:[#allocation2 + $0x10] sm:$0xf] %vm6400, %v6334
        %6406 = vst.msk [vmem:[#allocation2 + $0x14] sm:$0xf] %vm6400, %v6336
        %6407 = vst.msk [vmem:[#allocation2 + $0x18] sm:$0xf] %vm6400, %v6338
        %6408 = vst.msk [vmem:[#allocation2 + $0x1c] sm:$0xf] %vm6400, %v6340
        %6409 = vst.msk [vmem:[#allocation2 + $0x20] sm:$0xf] %vm6400, %v6342
        %6410 = vst.msk [vmem:[#allocation2 + $0x24] sm:$0xf] %vm6400, %v6344
        %6411 = vst.msk [vmem:[#allocation2 + $0x28] sm:$0xf] %vm6400, %v6346
        %6412 = vst.msk [vmem:[#allocation2 + $0x2c] sm:$0xf] %vm6400, %v6348
        %6413 = vst.msk [vmem:[#allocation2 + $0x30] sm:$0xf] %vm6400, %v6350
        %6414 = vst.msk [vmem:[#allocation2 + $0x34] sm:$0xf] %vm6400, %v6352
        %6415 = vst.msk [vmem:[#allocation2 + $0x38] sm:$0xf] %vm6400, %v6354
        %6416 = vst.msk [vmem:[#allocation2 + $0x3c] sm:$0xf] %vm6400, %v6356
        %6417 = vst.msk [vmem:[#allocation2 + $0x40] sm:$0xf] %vm6400, %v6358
        %6418 = vst.msk [vmem:[#allocation2 + $0x44] sm:$0xf] %vm6400, %v6360
        %6419 = vst.msk [vmem:[#allocation2 + $0x48] sm:$0xf] %vm6400, %v6362
        %6420 = vst.msk [vmem:[#allocation2 + $0x4c] sm:$0xf] %vm6400, %v6364
        %6421 = vst.msk [vmem:[#allocation2 + $0x50] sm:$0xf] %vm6400, %v6366
        %6422 = vst.msk [vmem:[#allocation2 + $0x54] sm:$0xf] %vm6400, %v6368
        %6423 = vst.msk [vmem:[#allocation2 + $0x58] sm:$0xf] %vm6400, %v6370
        %6424 = vst.msk [vmem:[#allocation2 + $0x5c] sm:$0xf] %vm6400, %v6372
        %vm6425 = vcmask 288000
        %6426 = vst.msk [vmem:[#allocation2 + $0x60] sm:$0x3] %vm6425, %v6374
        %v6427 = vld [vmem:[#allocation2] sm:$0xf]
        %v6428 = vld [vmem:[#allocation2 + $0x4] sm:$0xf]
        %v6429 = vld [vmem:[#allocation2 + $0x8] sm:$0xf]
        %v6430 = vld [vmem:[#allocation2 + $0xc] sm:$0xf]
        %v6431 = vld [vmem:[#allocation2 + $0x10] sm:$0xf]
        %v6432 = vld [vmem:[#allocation2 + $0x14] sm:$0xf]
        %v6433 = vld [vmem:[#allocation2 + $0x18] sm:$0xf]
        %v6434 = vld [vmem:[#allocation2 + $0x1c] sm:$0xf]
        %v6435 = vld [vmem:[#allocation2 + $0x20] sm:$0xf]
        %v6436 = vld [vmem:[#allocation2 + $0x24] sm:$0xf]
        %v6437 = vld [vmem:[#allocation2 + $0x28] sm:$0xf]
        %v6438 = vld [vmem:[#allocation2 + $0x2c] sm:$0xf]
        %v6439 = vld [vmem:[#allocation2 + $0x30] sm:$0xf]
        %v6440 = vld [vmem:[#allocation2 + $0x34] sm:$0xf]
        %v6441 = vld [vmem:[#allocation2 + $0x38] sm:$0xf]
        %v6442 = vld [vmem:[#allocation2 + $0x3c] sm:$0xf]
        %v6443 = vld [vmem:[#allocation2 + $0x40] sm:$0xf]
        %v6444 = vld [vmem:[#allocation2 + $0x44] sm:$0xf]
        %v6445 = vld [vmem:[#allocation2 + $0x48] sm:$0xf]
        %v6446 = vld [vmem:[#allocation2 + $0x4c] sm:$0xf]
        %v6447 = vld [vmem:[#allocation2 + $0x50] sm:$0xf]
        %v6448 = vld [vmem:[#allocation2 + $0x54] sm:$0xf]
        %v6449 = vld [vmem:[#allocation2 + $0x58] sm:$0xf]
        %v6450 = vld [vmem:[#allocation2 + $0x5c] sm:$0xf]
        %v6451 = vld [vmem:[#allocation2 + $0x60] sm:$0x3]
        %v6452 = vld [vmem:[%s1] sm:$0xf]
        %v6453 = vld [vmem:[%s1 + $0x4] sm:$0xf]
        %v6454 = vld [vmem:[%s1 + $0x8] sm:$0xf]
        %v6455 = vld [vmem:[%s1 + $0xc] sm:$0xf]
        %v6456 = vld [vmem:[%s1 + $0x10] sm:$0x3]
        %v6482 = vunpack.c.l.b16 %v6427
        %v6483 = vunpack.c.l.b16 %v6428
        %v6484 = vunpack.c.l.b16 %v6429
        %v6485 = vunpack.c.l.b16 %v6430
        %v6486 = vunpack.c.l.b16 %v6431
        %v6487 = vunpack.c.l.b16 %v6432
        %v6488 = vunpack.c.l.b16 %v6433
        %v6489 = vunpack.c.l.b16 %v6434
        %v6490 = vunpack.c.l.b16 %v6435
        %v6491 = vunpack.c.l.b16 %v6436
        %v6492 = vunpack.c.l.b16 %v6437
        %v6493 = vunpack.c.l.b16 %v6438
        %v6494 = vunpack.c.l.b16 %v6439
        %v6495 = vunpack.c.l.b16 %v6440
        %v6496 = vunpack.c.l.b16 %v6441
        %v6497 = vunpack.c.l.b16 %v6442
        %v6498 = vunpack.c.l.b16 %v6443
        %v6499 = vunpack.c.l.b16 %v6444
        %v6500 = vunpack.c.l.b16 %v6445
        %v6501 = vunpack.c.l.b16 %v6446
        %v6502 = vunpack.c.l.b16 %v6447
        %v6503 = vunpack.c.l.b16 %v6448
        %v6504 = vunpack.c.l.b16 %v6449
        %v6505 = vunpack.c.l.b16 %v6450
        %v6506 = vunpack.c.l.b16 %v6451
        %v6507 = vpack.c.b16 %v6483, %v6482
        %v6508 = vpack.c.b16 %v6485, %v6484
        %v6509 = vpack.c.b16 %v6487, %v6486
        %v6510 = vpack.c.b16 %v6489, %v6488
        %v6511 = vpack.c.b16 %v6491, %v6490
        %v6512 = vpack.c.b16 %v6493, %v6492
        %v6513 = vpack.c.b16 %v6495, %v6494
        %v6514 = vpack.c.b16 %v6497, %v6496
        %v6515 = vpack.c.b16 %v6499, %v6498
        %v6516 = vpack.c.b16 %v6501, %v6500
        %v6517 = vpack.c.b16 %v6503, %v6502
        %v6518 = vpack.c.b16 %v6505, %v6504
        %v6519 = vpack.c.b16 %v6506, %v6506
        %v6525 = vunpack.c.l.b16 %v6452
        %v6526 = vunpack.c.l.b16 %v6453
        %v6527 = vunpack.c.l.b16 %v6454
        %v6528 = vunpack.c.l.b16 %v6455
        %v6529 = vunpack.c.l.b16 %v6456
        %v6530 = vpack.c.b16 %v6526, %v6525
        %v6531 = vpack.c.b16 %v6528, %v6527
        %v6532 = vpack.c.b16 %v6529, %v6529
        %vm6535 = vcmask 293888
        %v6537 = vsel %vm6535, %v6507, 0
        %v6540 = vsel %vm6535, %v6508, 0
        %v6543 = vsel %vm6535, %v6509, 0
        %v6546 = vsel %vm6535, %v6510, 0
        %v6549 = vsel %vm6535, %v6511, 0
        %v6552 = vsel %vm6535, %v6512, 0
        %v6555 = vsel %vm6535, %v6513, 0
        %v6558 = vsel %vm6535, %v6514, 0
        %v6561 = vsel %vm6535, %v6515, 0
        %v6564 = vsel %vm6535, %v6516, 0
        %v6567 = vsel %vm6535, %v6517, 0
        %v6570 = vsel %vm6535, %v6518, 0
        %v6573 = vsel %vm6535, %v6519, 0
        %vm6575 = vcmask 1041408
        %v6577 = vsel %vm6575, %v6532, 0
        %6579 = vmatprep.subr.bf16.mxu0 0
        %6580 = vmatpush1.bf16.msra.mxu0 %v6530
        %6581 = vmatprep.subr.bf16.mxu0 0
        %6582 = vmatpush1.bf16.msra.mxu0 %v6531
        %6583 = vmatprep.subr.bf16.mxu0 0
        %6584 = vmatpush1.bf16.msra.mxu0 %v6577
        %6585 = vmatprep.subr.bf16.mxu0 0
        %6586 = vmatpush1.bf16.msra.mxu0 0
        %6587 = vmatprep.subr.bf16.mxu0 0
        %6588 = vmatpush1.bf16.msra.mxu0 0
        %6589 = vmatprep.subr.bf16.mxu0 0
        %6590 = vmatpush1.bf16.msra.mxu0 0
        %6591 = vmatprep.subr.bf16.mxu0 0
        %6592 = vmatpush1.bf16.msra.mxu0 0
        %6593 = vmatprep.subr.bf16.mxu0 0
        %6594 = vmatpush1.bf16.msra.mxu0 0
        %6595 = vmatprep.subr.bf16.mxu0 0
        %6596 = vmatpush1.bf16.msra.mxu0 0
        %6597 = vmatprep.subr.bf16.mxu0 0
        %6598 = vmatpush1.bf16.msra.mxu0 0
        %6599 = vmatprep.subr.bf16.mxu0 0
        %6600 = vmatpush1.bf16.msra.mxu0 0
        %6601 = vmatprep.subr.bf16.mxu0 0
        %6602 = vmatpush1.bf16.msra.mxu0 0
        %6603 = vmatprep.subr.bf16.mxu0 0
        %6604 = vmatpush1.bf16.msra.mxu0 0
        %6605 = vmatprep.subr.bf16.mxu0 0
        %6606 = vmatpush1.bf16.msra.mxu0 0
        %6607 = vmatprep.subr.bf16.mxu0 0
        %6608 = vmatpush1.bf16.msra.mxu0 0
        %6609 = vmatprep.subr.bf16.mxu0 0
        %6610 = vmatpush1.bf16.msra.mxu0 0
        %6611 = vmatprep.mubr.bf16.mxu0 0
        %6612 = vmatmul.mubr.bf16.gmra.mrb[0].mxu0 %v6537
        %v6613 = vpop.f32.mrb[0].mxu0
        %v6614 = vadd.f32 0.0, %v6613
        %v6615 = vpop.f32.mrb[0].mxu0
        %v6616 = vpop.f32.mrb[0].mxu0
        %v6617 = vadd.f32 0.0, %v6616
        %v6618 = vpop.f32.mrb[0].mxu0
        %6619 = vmatprep.mubr.bf16.mxu0 0
        %6620 = vmatmul.mubr.bf16.gmra.mrb[0].mxu0 %v6540
        %v6621 = vpop.f32.mrb[0].mxu0
        %v6622 = vadd.f32 0.0, %v6621
        %v6623 = vpop.f32.mrb[0].mxu0
        %v6624 = vpop.f32.mrb[0].mxu0
        %v6625 = vadd.f32 0.0, %v6624
        %v6626 = vpop.f32.mrb[0].mxu0
        %6627 = vmatprep.mubr.bf16.mxu0 0
        %6628 = vmatmul.mubr.bf16.gmra.mrb[0].mxu0 %v6543
        %v6629 = vpop.f32.mrb[0].mxu0
        %v6630 = vadd.f32 0.0, %v6629
        %v6631 = vpop.f32.mrb[0].mxu0
        %v6632 = vpop.f32.mrb[0].mxu0
        %v6633 = vadd.f32 0.0, %v6632
        %v6634 = vpop.f32.mrb[0].mxu0
        %6635 = vmatprep.mubr.bf16.mxu0 0
        %6636 = vmatmul.mubr.bf16.gmra.mrb[0].mxu0 %v6546
        %v6637 = vpop.f32.mrb[0].mxu0
        %v6638 = vadd.f32 0.0, %v6637
        %v6639 = vpop.f32.mrb[0].mxu0
        %v6640 = vpop.f32.mrb[0].mxu0
        %v6641 = vadd.f32 0.0, %v6640
        %v6642 = vpop.f32.mrb[0].mxu0
        %6643 = vmatprep.mubr.bf16.mxu0 0
        %6644 = vmatmul.mubr.bf16.gmra.mrb[0].mxu0 %v6549
        %v6645 = vpop.f32.mrb[0].mxu0
        %v6646 = vadd.f32 0.0, %v6645
        %v6647 = vpop.f32.mrb[0].mxu0
        %v6648 = vpop.f32.mrb[0].mxu0
        %v6649 = vadd.f32 0.0, %v6648
        %v6650 = vpop.f32.mrb[0].mxu0
        %6651 = vmatprep.mubr.bf16.mxu0 0
        %6652 = vmatmul.mubr.bf16.gmra.mrb[0].mxu0 %v6552
        %v6653 = vpop.f32.mrb[0].mxu0
        %v6654 = vadd.f32 0.0, %v6653
        %v6655 = vpop.f32.mrb[0].mxu0
        %v6656 = vpop.f32.mrb[0].mxu0
        %v6657 = vadd.f32 0.0, %v6656
        %v6658 = vpop.f32.mrb[0].mxu0
        %6659 = vmatprep.mubr.bf16.mxu0 0
        %6660 = vmatmul.mubr.bf16.gmra.mrb[0].mxu0 %v6555
        %v6661 = vpop.f32.mrb[0].mxu0
        %v6662 = vadd.f32 0.0, %v6661
        %v6663 = vpop.f32.mrb[0].mxu0
        %v6664 = vpop.f32.mrb[0].mxu0
        %v6665 = vadd.f32 0.0, %v6664
        %v6666 = vpop.f32.mrb[0].mxu0
        %6667 = vmatprep.mubr.bf16.mxu0 0
        %6668 = vmatmul.mubr.bf16.gmra.mrb[0].mxu0 %v6558
        %v6669 = vpop.f32.mrb[0].mxu0
        %v6670 = vadd.f32 0.0, %v6669
        %v6671 = vpop.f32.mrb[0].mxu0
        %v6672 = vpop.f32.mrb[0].mxu0
        %v6673 = vadd.f32 0.0, %v6672
        %v6674 = vpop.f32.mrb[0].mxu0
        %6675 = vmatprep.mubr.bf16.mxu0 0
        %6676 = vmatmul.mubr.bf16.gmra.mrb[0].mxu0 %v6561
        %v6677 = vpop.f32.mrb[0].mxu0
        %v6678 = vadd.f32 0.0, %v6677
        %v6679 = vpop.f32.mrb[0].mxu0
        %v6680 = vpop.f32.mrb[0].mxu0
        %v6681 = vadd.f32 0.0, %v6680
        %v6682 = vpop.f32.mrb[0].mxu0
        %6683 = vmatprep.mubr.bf16.mxu0 0
        %6684 = vmatmul.mubr.bf16.gmra.mrb[0].mxu0 %v6564
        %v6685 = vpop.f32.mrb[0].mxu0
        %v6686 = vadd.f32 0.0, %v6685
        %v6687 = vpop.f32.mrb[0].mxu0
        %v6688 = vpop.f32.mrb[0].mxu0
        %v6689 = vadd.f32 0.0, %v6688
        %v6690 = vpop.f32.mrb[0].mxu0
        %6691 = vmatprep.mubr.bf16.mxu0 0
        %6692 = vmatmul.mubr.bf16.gmra.mrb[0].mxu0 %v6567
        %v6693 = vpop.f32.mrb[0].mxu0
        %v6694 = vadd.f32 0.0, %v6693
        %v6695 = vpop.f32.mrb[0].mxu0
        %v6696 = vpop.f32.mrb[0].mxu0
        %v6697 = vadd.f32 0.0, %v6696
        %v6698 = vpop.f32.mrb[0].mxu0
        %6699 = vmatprep.mubr.bf16.mxu0 0
        %6700 = vmatmul.mubr.bf16.gmra.mrb[0].mxu0 %v6570
        %v6701 = vpop.f32.mrb[0].mxu0
        %v6702 = vadd.f32 0.0, %v6701
        %v6703 = vpop.f32.mrb[0].mxu0
        %v6704 = vpop.f32.mrb[0].mxu0
        %v6705 = vadd.f32 0.0, %v6704
        %v6706 = vpop.f32.mrb[0].mxu0
        %6707 = vmatprep.mubr.bf16.mxu0 0
        %6708 = vmatmul.mubr.bf16.gmra.mrb[0].mxu0 %v6573
        %v6709 = vpop.f32.mrb[0].mxu0
        %v6710 = vadd.f32 0.0, %v6709
        %v6711 = vpop.f32.mrb[0].mxu0
        %v6712 = vpop.f32.mrb[0].mxu0
        %v6713 = vpop.f32.mrb[0].mxu0
        %6714 = vdwg.mxu0
        %6715 = vst [vmem:[%s181] sm:$0xff] %v6614
        %6716 = vst [vmem:[%s181 + $0x8] sm:$0xff] %v6617
        %6717 = vst [vmem:[%s181 + $0x10] sm:$0xff] %v6622
        %6718 = vst [vmem:[%s181 + $0x18] sm:$0xff] %v6625
        %6719 = vst [vmem:[%s181 + $0x20] sm:$0xff] %v6630
        %6720 = vst [vmem:[%s181 + $0x28] sm:$0xff] %v6633
        %6721 = vst [vmem:[%s181 + $0x30] sm:$0xff] %v6638
        %6722 = vst [vmem:[%s181 + $0x38] sm:$0xff] %v6641
        %6723 = vst [vmem:[%s181 + $0x40] sm:$0xff] %v6646
        %6724 = vst [vmem:[%s181 + $0x48] sm:$0xff] %v6649
        %6725 = vst [vmem:[%s181 + $0x50] sm:$0xff] %v6654
        %6726 = vst [vmem:[%s181 + $0x58] sm:$0xff] %v6657
        %6727 = vst [vmem:[%s181 + $0x60] sm:$0xff] %v6662
        %6728 = vst [vmem:[%s181 + $0x68] sm:$0xff] %v6665
        %6729 = vst [vmem:[%s181 + $0x70] sm:$0xff] %v6670
        %6730 = vst [vmem:[%s181 + $0x78] sm:$0xff] %v6673
        %6731 = vst [vmem:[%s181 + $0x80] sm:$0xff] %v6678
        %6732 = vst [vmem:[%s181 + $0x88] sm:$0xff] %v6681
        %6733 = vst [vmem:[%s181 + $0x90] sm:$0xff] %v6686
        %6734 = vst [vmem:[%s181 + $0x98] sm:$0xff] %v6689
        %6735 = vst [vmem:[%s181 + $0xa0] sm:$0xff] %v6694
        %6736 = vst [vmem:[%s181 + $0xa8] sm:$0xff] %v6697
        %6737 = vst [vmem:[%s181 + $0xb0] sm:$0xff] %v6702
        %6738 = vst [vmem:[%s181 + $0xb8] sm:$0xff] %v6705
        %6739 = vst [vmem:[%s181 + $0xc0] sm:$0xf] %v6710
        %v6740 = vadd.f32 %v6614, %v6617
        %v6741 = vadd.f32 %v6740, %v6622
        %v6742 = vadd.f32 %v6741, %v6625
        %v6743 = vadd.f32 %v6742, %v6630
        %v6744 = vadd.f32 %v6743, %v6633
        %v6745 = vadd.f32 %v6744, %v6638
        %v6746 = vadd.f32 %v6745, %v6641
        %v6747 = vadd.f32 %v6746, %v6646
        %v6748 = vadd.f32 %v6747, %v6649
        %v6749 = vadd.f32 %v6748, %v6654
        %v6750 = vadd.f32 %v6749, %v6657
        %v6751 = vadd.f32 %v6750, %v6662
        %v6752 = vadd.f32 %v6751, %v6665
        %v6753 = vadd.f32 %v6752, %v6670
        %v6754 = vadd.f32 %v6753, %v6673
        %v6755 = vadd.f32 %v6754, %v6678
        %v6756 = vadd.f32 %v6755, %v6681
        %v6757 = vadd.f32 %v6756, %v6686
        %v6758 = vadd.f32 %v6757, %v6689
        %v6759 = vadd.f32 %v6758, %v6694
        %v6760 = vadd.f32 %v6759, %v6697
        %v6761 = vadd.f32 %v6760, %v6702
        %v6762 = vadd.f32 %v6761, %v6705
        %vm6763 = vcmask 1043456
        %v6764 = vsel %vm6763, %v6710, 0.0
        %v6765 = vadd.f32 %v6762, %v6764
        %v6766 = vrot.slane %v6765, 4
        %v6767 = vadd.f32 %v6765, %v6766
        %v6768 = vrot.slane %v6767, 2
        %v6769 = vadd.f32 %v6767, %v6768
        %v6770 = vrot.slane %v6769, 1
        %v6771 = vadd.f32 %v6769, %v6770
        %v6772 = vmul.f32 %v6614, %v6614
        %v6773 = vmul.f32 %v6617, %v6617
        %v6774 = vmul.f32 %v6622, %v6622
        %v6775 = vmul.f32 %v6625, %v6625
        %v6776 = vmul.f32 %v6630, %v6630
        %v6777 = vmul.f32 %v6633, %v6633
        %v6778 = vmul.f32 %v6638, %v6638
        %v6779 = vmul.f32 %v6641, %v6641
        %v6780 = vmul.f32 %v6646, %v6646
        %v6781 = vmul.f32 %v6649, %v6649
        %v6782 = vmul.f32 %v6654, %v6654
        %v6783 = vmul.f32 %v6657, %v6657
        %v6784 = vmul.f32 %v6662, %v6662
        %v6785 = vmul.f32 %v6665, %v6665
        %v6786 = vmul.f32 %v6670, %v6670
        %v6787 = vmul.f32 %v6673, %v6673
        %v6788 = vmul.f32 %v6678, %v6678
        %v6789 = vmul.f32 %v6681, %v6681
        %v6790 = vmul.f32 %v6686, %v6686
        %v6791 = vmul.f32 %v6689, %v6689
        %v6792 = vmul.f32 %v6694, %v6694
        %v6793 = vmul.f32 %v6697, %v6697
        %v6794 = vmul.f32 %v6702, %v6702
        %v6795 = vmul.f32 %v6705, %v6705
        %v6796 = vmul.f32 %v6710, %v6710
        %v6797 = vadd.f32 %v6772, %v6773
        %v6798 = vadd.f32 %v6797, %v6774
        %v6799 = vadd.f32 %v6798, %v6775
        %v6800 = vadd.f32 %v6799, %v6776
        %v6801 = vadd.f32 %v6800, %v6777
        %v6802 = vadd.f32 %v6801, %v6778
        %v6803 = vadd.f32 %v6802, %v6779
        %v6804 = vadd.f32 %v6803, %v6780
        %v6805 = vadd.f32 %v6804, %v6781
        %v6806 = vadd.f32 %v6805, %v6782
        %v6807 = vadd.f32 %v6806, %v6783
        %v6808 = vadd.f32 %v6807, %v6784
        %v6809 = vadd.f32 %v6808, %v6785
        %v6810 = vadd.f32 %v6809, %v6786
        %v6811 = vadd.f32 %v6810, %v6787
        %v6812 = vadd.f32 %v6811, %v6788
        %v6813 = vadd.f32 %v6812, %v6789
        %v6814 = vadd.f32 %v6813, %v6790
        %v6815 = vadd.f32 %v6814, %v6791
        %v6816 = vadd.f32 %v6815, %v6792
        %v6817 = vadd.f32 %v6816, %v6793
        %v6818 = vadd.f32 %v6817, %v6794
        %v6819 = vadd.f32 %v6818, %v6795
        %v6820 = vsel %vm6763, %v6796, 0.0
        %v6821 = vadd.f32 %v6819, %v6820
        %v6822 = vrot.slane %v6821, 4
        %v6823 = vadd.f32 %v6821, %v6822
        %v6824 = vrot.slane %v6823, 2
        %v6825 = vadd.f32 %v6823, %v6824
        %v6826 = vrot.slane %v6825, 1
        %v6827 = vadd.f32 %v6825, %v6826
        %vm6828 = vcmask 1040384
        %v6829 = vsel %vm6828, %v6771, %v6827
        %6830 = vst [vmem:[%s171] sm:$0x3] %v6829
        %p6831 = scmp.lt.s32.totalorder %s18, 1
        %s6832 = scalar_select %p6831, %s18, 1
        %s6833 = smul.addr %s6832, 25
        %s6834 = smul.addr %s6833, 8
        %s6835 = scalar_lea.vmem %s2, %s6834
        %s6836 = sand.u32 %s99, 1
        %s6837 = scalar_lea.sflag [#allocation4], %s6836
        %s6838 = sand.u32 %s99, 1
        %s6839 = smul.addr %s6838, 2
        %s6840 = scalar_lea.vmem [#allocation3], %s6839
        // Predicated region
        $region29: #{tpu_custom_call.1} parent=27 // pred_check
          %p6841 = pneg %p83
        $region30: #{tpu_custom_call.1} parent=27 // pred_check_branch
          %6843 = sbr.rel (%p6841) target = $region32
        $region31: #{tpu_custom_call.1} parent=27 // pred_region
          _
        $region32: #{tpu_custom_call.1} parent=27 // pred_fallthru
          _
        // Predicated region
        $region33: #{tpu_custom_call.1} parent=27 // pred_check
          %p6844 = pneg %p109
        $region34: #{tpu_custom_call.1} parent=27 // pred_check_branch
          %6846 = sbr.rel (%p6844) target = $region36
        $region35: #{tpu_custom_call.1} parent=27 // pred_region
          %s6848 = ssub.s32 32, 32
          %6849 = vsyncadd %s6837, %s6848
          %s6850 = smul.addr %s18, 32
          %s6851 = scalar_lea.hbm %s3, %s6850
          %s6853 = sshll.u32 %s6840, 4
          %s6854 = int_to_ptr.vmem [resolvable:$true] %s6853
          %6856 = dma.vmem_to_hbm [thread:$0]  %s6854, 32, %s6851, %s6837
        $region36: #{tpu_custom_call.1} parent=27 // pred_fallthru
          _
      $region28: #{tpu_custom_call.1} parent=5 // pred_fallthru
        _
      %p6857 = scmp.le.s32.totalorder 2, %s13
      // Predicated region
      $region37: #{tpu_custom_call.1} parent=5 // pred_check
        %p6858 = pneg %p6857
      $region38: #{tpu_custom_call.1} parent=5 // pred_check_branch
        %6860 = sbr.rel (%p6858) target = $region40
      $region39: #{tpu_custom_call.1} parent=5 // pred_region
        %s6861 = ssub.s32 %s13, 2
        // Predicated region
        $region41: #{tpu_custom_call.1} parent=39 // pred_check
          %p6862 = pneg %p89
        $region42: #{tpu_custom_call.1} parent=39 // pred_check_branch
          %6864 = sbr.rel (%p6862) target = $region44
        $region43: #{tpu_custom_call.1} parent=39 // pred_region
          %p6865 = scmp.lt.s32.totalorder %s19, 1
          %s6866 = scalar_select %p6865, %s19, 1
          %s6867 = smul.addr %s6866, 25
          %s6868 = smul.addr %s6867, 8
          %s6869 = scalar_lea.vmem %s2, %s6868
        $region44: #{tpu_custom_call.1} parent=39 // pred_fallthru
          _
        // Predicated region
        $region45: #{tpu_custom_call.1} parent=39 // pred_check
          %p6870 = pneg %p115
        $region46: #{tpu_custom_call.1} parent=39 // pred_check_branch
          %6872 = sbr.rel (%p6870) target = $region48
        $region47: #{tpu_custom_call.1} parent=39 // pred_region
          %s6873 = sand.u32 %s100, 1
          %s6874 = scalar_lea.sflag [#allocation4], %s6873
          %s6875 = sand.u32 %s100, 1
          %s6876 = smul.addr %s6875, 2
          %s6877 = scalar_lea.vmem [#allocation3], %s6876
          %6878 = dma.done %s6874, 32
        $region48: #{tpu_custom_call.1} parent=39 // pred_fallthru
          _
      $region40: #{tpu_custom_call.1} parent=5 // pred_fallthru
        _
    $region6: #{tpu_custom_call.1} parent=1 // loop_footer
      %s17 = sadd.s32 1, %s13
    $region7: #{tpu_custom_call.1} parent=1 // loop_footer_branch
      %12 = sbr.rel target = $region3
    $region8: #{tpu_custom_call.1} parent=1 // loop_exit
      _
    %6879 = vsyncpa [#allocation4], 1
    %s6880 = scalar_lea.sflag [#allocation4], 1
    %6881 = vsyncpa %s6880, 1

</llo_original>
